<compile_context>
chip_gen: v7x
topology: tpu7x:2x2x1
jax: 0.10.0
libtpu: 0.0.40
codegen_flags: <defaults>
</compile_context>

<pallas_src>
import functools

import jax
import jax.numpy as jnp
from jax import lax
from jax.experimental import pallas as pl
from jax.experimental.pallas import tpu as pltpu

NEG_SLOPE = 0.01  # torch.nn.LeakyReLU default negative_slope
# Safe on v7x (64 MiB physical VMEM, leave headroom for pipeline buffers);
# raise to ~100 MiB on v5e/v6e (128 MiB physical) via the wrapper kwarg.
DEFAULT_VMEM_LIMIT = 48 * 1024 * 1024


def _leaky_relu(x):
    return jnp.where(x > 0, x, NEG_SLOPE * x)


def _round_up(x, m):
    return ((x + m - 1) // m) * m


# --------------------------------------------------------------------------
# Kernel 1: per-edge-tile  gather -> message MLP -> scatter-add (all on MXU)
# --------------------------------------------------------------------------
def _message_aggregate_kernel(src_ref, dst_ref, ea_ref, x0_ref,
                              w1a_ref, b1a_ref, w1b_ref, b1b_ref,
                              aggr_ref,            # bf16 output (written on last step)
                              acc_ref):            # f32 resident accumulator scratch
    t = pl.program_id(0)

    @pl.when(t == 0)
    def _init():
        acc_ref[...] = jnp.zeros_like(acc_ref)

    te = src_ref.shape[0]
    n_pad = x0_ref.shape[0]

    # ---- vectorized gather: x_j = onehot(src) @ x0 (f32, exact row selection) ----
    onehot_src = (src_ref[...] ==
                  lax.broadcasted_iota(jnp.int32, (te, n_pad), 1)).astype(jnp.float32)
    x_j = jnp.dot(onehot_src, x0_ref[...], preferred_element_type=jnp.float32)  # [TE, C1]

    # ---- message MLP: bf16 MXU matmuls, f32 accumulation; h stays bf16 ----
    tmp = (x_j * ea_ref[...]).astype(jnp.bfloat16)                               # [TE, C2]
    h = _leaky_relu(
        jnp.dot(tmp, w1a_ref[...], preferred_element_type=jnp.float32)
        + b1a_ref[...]).astype(jnp.bfloat16)                                     # [TE, 256]
    msg = _leaky_relu(
        jnp.dot(h, w1b_ref[...], preferred_element_type=jnp.float32)
        + b1b_ref[...])                                                          # [TE, 512] f32

    # ---- vectorized scatter-add: aggr += onehot(dst).T @ msg (f32 accumulation) ----
    # Padded edges have dst == N_pad, so their one-hot column is all-zero and they
    # contribute nothing (no explicit n_valid masking needed).
    onehot_dst_t = (lax.broadcasted_iota(jnp.int32, (n_pad, te), 0) ==
                    dst_ref[...]).astype(jnp.float32)                            # [N_pad, TE]
    acc_ref[...] += jnp.dot(onehot_dst_t, msg, preferred_element_type=jnp.float32)

    @pl.when(t == pl.num_programs(0) - 1)
    def _finalize():
        aggr_ref[...] = acc_ref[...].astype(aggr_ref.dtype)   # bf16 handoff to kernel 2


def _message_aggregate(x0_pad, ea_pad, src_col, dst_row, w1a, b1a, w1b, b1b,
                       *, edge_tile, vmem_limit):
    n_pad, c1 = x0_pad.shape
    e_pad, c2 = ea_pad.shape
    h1 = w1a.shape[1]      # 256
    h2 = w1b.shape[1]      # 512
    n_tiles = e_pad // edge_tile

    return pl.pallas_call(
        _message_aggregate_kernel,
        grid=(n_tiles,),
        in_specs=[
            pl.BlockSpec((edge_tile, 1), lambda t: (t, 0)),   # src indices (int32 VMEM column)
            pl.BlockSpec((1, edge_tile), lambda t: (0, t)),   # dst indices (int32 VMEM row)
            pl.BlockSpec((edge_tile, c2), lambda t: (t, 0)),  # edge_attr tile (pipelined)
            pl.BlockSpec((n_pad, c1), lambda t: (0, 0)),      # x0 (VMEM resident)
            pl.BlockSpec((c2, h1), lambda t: (0, 0)),         # w1a bf16 (resident)
            pl.BlockSpec((1, h1), lambda t: (0, 0)),          # b1a f32
            pl.BlockSpec((h1, h2), lambda t: (0, 0)),         # w1b bf16 (resident)
            pl.BlockSpec((1, h2), lambda t: (0, 0)),          # b1b f32
        ],
        out_specs=pl.BlockSpec((n_pad, h2), lambda t: (0, 0)),        # resident bf16 output
        out_shape=jax.ShapeDtypeStruct((n_pad, h2), jnp.bfloat16),
        scratch_shapes=[pltpu.VMEM((n_pad, h2), jnp.float32)],        # f32 accumulator
        compiler_params=pltpu.CompilerParams(
            dimension_semantics=("arbitrary",),                       # reduction over edge tiles
            vmem_limit_bytes=vmem_limit),
    )(src_col, dst_row, ea_pad, x0_pad, w1a, b1a, w1b, b1b)


# --------------------------------------------------------------------------
# Kernel 2: per-node-tile update  mlp2(cat[x0, aggr]) -> BN -> residual
# --------------------------------------------------------------------------
def _update_kernel(x0_ref, aggr_ref, w2ax_ref, w2aa_ref, b2a_ref,
                   w2b_ref, b2b_ref, bns_ref, bnb_ref, out_ref):
    x0 = x0_ref[...]                                                       # [TN, C1] f32
    # concat([x0, aggr]) @ w2a folded into a split matmul (w2a_x / w2a_a); aggr already bf16.
    g = _leaky_relu(
        jnp.dot(x0.astype(jnp.bfloat16), w2ax_ref[...],
                preferred_element_type=jnp.float32)
        + jnp.dot(aggr_ref[...], w2aa_ref[...],
                  preferred_element_type=jnp.float32)
        + b2a_ref[...])                                                    # [TN, 1024]
    comb = jnp.dot(g.astype(jnp.bfloat16), w2b_ref[...],
                   preferred_element_type=jnp.float32) + b2b_ref[...]      # [TN, C1]
    comb = comb * bns_ref[...] + bnb_ref[...]                              # BatchNorm1d (eval)
    out_ref[...] = ((comb + x0) * 0.5).astype(out_ref.dtype)


def _update(x0_pad, aggr, w2ax, w2aa, b2a, w2b, b2b, bn_scale, bn_bias,
            *, node_tile, vmem_limit):
    n_pad, c1 = x0_pad.shape
    h2 = aggr.shape[1]       # 512
    h3 = w2ax.shape[1]       # 1024
    n_tiles = n_pad // node_tile
    return pl.pallas_call(
        _update_kernel,
        grid=(n_tiles,),
        in_specs=[
            pl.BlockSpec((node_tile, c1), lambda i: (i, 0)),   # x0 tile
            pl.BlockSpec((node_tile, h2), lambda i: (i, 0)),   # aggr tile (bf16)
            pl.BlockSpec((c1, h3), lambda i: (0, 0)),          # w2a_x bf16 (resident)
            pl.BlockSpec((h2, h3), lambda i: (0, 0)),          # w2a_a bf16 (resident)
            pl.BlockSpec((1, h3), lambda i: (0, 0)),           # b2a
            pl.BlockSpec((h3, c1), lambda i: (0, 0)),          # w2b bf16 (resident)
            pl.BlockSpec((1, c1), lambda i: (0, 0)),           # b2b
            pl.BlockSpec((1, c1), lambda i: (0, 0)),           # bn scale
            pl.BlockSpec((1, c1), lambda i: (0, 0)),           # bn bias
        ],
        out_specs=pl.BlockSpec((node_tile, c1), lambda i: (i, 0)),
        out_shape=jax.ShapeDtypeStruct((n_pad, c1), jnp.float32),
        compiler_params=pltpu.CompilerParams(
            dimension_semantics=("parallel",),
            vmem_limit_bytes=vmem_limit),
    )(x0_pad, aggr, w2ax, w2aa, b2a, w2b, b2b, bn_scale, bn_bias)


# --------------------------------------------------------------------------
# Wrapper
# --------------------------------------------------------------------------
@functools.partial(jax.jit, static_argnames=("edge_tile", "node_tile", "vmem_limit"))
def mddnet_forward(x0, edge_index, edge_attr, params, *,
                   edge_tile=512, node_tile=512, vmem_limit=DEFAULT_VMEM_LIMIT):
    N, C1 = x0.shape
    E, C2 = edge_attr.shape
    assert C1 == C2, "x_j * edge_attr requires matching node/edge feature dims"

    # Edge tiling: when multiple edge tiles are needed the dst-row tile sits on the
    # lane axis, so the tile size must be 128-aligned; a single full tile has no
    # such constraint.
    e8 = _round_up(E, 8)
    te = e8 if edge_tile >= e8 else _round_up(edge_tile, 128)
    E_pad = _round_up(E, te)

    tn = _round_up(min(node_tile, N), 8)
    N_pad = _round_up(N, tn)

    x0_pad = jnp.pad(x0, ((0, N_pad - N), (0, 0)))
    ea_pad = jnp.pad(edge_attr, ((0, E_pad - E), (0, 0)))

    src = edge_index[0].astype(jnp.int32)
    dst = edge_index[1].astype(jnp.int32)
    # Padded src -> 0 (harmless gather of row 0); padded dst -> N_pad (one-hot column
    # all-zero, so padded edges never contribute to the aggregation).
    src_col = jnp.zeros((E_pad,), jnp.int32).at[:E].set(src).reshape(E_pad, 1)
    dst_row = jnp.full((E_pad,), N_pad, jnp.int32).at[:E].set(dst).reshape(1, E_pad)

    bf16 = jnp.bfloat16
    w1a = params["w1a"].astype(bf16)
    w1b = params["w1b"].astype(bf16)
    w2a = params["w2a"]                         # [C1 + 512, 1024]
    w2ax = w2a[:C1].astype(bf16)
    w2aa = w2a[C1:].astype(bf16)
    w2b = params["w2b"].astype(bf16)

    aggr = _message_aggregate(x0_pad, ea_pad, src_col, dst_row,
                              w1a, params["b1a"], w1b, params["b1b"],
                              edge_tile=te, vmem_limit=vmem_limit)
    out_pad = _update(x0_pad, aggr, w2ax, w2aa, params["b2a"],
                      w2b, params["b2b"], params["bn_scale"], params["bn_bias"],
                      node_tile=tn, vmem_limit=vmem_limit)
    return out_pad[:N]


# --------------------------------------------------------------------------
# Pure-JAX reference (mirrors the PyTorch eval-mode forward), params init
# --------------------------------------------------------------------------
def ref_forward(x0, edge_index, edge_attr, params):
    src, dst = edge_index[0], edge_index[1]
    N = x0.shape[0]
    x_j = x0[src]
    tmp = x_j * edge_attr
    h = _leaky_relu(tmp @ params["w1a"] + params["b1a"])
    msg = _leaky_relu(h @ params["w1b"] + params["b1b"])
    aggr = jnp.zeros((N, msg.shape[1]), jnp.float32).at[dst].add(msg)
    cat = jnp.concatenate([x0, aggr], axis=1)
    g = _leaky_relu(cat @ params["w2a"] + params["b2a"])
    comb = g @ params["w2b"] + params["b2b"]
    comb = comb * params["bn_scale"] + params["bn_bias"]
    return (comb + x0) * 0.5


def init_params(key, n_ch1, n_ch2):
    ks = jax.random.split(key, 12)

    def lin(k, fan_in, fan_out):
        scale = 1.0 / jnp.sqrt(jnp.float32(fan_in))
        kw, kb = jax.random.split(k)
        w = jax.random.uniform(kw, (fan_in, fan_out), jnp.float32, -scale, scale)
        b = jax.random.uniform(kb, (1, fan_out), jnp.float32, -scale, scale)
        return w, b

    w1a, b1a = lin(ks[0], n_ch2, 256)          # mlp1: Lin(n_ch2, 256)
    w1b, b1b = lin(ks[1], 256, 512)            # mlp1: Lin(256, 512)
    w2a, b2a = lin(ks[2], n_ch1 + 512, 1024)   # mlp2: Lin(n_ch1+512, 1024)
    w2b, b2b = lin(ks[3], 1024, n_ch1)         # mlp2: Lin(1024, n_ch1)

    # BatchNorm1d(n_ch1), eval mode, folded into scale/bias.
    gamma = 1.0 + 0.1 * jax.random.normal(ks[4], (1, n_ch1), jnp.float32)
    beta = 0.1 * jax.random.normal(ks[5], (1, n_ch1), jnp.float32)
    run_mean = 0.1 * jax.random.normal(ks[6], (1, n_ch1), jnp.float32)
    run_var = jnp.abs(1.0 + 0.1 * jax.random.normal(ks[7], (1, n_ch1), jnp.float32))
    eps = 1e-5
    inv = gamma / jnp.sqrt(run_var + eps)
    return dict(w1a=w1a, b1a=b1a, w1b=w1b, b1b=b1b,
                w2a=w2a, b2a=b2a, w2b=w2b, b2b=b2b,
                bn_scale=inv, bn_bias=beta - run_mean * inv)


if __name__ == "__main__":
    key = jax.random.PRNGKey(0)
    k_x, k_ea, k_ei, k_p = jax.random.split(key, 4)

    N, E = 24, 200         # E chosen so the multi-tile path has real + padded edges
    n_ch1 = n_ch2 = 32     # node feat dim == edge feat dim (required by x_j * edge_attr)

    x0 = jax.random.normal(k_x, (N, n_ch1), jnp.float32)
    edge_attr = jax.random.normal(k_ea, (E, n_ch2), jnp.float32)
    edge_index = jax.random.randint(k_ei, (2, E), 0, N, jnp.int32)
    params = init_params(k_p, n_ch1, n_ch2)

    ref = jax.block_until_ready(ref_forward(x0, edge_index, edge_attr, params))

    def _rel_err(a, b):
        return float(jnp.max(jnp.abs(a - b)) / jnp.maximum(jnp.max(jnp.abs(b)), 1e-6))

    # Multi-tile path: 2 edge tiles (with 56 padded edges masked via dst == N_pad)
    # and 3 node tiles — exercises accumulation across grid steps.
    out = jax.block_until_ready(
        mddnet_forward(x0, edge_index, edge_attr, params, edge_tile=128, node_tile=8))
    assert out.shape == (N, n_ch1) and out.dtype == jnp.float32
    # bf16 MXU matmuls (f32 accumulation) -> scaled max-error check vs f32 reference.
    err = _rel_err(out, ref)
    assert err < 2e-2, f"mismatch vs pure-JAX reference (scaled max err {err})"

    # Default (single-edge-tile) path.
    out2 = jax.block_until_ready(mddnet_forward(x0, edge_index, edge_attr, params))
    err2 = _rel_err(out2, ref)
    assert err2 < 2e-2, f"mismatch vs pure-JAX reference (scaled max err {err2})"

    print("KERNEL_OK")
</pallas_src>

<mosaic_0001>
module attributes {stable_mosaic.version = 11 : i64} {
  func.func @_message_aggregate_kernel(%arg0: i32, %arg1: memref<128x1xi32, #tpu.memory_space<vmem>>, %arg2: memref<1x128xi32, #tpu.memory_space<vmem>>, %arg3: memref<128x32xf32, #tpu.memory_space<vmem>>, %arg4: memref<24x32xf32, #tpu.memory_space<vmem>>, %arg5: memref<32x256xbf16, #tpu.memory_space<vmem>>, %arg6: memref<1x256xf32, #tpu.memory_space<vmem>>, %arg7: memref<256x512xbf16, #tpu.memory_space<vmem>>, %arg8: memref<1x512xf32, #tpu.memory_space<vmem>>, %arg9: memref<24x512xbf16, #tpu.memory_space<vmem>>, %arg10: memref<24x512xf32, #tpu.memory_space<vmem>>) attributes {dimension_semantics = [#tpu.dimension_semantics<arbitrary>], iteration_bounds = array<i64: 2>, scalar_prefetch = 0 : i64, scratch_operands = 1 : i64, tpu.core_type = #tpu.core_type<tc>, window_params = [{transform_indices = @transform_0, window_bounds = array<i64: 128, 1>}, {transform_indices = @transform_1, window_bounds = array<i64: 1, 128>}, {transform_indices = @transform_2, window_bounds = array<i64: 128, 32>}, {pipeline_mode = #tpu.pipeline_mode<synchronous>, transform_indices = @transform_3, window_bounds = array<i64: 24, 32>}, {pipeline_mode = #tpu.pipeline_mode<synchronous>, transform_indices = @transform_4, window_bounds = array<i64: 32, 256>}, {pipeline_mode = #tpu.pipeline_mode<synchronous>, transform_indices = @transform_5, window_bounds = array<i64: 1, 256>}, {pipeline_mode = #tpu.pipeline_mode<synchronous>, transform_indices = @transform_6, window_bounds = array<i64: 256, 512>}, {pipeline_mode = #tpu.pipeline_mode<synchronous>, transform_indices = @transform_7, window_bounds = array<i64: 1, 512>}, {pipeline_mode = #tpu.pipeline_mode<synchronous>, transform_indices = @transform_8, window_bounds = array<i64: 24, 512>}]} {
    %c0_i32 = arith.constant 0 : i32
    %0 = arith.cmpi eq, %arg0, %c0_i32 : i32
    %1 = arith.extui %0 : i1 to i32
    %c0_i32_0 = arith.constant 0 : i32
    %2 = arith.cmpi ne, %1, %c0_i32_0 : i32
    scf.if %2 {
      %cst_28 = arith.constant 0.000000e+00 : f32
      %48 = vector.broadcast %cst_28 : f32 to vector<24x512xf32>
      %c0_29 = arith.constant 0 : index
      %c0_30 = arith.constant 0 : index
      %49 = vector.load %arg10[%c0_29, %c0_30] : memref<24x512xf32, #tpu.memory_space<vmem>>, vector<24x512xf32>
      tpu.vector_store %arg10[%c0_29, %c0_30], %48 {strides = array<i32>} : memref<24x512xf32, #tpu.memory_space<vmem>>, vector<24x512xf32>,
    } else {
    }
    %c0 = arith.constant 0 : index
    %c0_1 = arith.constant 0 : index
    %3 = vector.load %arg1[%c0, %c0_1] : memref<128x1xi32, #tpu.memory_space<vmem>>, vector<128x1xi32>
    %4 = tpu.iota {dimensions = array<i32: 1>} : vector<128x24xi32>
    %5 = vector.broadcast %3 : vector<128x1xi32> to vector<128x24xi32>
    %6 = arith.cmpi eq, %5, %4 : vector<128x24xi32>
    %7 = arith.extui %6 : vector<128x24xi1> to vector<128x24xi32>
    %8 = arith.sitofp %7 : vector<128x24xi32> to vector<128x24xf32>
    %c0_2 = arith.constant 0 : index
    %c0_3 = arith.constant 0 : index
    %9 = vector.load %arg4[%c0_2, %c0_3] : memref<24x32xf32, #tpu.memory_space<vmem>>, vector<24x32xf32>
    %cst = arith.constant dense<0.000000e+00> : vector<128x32xf32>
    %10 = tpu.matmul %8, %9, %cst {dimension_numbers = #tpu.dot_dimension_numbers<[1], [0], [0], [1], [0, 0, 1, 1], [], []>} : vector<128x24xf32>, vector<24x32xf32>, vector<128x32xf32> -> vector<128x32xf32>
    %c0_4 = arith.constant 0 : index
    %c0_5 = arith.constant 0 : index
    %11 = vector.load %arg3[%c0_4, %c0_5] : memref<128x32xf32, #tpu.memory_space<vmem>>, vector<128x32xf32>
    %12 = arith.mulf %10, %11 : vector<128x32xf32>
    %13 = arith.truncf %12 : vector<128x32xf32> to vector<128x32xbf16>
    %c0_6 = arith.constant 0 : index
    %c0_7 = arith.constant 0 : index
    %14 = vector.load %arg5[%c0_6, %c0_7] : memref<32x256xbf16, #tpu.memory_space<vmem>>, vector<32x256xbf16>
    %cst_8 = arith.constant dense<0.000000e+00> : vector<128x256xf32>
    %15 = tpu.matmul %13, %14, %cst_8 {dimension_numbers = #tpu.dot_dimension_numbers<[1], [0], [0], [1], [0, 0, 1, 1], [], []>} : vector<128x32xbf16>, vector<32x256xbf16>, vector<128x256xf32> -> vector<128x256xf32>
    %c0_9 = arith.constant 0 : index
    %c0_10 = arith.constant 0 : index
    %16 = vector.load %arg6[%c0_9, %c0_10] : memref<1x256xf32, #tpu.memory_space<vmem>>, vector<1x256xf32>
    %17 = vector.broadcast %16 : vector<1x256xf32> to vector<128x256xf32>
    %18 = arith.addf %15, %17 : vector<128x256xf32>
    %cst_11 = arith.constant 0.000000e+00 : f32
    %19 = vector.broadcast %cst_11 : f32 to vector<128x256xf32>
    %20 = arith.cmpf ogt, %18, %19 : vector<128x256xf32>
    %cst_12 = arith.constant 0.00999999977 : f32
    %21 = vector.broadcast %cst_12 : f32 to vector<128x256xf32>
    %22 = arith.mulf %21, %18 : vector<128x256xf32>
    %23 = arith.select %20, %18, %22 : vector<128x256xi1>, vector<128x256xf32>
    %24 = arith.truncf %23 : vector<128x256xf32> to vector<128x256xbf16>
    %c0_13 = arith.constant 0 : index
    %c0_14 = arith.constant 0 : index
    %25 = vector.load %arg7[%c0_13, %c0_14] : memref<256x512xbf16, #tpu.memory_space<vmem>>, vector<256x512xbf16>
    %cst_15 = arith.constant dense<0.000000e+00> : vector<128x512xf32>
    %26 = tpu.matmul %24, %25, %cst_15 {dimension_numbers = #tpu.dot_dimension_numbers<[1], [0], [0], [1], [0, 0, 1, 1], [], []>} : vector<128x256xbf16>, vector<256x512xbf16>, vector<128x512xf32> -> vector<128x512xf32>
    %c0_16 = arith.constant 0 : index
    %c0_17 = arith.constant 0 : index
    %27 = vector.load %arg8[%c0_16, %c0_17] : memref<1x512xf32, #tpu.memory_space<vmem>>, vector<1x512xf32>
    %28 = vector.broadcast %27 : vector<1x512xf32> to vector<128x512xf32>
    %29 = arith.addf %26, %28 : vector<128x512xf32>
    %cst_18 = arith.constant 0.000000e+00 : f32
    %30 = vector.broadcast %cst_18 : f32 to vector<128x512xf32>
    %31 = arith.cmpf ogt, %29, %30 : vector<128x512xf32>
    %cst_19 = arith.constant 0.00999999977 : f32
    %32 = vector.broadcast %cst_19 : f32 to vector<128x512xf32>
    %33 = arith.mulf %32, %29 : vector<128x512xf32>
    %34 = arith.select %31, %29, %33 : vector<128x512xi1>, vector<128x512xf32>
    %35 = tpu.iota {dimensions = array<i32: 0>} : vector<24x128xi32>
    %c0_20 = arith.constant 0 : index
    %c0_21 = arith.constant 0 : index
    %36 = vector.load %arg2[%c0_20, %c0_21] : memref<1x128xi32, #tpu.memory_space<vmem>>, vector<1x128xi32>
    %37 = vector.broadcast %36 : vector<1x128xi32> to vector<24x128xi32>
    %38 = arith.cmpi eq, %35, %37 : vector<24x128xi32>
    %39 = arith.extui %38 : vector<24x128xi1> to vector<24x128xi32>
    %40 = arith.sitofp %39 : vector<24x128xi32> to vector<24x128xf32>
    %c0_22 = arith.constant 0 : index
    %c0_23 = arith.constant 0 : index
    %41 = vector.load %arg10[%c0_22, %c0_23] : memref<24x512xf32, #tpu.memory_space<vmem>>, vector<24x512xf32>
    %cst_24 = arith.constant dense<0.000000e+00> : vector<24x512xf32>
    %42 = tpu.matmul %40, %34, %cst_24 {dimension_numbers = #tpu.dot_dimension_numbers<[1], [0], [0], [1], [0, 0, 1, 1], [], []>} : vector<24x128xf32>, vector<128x512xf32>, vector<24x512xf32> -> vector<24x512xf32>
    %43 = arith.addf %41, %42 : vector<24x512xf32>
    %c0_25 = arith.constant 0 : index
    %c0_26 = arith.constant 0 : index
    %44 = vector.load %arg10[%c0_25, %c0_26] : memref<24x512xf32, #tpu.memory_space<vmem>>, vector<24x512xf32>
    tpu.vector_store %arg10[%c0_25, %c0_26], %43 {strides = array<i32>} : memref<24x512xf32, #tpu.memory_space<vmem>>, vector<24x512xf32>,
    %c1_i32 = arith.constant 1 : i32
    %45 = arith.cmpi eq, %arg0, %c1_i32 : i32
    %46 = arith.extui %45 : i1 to i32
    %c0_i32_27 = arith.constant 0 : i32
    %47 = arith.cmpi ne, %46, %c0_i32_27 : i32
    scf.if %47 {
      %c0_28 = arith.constant 0 : index
      %c0_29 = arith.constant 0 : index
      %48 = vector.load %arg10[%c0_28, %c0_29] : memref<24x512xf32, #tpu.memory_space<vmem>>, vector<24x512xf32>
      %49 = arith.truncf %48 : vector<24x512xf32> to vector<24x512xbf16>
      %c0_30 = arith.constant 0 : index
      %c0_31 = arith.constant 0 : index
      %50 = vector.load %arg9[%c0_30, %c0_31] : memref<24x512xbf16, #tpu.memory_space<vmem>>, vector<24x512xbf16>
      tpu.vector_store %arg9[%c0_30, %c0_31], %49 {strides = array<i32>} : memref<24x512xbf16, #tpu.memory_space<vmem>>, vector<24x512xbf16>,
    } else {
    }
    return
  }
  func.func @transform_0(%arg0: i32) -> (i32, i32) {
    %c0_i32 = arith.constant 0 : i32
    %c0_i32_0 = arith.constant 0 : i32
    return %arg0, %c0_i32 : i32, i32
  }
  func.func @transform_1(%arg0: i32) -> (i32, i32) {
    %c0_i32 = arith.constant 0 : i32
    %c0_i32_0 = arith.constant 0 : i32
    return %c0_i32, %arg0 : i32, i32
  }
  func.func @transform_2(%arg0: i32) -> (i32, i32) {
    %c0_i32 = arith.constant 0 : i32
    %c0_i32_0 = arith.constant 0 : i32
    return %arg0, %c0_i32 : i32, i32
  }
  func.func @transform_3(%arg0: i32) -> (i32, i32) {
    %c0_i32 = arith.constant 0 : i32
    %c0_i32_0 = arith.constant 0 : i32
    %c0_i32_1 = arith.constant 0 : i32
    return %c0_i32, %c0_i32_0 : i32, i32
  }
  func.func @transform_4(%arg0: i32) -> (i32, i32) {
    %c0_i32 = arith.constant 0 : i32
    %c0_i32_0 = arith.constant 0 : i32
    %c0_i32_1 = arith.constant 0 : i32
    return %c0_i32, %c0_i32_0 : i32, i32
  }
  func.func @transform_5(%arg0: i32) -> (i32, i32) {
    %c0_i32 = arith.constant 0 : i32
    %c0_i32_0 = arith.constant 0 : i32
    %c0_i32_1 = arith.constant 0 : i32
    return %c0_i32, %c0_i32_0 : i32, i32
  }
  func.func @transform_6(%arg0: i32) -> (i32, i32) {
    %c0_i32 = arith.constant 0 : i32
    %c0_i32_0 = arith.constant 0 : i32
    %c0_i32_1 = arith.constant 0 : i32
    return %c0_i32, %c0_i32_0 : i32, i32
  }
  func.func @transform_7(%arg0: i32) -> (i32, i32) {
    %c0_i32 = arith.constant 0 : i32
    %c0_i32_0 = arith.constant 0 : i32
    %c0_i32_1 = arith.constant 0 : i32
    return %c0_i32, %c0_i32_0 : i32, i32
  }
  func.func @transform_8(%arg0: i32) -> (i32, i32) {
    %c0_i32 = arith.constant 0 : i32
    %c0_i32_0 = arith.constant 0 : i32
    %c0_i32_1 = arith.constant 0 : i32
    return %c0_i32, %c0_i32_0 : i32, i32
  }
}

module attributes {stable_mosaic.version = 11 : i64} {
  func.func @_update_kernel(%arg0: i32, %arg1: memref<8x32xf32, #tpu.memory_space<vmem>>, %arg2: memref<8x512xbf16, #tpu.memory_space<vmem>>, %arg3: memref<32x1024xbf16, #tpu.memory_space<vmem>>, %arg4: memref<512x1024xbf16, #tpu.memory_space<vmem>>, %arg5: memref<1x1024xf32, #tpu.memory_space<vmem>>, %arg6: memref<1024x32xbf16, #tpu.memory_space<vmem>>, %arg7: memref<1x32xf32, #tpu.memory_space<vmem>>, %arg8: memref<1x32xf32, #tpu.memory_space<vmem>>, %arg9: memref<1x32xf32, #tpu.memory_space<vmem>>, %arg10: memref<8x32xf32, #tpu.memory_space<vmem>>) attributes {dimension_semantics = [#tpu.dimension_semantics<parallel>], iteration_bounds = array<i64: 3>, scalar_prefetch = 0 : i64, scratch_operands = 0 : i64, tpu.core_type = #tpu.core_type<tc>, window_params = [{transform_indices = @transform_0, window_bounds = array<i64: 8, 32>}, {transform_indices = @transform_1, window_bounds = array<i64: 8, 512>}, {pipeline_mode = #tpu.pipeline_mode<synchronous>, transform_indices = @transform_2, window_bounds = array<i64: 32, 1024>}, {pipeline_mode = #tpu.pipeline_mode<synchronous>, transform_indices = @transform_3, window_bounds = array<i64: 512, 1024>}, {pipeline_mode = #tpu.pipeline_mode<synchronous>, transform_indices = @transform_4, window_bounds = array<i64: 1, 1024>}, {pipeline_mode = #tpu.pipeline_mode<synchronous>, transform_indices = @transform_5, window_bounds = array<i64: 1024, 32>}, {pipeline_mode = #tpu.pipeline_mode<synchronous>, transform_indices = @transform_6, window_bounds = array<i64: 1, 32>}, {pipeline_mode = #tpu.pipeline_mode<synchronous>, transform_indices = @transform_7, window_bounds = array<i64: 1, 32>}, {pipeline_mode = #tpu.pipeline_mode<synchronous>, transform_indices = @transform_8, window_bounds = array<i64: 1, 32>}, {transform_indices = @transform_9, window_bounds = array<i64: 8, 32>}]} {
    %c0 = arith.constant 0 : index
    %c0_0 = arith.constant 0 : index
    %0 = vector.load %arg1[%c0, %c0_0] : memref<8x32xf32, #tpu.memory_space<vmem>>, vector<8x32xf32>
    %1 = arith.truncf %0 : vector<8x32xf32> to vector<8x32xbf16>
    %c0_1 = arith.constant 0 : index
    %c0_2 = arith.constant 0 : index
    %2 = vector.load %arg3[%c0_1, %c0_2] : memref<32x1024xbf16, #tpu.memory_space<vmem>>, vector<32x1024xbf16>
    %cst = arith.constant dense<0.000000e+00> : vector<8x1024xf32>
    %3 = tpu.matmul %1, %2, %cst {dimension_numbers = #tpu.dot_dimension_numbers<[1], [0], [0], [1], [0, 0, 1, 1], [], []>} : vector<8x32xbf16>, vector<32x1024xbf16>, vector<8x1024xf32> -> vector<8x1024xf32>
    %c0_3 = arith.constant 0 : index
    %c0_4 = arith.constant 0 : index
    %4 = vector.load %arg2[%c0_3, %c0_4] : memref<8x512xbf16, #tpu.memory_space<vmem>>, vector<8x512xbf16>
    %c0_5 = arith.constant 0 : index
    %c0_6 = arith.constant 0 : index
    %5 = vector.load %arg4[%c0_5, %c0_6] : memref<512x1024xbf16, #tpu.memory_space<vmem>>, vector<512x1024xbf16>
    %cst_7 = arith.constant dense<0.000000e+00> : vector<8x1024xf32>
    %6 = tpu.matmul %4, %5, %cst_7 {dimension_numbers = #tpu.dot_dimension_numbers<[1], [0], [0], [1], [0, 0, 1, 1], [], []>} : vector<8x512xbf16>, vector<512x1024xbf16>, vector<8x1024xf32> -> vector<8x1024xf32>
    %7 = arith.addf %3, %6 : vector<8x1024xf32>
    %c0_8 = arith.constant 0 : index
    %c0_9 = arith.constant 0 : index
    %8 = vector.load %arg5[%c0_8, %c0_9] : memref<1x1024xf32, #tpu.memory_space<vmem>>, vector<1x1024xf32>
    %9 = vector.broadcast %8 : vector<1x1024xf32> to vector<8x1024xf32>
    %10 = arith.addf %7, %9 : vector<8x1024xf32>
    %cst_10 = arith.constant 0.000000e+00 : f32
    %11 = vector.broadcast %cst_10 : f32 to vector<8x1024xf32>
    %12 = arith.cmpf ogt, %10, %11 : vector<8x1024xf32>
    %cst_11 = arith.constant 0.00999999977 : f32
    %13 = vector.broadcast %cst_11 : f32 to vector<8x1024xf32>
    %14 = arith.mulf %13, %10 : vector<8x1024xf32>
    %15 = arith.select %12, %10, %14 : vector<8x1024xi1>, vector<8x1024xf32>
    %16 = arith.truncf %15 : vector<8x1024xf32> to vector<8x1024xbf16>
    %c0_12 = arith.constant 0 : index
    %c0_13 = arith.constant 0 : index
    %17 = vector.load %arg6[%c0_12, %c0_13] : memref<1024x32xbf16, #tpu.memory_space<vmem>>, vector<1024x32xbf16>
    %cst_14 = arith.constant dense<0.000000e+00> : vector<8x32xf32>
    %18 = tpu.matmul %16, %17, %cst_14 {dimension_numbers = #tpu.dot_dimension_numbers<[1], [0], [0], [1], [0, 0, 1, 1], [], []>} : vector<8x1024xbf16>, vector<1024x32xbf16>, vector<8x32xf32> -> vector<8x32xf32>
    %c0_15 = arith.constant 0 : index
    %c0_16 = arith.constant 0 : index
    %19 = vector.load %arg7[%c0_15, %c0_16] : memref<1x32xf32, #tpu.memory_space<vmem>>, vector<1x32xf32>
    %20 = vector.broadcast %19 : vector<1x32xf32> to vector<8x32xf32>
    %21 = arith.addf %18, %20 : vector<8x32xf32>
    %c0_17 = arith.constant 0 : index
    %c0_18 = arith.constant 0 : index
    %22 = vector.load %arg8[%c0_17, %c0_18] : memref<1x32xf32, #tpu.memory_space<vmem>>, vector<1x32xf32>
    %23 = vector.broadcast %22 : vector<1x32xf32> to vector<8x32xf32>
    %24 = arith.mulf %21, %23 : vector<8x32xf32>
    %c0_19 = arith.constant 0 : index
    %c0_20 = arith.constant 0 : index
    %25 = vector.load %arg9[%c0_19, %c0_20] : memref<1x32xf32, #tpu.memory_space<vmem>>, vector<1x32xf32>
    %26 = vector.broadcast %25 : vector<1x32xf32> to vector<8x32xf32>
    %27 = arith.addf %24, %26 : vector<8x32xf32>
    %28 = arith.addf %27, %0 : vector<8x32xf32>
    %cst_21 = arith.constant 5.000000e-01 : f32
    %29 = vector.broadcast %cst_21 : f32 to vector<8x32xf32>
    %30 = arith.mulf %28, %29 : vector<8x32xf32>
    %c0_22 = arith.constant 0 : index
    %c0_23 = arith.constant 0 : index
    %31 = vector.load %arg10[%c0_22, %c0_23] : memref<8x32xf32, #tpu.memory_space<vmem>>, vector<8x32xf32>
    tpu.vector_store %arg10[%c0_22, %c0_23], %30 {strides = array<i32>} : memref<8x32xf32, #tpu.memory_space<vmem>>, vector<8x32xf32>,
    return
  }
  func.func @transform_0(%arg0: i32) -> (i32, i32) {
    %c0_i32 = arith.constant 0 : i32
    %c0_i32_0 = arith.constant 0 : i32
    return %arg0, %c0_i32 : i32, i32
  }
  func.func @transform_1(%arg0: i32) -> (i32, i32) {
    %c0_i32 = arith.constant 0 : i32
    %c0_i32_0 = arith.constant 0 : i32
    return %arg0, %c0_i32 : i32, i32
  }
  func.func @transform_2(%arg0: i32) -> (i32, i32) {
    %c0_i32 = arith.constant 0 : i32
    %c0_i32_0 = arith.constant 0 : i32
    %c0_i32_1 = arith.constant 0 : i32
    return %c0_i32, %c0_i32_0 : i32, i32
  }
  func.func @transform_3(%arg0: i32) -> (i32, i32) {
    %c0_i32 = arith.constant 0 : i32
    %c0_i32_0 = arith.constant 0 : i32
    %c0_i32_1 = arith.constant 0 : i32
    return %c0_i32, %c0_i32_0 : i32, i32
  }
  func.func @transform_4(%arg0: i32) -> (i32, i32) {
    %c0_i32 = arith.constant 0 : i32
    %c0_i32_0 = arith.constant 0 : i32
    %c0_i32_1 = arith.constant 0 : i32
    return %c0_i32, %c0_i32_0 : i32, i32
  }
  func.func @transform_5(%arg0: i32) -> (i32, i32) {
    %c0_i32 = arith.constant 0 : i32
    %c0_i32_0 = arith.constant 0 : i32
    %c0_i32_1 = arith.constant 0 : i32
    return %c0_i32, %c0_i32_0 : i32, i32
  }
  func.func @transform_6(%arg0: i32) -> (i32, i32) {
    %c0_i32 = arith.constant 0 : i32
    %c0_i32_0 = arith.constant 0 : i32
    %c0_i32_1 = arith.constant 0 : i32
    return %c0_i32, %c0_i32_0 : i32, i32
  }
  func.func @transform_7(%arg0: i32) -> (i32, i32) {
    %c0_i32 = arith.constant 0 : i32
    %c0_i32_0 = arith.constant 0 : i32
    %c0_i32_1 = arith.constant 0 : i32
    return %c0_i32, %c0_i32_0 : i32, i32
  }
  func.func @transform_8(%arg0: i32) -> (i32, i32) {
    %c0_i32 = arith.constant 0 : i32
    %c0_i32_0 = arith.constant 0 : i32
    %c0_i32_1 = arith.constant 0 : i32
    return %c0_i32, %c0_i32_0 : i32, i32
  }
  func.func @transform_9(%arg0: i32) -> (i32, i32) {
    %c0_i32 = arith.constant 0 : i32
    %c0_i32_0 = arith.constant 0 : i32
    return %arg0, %c0_i32 : i32, i32
  }
}

</mosaic_0001>

<llo_original>
// kernel: mddnet_forward.2
$region0: #{mddnet_forward.2}
  #allocation0 [shape = 'u32[]', space=smem, size = 0x4, offset = 0x4, fixed_abs, tag = 'smem constant byte address 0x4 - core index']
  #allocation1 [shape = 'u32[144,128]{1,0:T(1,128)}', space=vmem, size = 0x12000, scoped, tag = 'internal scratch']
  #allocation2 [shape = 'f32[24,512]{1,0:T(8,128)}', space=vmem, size = 0xc000, scoped, tag = 'scratch operand']
  %s0 = inlined_call_operand.vmem [shape: s32[256,1], index: 0, kind: input, shape index: {}]
  %s1 = inlined_call_operand.vmem [shape: s32[1,256], index: 1, kind: input, shape index: {}]
  %s2 = inlined_call_operand.vmem [shape: f32[256,32], index: 2, kind: input, shape index: {}]
  %s3 = inlined_call_operand.hbm [shape: f32[24,32], index: 3, kind: input, shape index: {}]
  %s4 = inlined_call_operand.vmem [shape: bf16[32,256], index: 4, kind: input, shape index: {}]
  %s5 = inlined_call_operand.hbm [shape: f32[1,256], index: 5, kind: input, shape index: {}]
  %s6 = inlined_call_operand.vmem [shape: bf16[256,512], index: 6, kind: input, shape index: {}]
  %s7 = inlined_call_operand.hbm [shape: f32[1,512], index: 7, kind: input, shape index: {}]
  %s8 = inlined_call_operand.vmem [shape: bf16[24,512], index: 8, kind: output, shape index: {}]
  %s9 = sld [smem:[#allocation0]]
  $region85: #{mddnet_forward.2} parent=0
    _
  %s11 = ssub.s32 1, %s9
  %s12 = scalar_select 0, %s11, %s9
  $region1: #{mddnet_forward.2} parent=0
    #allocation3 [shape = 'u8[12288]{0}', space=vmem, size = 0x3000, scoped, tag = 'input window, operand 3, single buffered']
    #allocation4 [shape = 's32[2]{0}', space=sflag, size = 0x8, scoped, tag = 'scoped memory for mddnet_forward.2']
    #allocation5 [shape = 'u8[1024]{0}', space=vmem, size = 0x400, scoped, tag = 'input window, operand 5, single buffered']
    #allocation6 [shape = 's32[1]{0}', space=sflag, size = 0x4, scoped, tag = 'scoped memory for mddnet_forward.2']
    #allocation7 [shape = 'u8[2048]{0}', space=vmem, size = 0x800, scoped, tag = 'input window, operand 7, single buffered']
    %13 = vsyncpa [#allocation4], 0
    %14 = vsyncpa [#allocation6], 0
    loop: start=0, step=1, limit=4
    $region2: #{mddnet_forward.2} parent=1 // loop_pre_header
      _
    $region3: #{mddnet_forward.2} parent=1 // loop_header
      %s16 = sphi 0, %s20
      %p17 = scmp.ge.s32.totalorder %s16, 4
      %s26 = sphi 0, %s28
      %s29 = sphi 0, %s26
      %s30 = sphi 0, %s29
      %s46 = sphi 0, %s30
      %s52 = sphi 0, %s54
      %s55 = sphi 0, %s52
      %s56 = sphi 0, %s55
      %s72 = sphi 0, %s56
      %s78 = sphi 0, %s80
      %s81 = sphi 0, %s78
      %s82 = sphi 0, %s81
      %s98 = sphi 0, %s82
      %s102 = sphi 0, %s102
      %s104 = sphi 0, %s102
      %s105 = sphi 0, %s104
      %s119 = sphi 0, %s105
      %s123 = sphi 0, %s123
      %s125 = sphi 0, %s123
      %s126 = sphi 0, %s125
      %s140 = sphi 0, %s126
      %s144 = sphi 0, %s144
      %s146 = sphi 0, %s144
      %s147 = sphi 0, %s146
      %s161 = sphi 0, %s147
      %s165 = sphi 0, %s165
      %s167 = sphi 0, %s165
      %s168 = sphi 0, %s167
      %s182 = sphi 0, %s168
      %s186 = sphi 0, %s186
      %s188 = sphi 0, %s186
      %s189 = sphi 0, %s188
      %s203 = sphi 0, %s189
      %s207 = sphi 0, %s207
      %s209 = sphi 0, %s207
      %s210 = sphi 0, %s209
      %s224 = sphi 0, %s210
    $region4: #{mddnet_forward.2} parent=1 // loop_header_branch
      %19 = sbr.rel (%p17) target = $region8
    $region5: #{mddnet_forward.2} parent=1 // loop_body
      %s21 = ssub.s32 %s16, 1
      %s22 = ssub.s32 %s16, 2
      %s23 = sadd.s32 %s16, 1
      %s24 = ssub.s32 %s16, %s23
      %p25 = scmp.eq.s32.totalorder %s24, 0
      %s27 = sadd.s32 %s26, 1
      %s28 = scalar_select %p25, %s26, %s27
      %p31 = pneg %p25
      %p32 = scmp.eq.s32.totalorder %s16, 1
      %p33 = por %p31, %p32
      %p34 = scmp.ne.s32.totalorder %s26, %s29
      %p35 = scmp.eq.s32.totalorder %s16, 0
      %p36 = por %p34, %p35
      %p37 = scmp.ne.s32.totalorder %s26, %s29
      %p38 = scmp.eq.s32.totalorder %s21, 1
      %p39 = por %p37, %p38
      %p40 = scmp.ne.s32.totalorder %s29, %s30
      %p41 = scmp.eq.s32.totalorder %s21, 0
      %p42 = por %p40, %p41
      %p43 = scmp.ne.s32.totalorder %s29, %s30
      %p44 = scmp.eq.s32.totalorder %s22, 1
      %p45 = por %p43, %p44
      %p47 = scmp.ne.s32.totalorder %s30, %s46
      %p48 = scmp.eq.s32.totalorder %s22, 0
      %p49 = por %p47, %p48
      %s50 = ssub.s32 %s16, %s23
      %p51 = scmp.eq.s32.totalorder %s50, 0
      %s53 = sadd.s32 %s52, 1
      %s54 = scalar_select %p51, %s52, %s53
      %p57 = pneg %p51
      %p58 = scmp.eq.s32.totalorder %s16, 1
      %p59 = por %p57, %p58
      %p60 = scmp.ne.s32.totalorder %s52, %s55
      %p61 = scmp.eq.s32.totalorder %s16, 0
      %p62 = por %p60, %p61
      %p63 = scmp.ne.s32.totalorder %s52, %s55
      %p64 = scmp.eq.s32.totalorder %s21, 1
      %p65 = por %p63, %p64
      %p66 = scmp.ne.s32.totalorder %s55, %s56
      %p67 = scmp.eq.s32.totalorder %s21, 0
      %p68 = por %p66, %p67
      %p69 = scmp.ne.s32.totalorder %s55, %s56
      %p70 = scmp.eq.s32.totalorder %s22, 1
      %p71 = por %p69, %p70
      %p73 = scmp.ne.s32.totalorder %s56, %s72
      %p74 = scmp.eq.s32.totalorder %s22, 0
      %p75 = por %p73, %p74
      %s76 = ssub.s32 %s16, %s23
      %p77 = scmp.eq.s32.totalorder %s76, 0
      %s79 = sadd.s32 %s78, 1
      %s80 = scalar_select %p77, %s78, %s79
      %p83 = pneg %p77
      %p84 = scmp.eq.s32.totalorder %s16, 1
      %p85 = por %p83, %p84
      %p86 = scmp.ne.s32.totalorder %s78, %s81
      %p87 = scmp.eq.s32.totalorder %s16, 0
      %p88 = por %p86, %p87
      %p89 = scmp.ne.s32.totalorder %s78, %s81
      %p90 = scmp.eq.s32.totalorder %s21, 1
      %p91 = por %p89, %p90
      %p92 = scmp.ne.s32.totalorder %s81, %s82
      %p93 = scmp.eq.s32.totalorder %s21, 0
      %p94 = por %p92, %p93
      %p95 = scmp.ne.s32.totalorder %s81, %s82
      %p96 = scmp.eq.s32.totalorder %s22, 1
      %p97 = por %p95, %p96
      %p99 = scmp.ne.s32.totalorder %s82, %s98
      %p100 = scmp.eq.s32.totalorder %s22, 0
      %p101 = por %p99, %p100
      %s103 = sadd.s32 %s102, 1
      %p106 = scmp.eq.s32.totalorder %s16, 1
      %p107 = scmp.ne.s32.totalorder %s102, %s104
      %p108 = scmp.eq.s32.totalorder %s16, 0
      %p109 = por %p107, %p108
      %p110 = scmp.ne.s32.totalorder %s102, %s104
      %p111 = scmp.eq.s32.totalorder %s21, 1
      %p112 = por %p110, %p111
      %p113 = scmp.ne.s32.totalorder %s104, %s105
      %p114 = scmp.eq.s32.totalorder %s21, 0
      %p115 = por %p113, %p114
      %p116 = scmp.ne.s32.totalorder %s104, %s105
      %p117 = scmp.eq.s32.totalorder %s22, 1
      %p118 = por %p116, %p117
      %p120 = scmp.ne.s32.totalorder %s105, %s119
      %p121 = scmp.eq.s32.totalorder %s22, 0
      %p122 = por %p120, %p121
      %s124 = sadd.s32 %s123, 1
      %p127 = scmp.eq.s32.totalorder %s16, 1
      %p128 = scmp.ne.s32.totalorder %s123, %s125
      %p129 = scmp.eq.s32.totalorder %s16, 0
      %p130 = por %p128, %p129
      %p131 = scmp.ne.s32.totalorder %s123, %s125
      %p132 = scmp.eq.s32.totalorder %s21, 1
      %p133 = por %p131, %p132
      %p134 = scmp.ne.s32.totalorder %s125, %s126
      %p135 = scmp.eq.s32.totalorder %s21, 0
      %p136 = por %p134, %p135
      %p137 = scmp.ne.s32.totalorder %s125, %s126
      %p138 = scmp.eq.s32.totalorder %s22, 1
      %p139 = por %p137, %p138
      %p141 = scmp.ne.s32.totalorder %s126, %s140
      %p142 = scmp.eq.s32.totalorder %s22, 0
      %p143 = por %p141, %p142
      %s145 = sadd.s32 %s144, 1
      %p148 = scmp.eq.s32.totalorder %s16, 1
      %p149 = scmp.ne.s32.totalorder %s144, %s146
      %p150 = scmp.eq.s32.totalorder %s16, 0
      %p151 = por %p149, %p150
      %p152 = scmp.ne.s32.totalorder %s144, %s146
      %p153 = scmp.eq.s32.totalorder %s21, 1
      %p154 = por %p152, %p153
      %p155 = scmp.ne.s32.totalorder %s146, %s147
      %p156 = scmp.eq.s32.totalorder %s21, 0
      %p157 = por %p155, %p156
      %p158 = scmp.ne.s32.totalorder %s146, %s147
      %p159 = scmp.eq.s32.totalorder %s22, 1
      %p160 = por %p158, %p159
      %p162 = scmp.ne.s32.totalorder %s147, %s161
      %p163 = scmp.eq.s32.totalorder %s22, 0
      %p164 = por %p162, %p163
      %s166 = sadd.s32 %s165, 1
      %p169 = scmp.eq.s32.totalorder %s16, 1
      %p170 = scmp.ne.s32.totalorder %s165, %s167
      %p171 = scmp.eq.s32.totalorder %s16, 0
      %p172 = por %p170, %p171
      %p173 = scmp.ne.s32.totalorder %s165, %s167
      %p174 = scmp.eq.s32.totalorder %s21, 1
      %p175 = por %p173, %p174
      %p176 = scmp.ne.s32.totalorder %s167, %s168
      %p177 = scmp.eq.s32.totalorder %s21, 0
      %p178 = por %p176, %p177
      %p179 = scmp.ne.s32.totalorder %s167, %s168
      %p180 = scmp.eq.s32.totalorder %s22, 1
      %p181 = por %p179, %p180
      %p183 = scmp.ne.s32.totalorder %s168, %s182
      %p184 = scmp.eq.s32.totalorder %s22, 0
      %p185 = por %p183, %p184
      %s187 = sadd.s32 %s186, 1
      %p190 = scmp.eq.s32.totalorder %s16, 1
      %p191 = scmp.ne.s32.totalorder %s186, %s188
      %p192 = scmp.eq.s32.totalorder %s16, 0
      %p193 = por %p191, %p192
      %p194 = scmp.ne.s32.totalorder %s186, %s188
      %p195 = scmp.eq.s32.totalorder %s21, 1
      %p196 = por %p194, %p195
      %p197 = scmp.ne.s32.totalorder %s188, %s189
      %p198 = scmp.eq.s32.totalorder %s21, 0
      %p199 = por %p197, %p198
      %p200 = scmp.ne.s32.totalorder %s188, %s189
      %p201 = scmp.eq.s32.totalorder %s22, 1
      %p202 = por %p200, %p201
      %p204 = scmp.ne.s32.totalorder %s189, %s203
      %p205 = scmp.eq.s32.totalorder %s22, 0
      %p206 = por %p204, %p205
      %s208 = sadd.s32 %s207, 1
      %p211 = scmp.eq.s32.totalorder %s16, 1
      %p212 = scmp.ne.s32.totalorder %s207, %s209
      %p213 = scmp.eq.s32.totalorder %s16, 0
      %p214 = por %p212, %p213
      %p215 = scmp.ne.s32.totalorder %s207, %s209
      %p216 = scmp.eq.s32.totalorder %s21, 1
      %p217 = por %p215, %p216
      %p218 = scmp.ne.s32.totalorder %s209, %s210
      %p219 = scmp.eq.s32.totalorder %s21, 0
      %p220 = por %p218, %p219
      %p221 = scmp.ne.s32.totalorder %s209, %s210
      %p222 = scmp.eq.s32.totalorder %s22, 1
      %p223 = por %p221, %p222
      %p225 = scmp.ne.s32.totalorder %s210, %s224
      %p226 = scmp.eq.s32.totalorder %s22, 0
      %p227 = por %p225, %p226
      %p228 = scmp.le.s32.totalorder 1, %s16
      %p229 = scmp.lt.s32.totalorder %s16, 3
      %p230 = pnand %p228, %p229
      %p231 = pneg %p230
      // Predicated region
      $region9: #{mddnet_forward.2} parent=5 // pred_check
        _
      $region10: #{mddnet_forward.2} parent=5 // pred_check_branch
        %233 = sbr.rel (%p230) target = $region12
      $region11: #{mddnet_forward.2} parent=5 // pred_region
        %s234 = ssub.s32 %s16, 1
        // Predicated region
        $region13: #{mddnet_forward.2} parent=11 // pred_check
          %p235 = pneg %p115
        $region14: #{mddnet_forward.2} parent=11 // pred_check_branch
          %237 = sbr.rel (%p235) target = $region16
        $region15: #{mddnet_forward.2} parent=11 // pred_region
          %s239 = ssub.s32 384, 384
          %240 = vsyncadd [#allocation4], %s239
          %s241 = sshll.u32 [#allocation3], 4
          %s242 = int_to_ptr.vmem [resolvable:$true] %s241
          %247 = dma.hbm_to_vmem [thread:$0]  %s3, 384, %s242, [#allocation4], 128, 128, 8
        $region16: #{mddnet_forward.2} parent=11 // pred_fallthru
          _
        // Predicated region
        $region17: #{mddnet_forward.2} parent=11 // pred_check
          %p248 = pneg %p136
        $region18: #{mddnet_forward.2} parent=11 // pred_check_branch
          %250 = sbr.rel (%p248) target = $region20
        $region19: #{mddnet_forward.2} parent=11 // pred_region
          _
        $region20: #{mddnet_forward.2} parent=11 // pred_fallthru
          _
        // Predicated region
        $region21: #{mddnet_forward.2} parent=11 // pred_check
          %p251 = pneg %p157
        $region22: #{mddnet_forward.2} parent=11 // pred_check_branch
          %253 = sbr.rel (%p251) target = $region24
        $region23: #{mddnet_forward.2} parent=11 // pred_region
          %s255 = ssub.s32 32, 32
          %256 = vsyncadd [#allocation6], %s255
          %s258 = sshll.u32 [#allocation5], 4
          %s259 = int_to_ptr.vmem [resolvable:$true] %s258
          %261 = dma.hbm_to_vmem [thread:$0]  %s5, 32, %s259, [#allocation6]
        $region24: #{mddnet_forward.2} parent=11 // pred_fallthru
          _
        // Predicated region
        $region25: #{mddnet_forward.2} parent=11 // pred_check
          %p262 = pneg %p178
        $region26: #{mddnet_forward.2} parent=11 // pred_check_branch
          %264 = sbr.rel (%p262) target = $region28
        $region27: #{mddnet_forward.2} parent=11 // pred_region
          _
        $region28: #{mddnet_forward.2} parent=11 // pred_fallthru
          _
        // Predicated region
        $region29: #{mddnet_forward.2} parent=11 // pred_check
          %p265 = pneg %p199
        $region30: #{mddnet_forward.2} parent=11 // pred_check_branch
          %267 = sbr.rel (%p265) target = $region32
        $region31: #{mddnet_forward.2} parent=11 // pred_region
          %s269 = ssub.s32 64, 64
          %270 = vsyncadd [#allocation6], %s269
          %s272 = sshll.u32 [#allocation7], 4
          %s273 = int_to_ptr.vmem [resolvable:$true] %s272
          %275 = dma.hbm_to_vmem [thread:$0]  %s7, 64, %s273, [#allocation6]
        $region32: #{mddnet_forward.2} parent=11 // pred_fallthru
          _
      $region12: #{mddnet_forward.2} parent=5 // pred_fallthru
        _
      %p276 = scmp.lt.s32.totalorder %s16, 2
      // Predicated region
      $region33: #{mddnet_forward.2} parent=5 // pred_check
        %p277 = pneg %p276
      $region34: #{mddnet_forward.2} parent=5 // pred_check_branch
        %279 = sbr.rel (%p277) target = $region36
      $region35: #{mddnet_forward.2} parent=5 // pred_region
        // Predicated region
        $region37: #{mddnet_forward.2} parent=35 // pred_check
          %p280 = pneg %p36
        $region38: #{mddnet_forward.2} parent=35 // pred_check_branch
          %282 = sbr.rel (%p280) target = $region40
        $region39: #{mddnet_forward.2} parent=35 // pred_region
          %s283 = smul.u32 16, %s16
          %p284 = scmp.lt.s32.totalorder %s283, 31
          %s285 = scalar_select %p284, %s283, 31
          %s286 = smul.addr %s285, 8
          %s287 = scalar_lea.vmem %s0, %s286
          %s288 = smul.u32 16, %s16
        $region40: #{mddnet_forward.2} parent=35 // pred_fallthru
          _
        // Predicated region
        $region41: #{mddnet_forward.2} parent=35 // pred_check
          %p289 = pneg %p62
        $region42: #{mddnet_forward.2} parent=35 // pred_check_branch
          %291 = sbr.rel (%p289) target = $region44
        $region43: #{mddnet_forward.2} parent=35 // pred_region
          %p292 = scmp.lt.s32.totalorder %s16, 1
          %s293 = scalar_select %p292, %s16, 1
          %s294 = scalar_lea.vmem %s1, %s293
        $region44: #{mddnet_forward.2} parent=35 // pred_fallthru
          _
        // Predicated region
        $region45: #{mddnet_forward.2} parent=35 // pred_check
          %p295 = pneg %p88
        $region46: #{mddnet_forward.2} parent=35 // pred_check_branch
          %297 = sbr.rel (%p295) target = $region48
        $region47: #{mddnet_forward.2} parent=35 // pred_region
          %s298 = smul.u32 16, %s16
          %p299 = scmp.lt.s32.totalorder %s298, 31
          %s300 = scalar_select %p299, %s298, 31
          %s301 = smul.addr %s300, 8
          %s302 = scalar_lea.vmem %s2, %s301
          %s303 = smul.u32 16, %s16
        $region48: #{mddnet_forward.2} parent=35 // pred_fallthru
          _
      $region36: #{mddnet_forward.2} parent=5 // pred_fallthru
        _
      %p304 = scmp.le.s32.totalorder 1, %s16
      %p305 = scmp.lt.s32.totalorder %s16, 3
      %p306 = pnand %p304, %p305
      %p307 = pneg %p306
      // Predicated region
      $region49: #{mddnet_forward.2} parent=5 // pred_check
        _
      $region50: #{mddnet_forward.2} parent=5 // pred_check_branch
        %309 = sbr.rel (%p306) target = $region52
      $region51: #{mddnet_forward.2} parent=5 // pred_region
        %s310 = ssub.s32 %s16, 1
        // Predicated region
        $region53: #{mddnet_forward.2} parent=51 // pred_check
          %p311 = pneg %p115
        $region54: #{mddnet_forward.2} parent=51 // pred_check_branch
          %313 = sbr.rel (%p311) target = $region56
        $region55: #{mddnet_forward.2} parent=51 // pred_region
          %314 = dma.done [#allocation4], 384
        $region56: #{mddnet_forward.2} parent=51 // pred_fallthru
          _
        // Predicated region
        $region57: #{mddnet_forward.2} parent=51 // pred_check
          %p315 = pneg %p157
        $region58: #{mddnet_forward.2} parent=51 // pred_check_branch
          %317 = sbr.rel (%p315) target = $region60
        $region59: #{mddnet_forward.2} parent=51 // pred_region
          %318 = dma.done [#allocation6], 32
        $region60: #{mddnet_forward.2} parent=51 // pred_fallthru
          _
        // Predicated region
        $region61: #{mddnet_forward.2} parent=51 // pred_check
          %p319 = pneg %p199
        $region62: #{mddnet_forward.2} parent=51 // pred_check_branch
          %321 = sbr.rel (%p319) target = $region64
        $region63: #{mddnet_forward.2} parent=51 // pred_region
          %322 = dma.done [#allocation6], 64
        $region64: #{mddnet_forward.2} parent=51 // pred_fallthru
          _
        %s323 = smul.u32 16, %s21
        %p324 = scmp.lt.s32.totalorder %s323, 31
        %s325 = scalar_select %p324, %s323, 31
        %s326 = smul.addr %s325, 8
        %s327 = scalar_lea.vmem %s0, %s326
        %p328 = pneg %p42
        %p329 = pneg %p39
        %p330 = scmp.lt.s32.totalorder %s21, 1
        %s331 = scalar_select %p330, %s21, 1
        %s332 = scalar_lea.vmem %s1, %s331
        %p333 = pneg %p68
        %p334 = pneg %p65
        %s335 = smul.u32 16, %s21
        %p336 = scmp.lt.s32.totalorder %s335, 31
        %s337 = scalar_select %p336, %s335, 31
        %s338 = smul.addr %s337, 8
        %s339 = scalar_lea.vmem %s2, %s338
        %p340 = pneg %p94
        %p341 = pneg %p91
        %p342 = pneg %p115
        %p343 = pneg %p112
        %p344 = pneg %p136
        %p345 = pneg %p133
        %p346 = pneg %p157
        %p347 = pneg %p154
        %p348 = pneg %p178
        %p349 = pneg %p175
        %p350 = pneg %p199
        %p351 = pneg %p196
        %p352 = pneg %p220
        %p353 = pneg %p217
        %s354 = smul.u32 16, %s21
        %p355 = scmp.lt.s32.totalorder %s354, 31
        %s356 = scalar_select %p355, %s354, 31
        %s357 = smul.addr %s356, 8
        %s358 = scalar_lea.vmem %s0, %s357
        %s359 = smul.u32 16, %s21
        %p360 = scmp.lt.s32.totalorder %s21, 1
        %s361 = scalar_select %p360, %s21, 1
        %s362 = scalar_lea.vmem %s1, %s361
        %s363 = smul.u32 16, %s21
        %p364 = scmp.lt.s32.totalorder %s363, 31
        %s365 = scalar_select %p364, %s363, 31
        %s366 = smul.addr %s365, 8
        %s367 = scalar_lea.vmem %s2, %s366
        %s368 = smul.u32 16, %s21
        %p370 = scmp.eq.s32.totalorder %s21, 0
        // Predicated region
        $region65: #{mddnet_forward.2} parent=51 // pred_check
          %p371 = pneg %p370
        $region66: #{mddnet_forward.2} parent=51 // pred_check_branch
          %373 = sbr.rel (%p371) target = $region68
        $region67: #{mddnet_forward.2} parent=51 // pred_region
          %374 = vst [vmem:[#allocation2] sm:$0xff] 0.0
          %375 = vst [vmem:[#allocation2 + $0x8] sm:$0xff] 0.0
          %376 = vst [vmem:[#allocation2 + $0x10] sm:$0xff] 0.0
          %377 = vst [vmem:[#allocation2 + $0x18] sm:$0xff] 0.0
          %378 = vst [vmem:[#allocation2 + $0x20] sm:$0xff] 0.0
          %379 = vst [vmem:[#allocation2 + $0x28] sm:$0xff] 0.0
          %380 = vst [vmem:[#allocation2 + $0x30] sm:$0xff] 0.0
          %381 = vst [vmem:[#allocation2 + $0x38] sm:$0xff] 0.0
          %382 = vst [vmem:[#allocation2 + $0x40] sm:$0xff] 0.0
          %383 = vst [vmem:[#allocation2 + $0x48] sm:$0xff] 0.0
          %384 = vst [vmem:[#allocation2 + $0x50] sm:$0xff] 0.0
          %385 = vst [vmem:[#allocation2 + $0x58] sm:$0xff] 0.0
        $region68: #{mddnet_forward.2} parent=51 // pred_fallthru
          _
        %v386 = vld [vmem:[%s358] sm:$0xff]
        %v387 = vld [vmem:[%s358 + $0x8] sm:$0xff]
        %v388 = vld [vmem:[%s358 + $0x10] sm:$0xff]
        %v389 = vld [vmem:[%s358 + $0x18] sm:$0xff]
        %v390 = vld [vmem:[%s358 + $0x20] sm:$0xff]
        %v391 = vld [vmem:[%s358 + $0x28] sm:$0xff]
        %v392 = vld [vmem:[%s358 + $0x30] sm:$0xff]
        %v393 = vld [vmem:[%s358 + $0x38] sm:$0xff]
        %v394 = vld [vmem:[%s358 + $0x40] sm:$0xff]
        %v395 = vld [vmem:[%s358 + $0x48] sm:$0xff]
        %v396 = vld [vmem:[%s358 + $0x50] sm:$0xff]
        %v397 = vld [vmem:[%s358 + $0x58] sm:$0xff]
        %v398 = vld [vmem:[%s358 + $0x60] sm:$0xff]
        %v399 = vld [vmem:[%s358 + $0x68] sm:$0xff]
        %v400 = vld [vmem:[%s358 + $0x70] sm:$0xff]
        %v401 = vld [vmem:[%s358 + $0x78] sm:$0xff]
        %v402 = vlaneseq
        %v403 = vand.u32 %v402, 127
        %404 = vset.pattern.permute.xlu0 0
        %405 = vperm.xlu0 %404, %v386
        %v406 = vpop.permute.xlu0 %405
        %407 = vset.pattern.permute.xlu0 0
        %408 = vperm.xlu0 %407, %v387
        %v409 = vpop.permute.xlu0 %408
        %410 = vset.pattern.permute.xlu0 0
        %411 = vperm.xlu0 %410, %v388
        %v412 = vpop.permute.xlu0 %411
        %413 = vset.pattern.permute.xlu0 0
        %414 = vperm.xlu0 %413, %v389
        %v415 = vpop.permute.xlu0 %414
        %416 = vset.pattern.permute.xlu0 0
        %417 = vperm.xlu0 %416, %v390
        %v418 = vpop.permute.xlu0 %417
        %419 = vset.pattern.permute.xlu0 0
        %420 = vperm.xlu0 %419, %v391
        %v421 = vpop.permute.xlu0 %420
        %422 = vset.pattern.permute.xlu0 0
        %423 = vperm.xlu0 %422, %v392
        %v424 = vpop.permute.xlu0 %423
        %425 = vset.pattern.permute.xlu0 0
        %426 = vperm.xlu0 %425, %v393
        %v427 = vpop.permute.xlu0 %426
        %428 = vset.pattern.permute.xlu0 0
        %429 = vperm.xlu0 %428, %v394
        %v430 = vpop.permute.xlu0 %429
        %431 = vset.pattern.permute.xlu0 0
        %432 = vperm.xlu0 %431, %v395
        %v433 = vpop.permute.xlu0 %432
        %434 = vset.pattern.permute.xlu0 0
        %435 = vperm.xlu0 %434, %v396
        %v436 = vpop.permute.xlu0 %435
        %437 = vset.pattern.permute.xlu0 0
        %438 = vperm.xlu0 %437, %v397
        %v439 = vpop.permute.xlu0 %438
        %440 = vset.pattern.permute.xlu0 0
        %441 = vperm.xlu0 %440, %v398
        %v442 = vpop.permute.xlu0 %441
        %443 = vset.pattern.permute.xlu0 0
        %444 = vperm.xlu0 %443, %v399
        %v445 = vpop.permute.xlu0 %444
        %446 = vset.pattern.permute.xlu0 0
        %447 = vperm.xlu0 %446, %v400
        %v448 = vpop.permute.xlu0 %447
        %449 = vset.pattern.permute.xlu0 0
        %450 = vperm.xlu0 %449, %v401
        %v451 = vpop.permute.xlu0 %450
        %vm452 = vcmp.eq.s32.totalorder %v406, %v403
        %vm453 = vcmp.eq.s32.totalorder %v409, %v403
        %vm454 = vcmp.eq.s32.totalorder %v412, %v403
        %vm455 = vcmp.eq.s32.totalorder %v415, %v403
        %vm456 = vcmp.eq.s32.totalorder %v418, %v403
        %vm457 = vcmp.eq.s32.totalorder %v421, %v403
        %vm458 = vcmp.eq.s32.totalorder %v424, %v403
        %vm459 = vcmp.eq.s32.totalorder %v427, %v403
        %vm460 = vcmp.eq.s32.totalorder %v430, %v403
        %vm461 = vcmp.eq.s32.totalorder %v433, %v403
        %vm462 = vcmp.eq.s32.totalorder %v436, %v403
        %vm463 = vcmp.eq.s32.totalorder %v439, %v403
        %vm464 = vcmp.eq.s32.totalorder %v442, %v403
        %vm465 = vcmp.eq.s32.totalorder %v445, %v403
        %vm466 = vcmp.eq.s32.totalorder %v448, %v403
        %vm467 = vcmp.eq.s32.totalorder %v451, %v403
        %v468 = vsel %vm452, 1, 0
        %v469 = vsel %vm453, 1, 0
        %v470 = vsel %vm454, 1, 0
        %v471 = vsel %vm455, 1, 0
        %v472 = vsel %vm456, 1, 0
        %v473 = vsel %vm457, 1, 0
        %v474 = vsel %vm458, 1, 0
        %v475 = vsel %vm459, 1, 0
        %v476 = vsel %vm460, 1, 0
        %v477 = vsel %vm461, 1, 0
        %v478 = vsel %vm462, 1, 0
        %v479 = vsel %vm463, 1, 0
        %v480 = vsel %vm464, 1, 0
        %v481 = vsel %vm465, 1, 0
        %v482 = vsel %vm466, 1, 0
        %v483 = vsel %vm467, 1, 0
        %v484 = vcvt.s32.f32 %v468
        %v485 = vcvt.s32.f32 %v469
        %v486 = vcvt.s32.f32 %v470
        %v487 = vcvt.s32.f32 %v471
        %v488 = vcvt.s32.f32 %v472
        %v489 = vcvt.s32.f32 %v473
        %v490 = vcvt.s32.f32 %v474
        %v491 = vcvt.s32.f32 %v475
        %v492 = vcvt.s32.f32 %v476
        %v493 = vcvt.s32.f32 %v477
        %v494 = vcvt.s32.f32 %v478
        %v495 = vcvt.s32.f32 %v479
        %v496 = vcvt.s32.f32 %v480
        %v497 = vcvt.s32.f32 %v481
        %v498 = vcvt.s32.f32 %v482
        %v499 = vcvt.s32.f32 %v483
        %v500 = vld [vmem:[#allocation3] sm:$0xff]
        %v501 = vld [vmem:[#allocation3 + $0x8] sm:$0xff]
        %v502 = vld [vmem:[#allocation3 + $0x10] sm:$0xff]
        %vm503 = vcmask 195584
        %v505 = vsel %vm503, %v484, 0
        %v508 = vsel %vm503, %v485, 0
        %v511 = vsel %vm503, %v486, 0
        %v514 = vsel %vm503, %v487, 0
        %v517 = vsel %vm503, %v488, 0
        %v520 = vsel %vm503, %v489, 0
        %v523 = vsel %vm503, %v490, 0
        %v526 = vsel %vm503, %v491, 0
        %v529 = vsel %vm503, %v492, 0
        %v532 = vsel %vm503, %v493, 0
        %v535 = vsel %vm503, %v494, 0
        %v538 = vsel %vm503, %v495, 0
        %v541 = vsel %vm503, %v496, 0
        %v544 = vsel %vm503, %v497, 0
        %v547 = vsel %vm503, %v498, 0
        %v550 = vsel %vm503, %v499, 0
        %552 = vmatprep.subr.mxu0 0.0
        %553 = vmatpush1.msra.mxu0 %v500
        %554 = vmatprep.subr.mxu0 0.0
        %555 = vmatpush1.msra.mxu0 %v501
        %556 = vmatprep.subr.mxu0 0.0
        %557 = vmatpush1.msra.mxu0 %v502
        %558 = vmatprep.subr.mxu0 0.0
        %559 = vmatpush1.msra.mxu0 0.0
        %560 = vmatprep.subr.mxu0 0.0
        %561 = vmatpush1.msra.mxu0 0.0
        %562 = vmatprep.subr.mxu0 0.0
        %563 = vmatpush1.msra.mxu0 0.0
        %564 = vmatprep.subr.mxu0 0.0
        %565 = vmatpush1.msra.mxu0 0.0
        %566 = vmatprep.subr.mxu0 0.0
        %567 = vmatpush1.msra.mxu0 0.0
        %568 = vmatprep.subr.mxu0 0.0
        %569 = vmatpush1.msra.mxu0 0.0
        %570 = vmatprep.subr.mxu0 0.0
        %571 = vmatpush1.msra.mxu0 0.0
        %572 = vmatprep.subr.mxu0 0.0
        %573 = vmatpush1.msra.mxu0 0.0
        %574 = vmatprep.subr.mxu0 0.0
        %575 = vmatpush1.msra.mxu0 0.0
        %576 = vmatprep.subr.mxu0 0.0
        %577 = vmatpush1.msra.mxu0 0.0
        %578 = vmatprep.subr.mxu0 0.0
        %579 = vmatpush1.msra.mxu0 0.0
        %580 = vmatprep.subr.mxu0 0.0
        %581 = vmatpush1.msra.mxu0 0.0
        %582 = vmatprep.subr.mxu0 0.0
        %583 = vmatpush1.msra.mxu0 0.0
        %584 = vmatprep.subr.mxu0 0.0
        %585 = vmatpush1.msra.mxu0 0.0
        %586 = vmatprep.subr.mxu0 0.0
        %587 = vmatpush1.msra.mxu0 0.0
        %588 = vmatprep.subr.mxu0 0.0
        %589 = vmatpush1.msra.mxu0 0.0
        %590 = vmatprep.subr.mxu0 0.0
        %591 = vmatpush1.msra.mxu0 0.0
        %592 = vmatprep.subr.mxu0 0.0
        %593 = vmatpush1.msra.mxu0 0.0
        %594 = vmatprep.subr.mxu0 0.0
        %595 = vmatpush1.msra.mxu0 0.0
        %596 = vmatprep.subr.mxu0 0.0
        %597 = vmatpush1.msra.mxu0 0.0
        %598 = vmatprep.subr.mxu0 0.0
        %599 = vmatpush1.msra.mxu0 0.0
        %600 = vmatprep.subr.mxu0 0.0
        %601 = vmatpush1.msra.mxu0 0.0
        %602 = vmatprep.subr.mxu0 0.0
        %603 = vmatpush1.msra.mxu0 0.0
        %604 = vmatprep.subr.mxu0 0.0
        %605 = vmatpush1.msra.mxu0 0.0
        %606 = vmatprep.subr.mxu0 0.0
        %607 = vmatpush1.msra.mxu0 0.0
        %608 = vmatprep.subr.mxu0 0.0
        %609 = vmatpush1.msra.mxu0 0.0
        %610 = vmatprep.subr.mxu0 0.0
        %611 = vmatpush1.msra.mxu0 0.0
        %612 = vmatprep.subr.mxu0 0.0
        %613 = vmatpush1.msra.mxu0 0.0
        %614 = vmatprep.subr.mxu0 0.0
        %615 = vmatpush1.msra.mxu0 0.0
        %616 = vmatprep.mubr.f32.mxu0 0.0
        %617 = vmatmul.mubr.f32.gmra.mrb[0].mxu0 %v505
        %v618 = vpop.f32.mrb[0].mxu0
        %v619 = vadd.f32 0.0, %v618
        %v620 = vpop.f32.mrb[0].mxu0
        %621 = vmatprep.mubr.f32.mxu0 0.0
        %622 = vmatmul.mubr.f32.gmra.mrb[0].mxu0 %v508
        %v623 = vpop.f32.mrb[0].mxu0
        %v624 = vadd.f32 0.0, %v623
        %v625 = vpop.f32.mrb[0].mxu0
        %626 = vmatprep.mubr.f32.mxu0 0.0
        %627 = vmatmul.mubr.f32.gmra.mrb[0].mxu0 %v511
        %v628 = vpop.f32.mrb[0].mxu0
        %v629 = vadd.f32 0.0, %v628
        %v630 = vpop.f32.mrb[0].mxu0
        %631 = vmatprep.mubr.f32.mxu0 0.0
        %632 = vmatmul.mubr.f32.gmra.mrb[0].mxu0 %v514
        %v633 = vpop.f32.mrb[0].mxu0
        %v634 = vadd.f32 0.0, %v633
        %v635 = vpop.f32.mrb[0].mxu0
        %636 = vmatprep.mubr.f32.mxu0 0.0
        %637 = vmatmul.mubr.f32.gmra.mrb[0].mxu0 %v517
        %v638 = vpop.f32.mrb[0].mxu0
        %v639 = vadd.f32 0.0, %v638
        %v640 = vpop.f32.mrb[0].mxu0
        %641 = vmatprep.mubr.f32.mxu0 0.0
        %642 = vmatmul.mubr.f32.gmra.mrb[0].mxu0 %v520
        %v643 = vpop.f32.mrb[0].mxu0
        %v644 = vadd.f32 0.0, %v643
        %v645 = vpop.f32.mrb[0].mxu0
        %646 = vmatprep.mubr.f32.mxu0 0.0
        %647 = vmatmul.mubr.f32.gmra.mrb[0].mxu0 %v523
        %v648 = vpop.f32.mrb[0].mxu0
        %v649 = vadd.f32 0.0, %v648
        %v650 = vpop.f32.mrb[0].mxu0
        %651 = vmatprep.mubr.f32.mxu0 0.0
        %652 = vmatmul.mubr.f32.gmra.mrb[0].mxu0 %v526
        %v653 = vpop.f32.mrb[0].mxu0
        %v654 = vadd.f32 0.0, %v653
        %v655 = vpop.f32.mrb[0].mxu0
        %656 = vmatprep.mubr.f32.mxu0 0.0
        %657 = vmatmul.mubr.f32.gmra.mrb[0].mxu0 %v529
        %v658 = vpop.f32.mrb[0].mxu0
        %v659 = vadd.f32 0.0, %v658
        %v660 = vpop.f32.mrb[0].mxu0
        %661 = vmatprep.mubr.f32.mxu0 0.0
        %662 = vmatmul.mubr.f32.gmra.mrb[0].mxu0 %v532
        %v663 = vpop.f32.mrb[0].mxu0
        %v664 = vadd.f32 0.0, %v663
        %v665 = vpop.f32.mrb[0].mxu0
        %666 = vmatprep.mubr.f32.mxu0 0.0
        %667 = vmatmul.mubr.f32.gmra.mrb[0].mxu0 %v535
        %v668 = vpop.f32.mrb[0].mxu0
        %v669 = vadd.f32 0.0, %v668
        %v670 = vpop.f32.mrb[0].mxu0
        %671 = vmatprep.mubr.f32.mxu0 0.0
        %672 = vmatmul.mubr.f32.gmra.mrb[0].mxu0 %v538
        %v673 = vpop.f32.mrb[0].mxu0
        %v674 = vadd.f32 0.0, %v673
        %v675 = vpop.f32.mrb[0].mxu0
        %676 = vmatprep.mubr.f32.mxu0 0.0
        %677 = vmatmul.mubr.f32.gmra.mrb[0].mxu0 %v541
        %v678 = vpop.f32.mrb[0].mxu0
        %v679 = vadd.f32 0.0, %v678
        %v680 = vpop.f32.mrb[0].mxu0
        %681 = vmatprep.mubr.f32.mxu0 0.0
        %682 = vmatmul.mubr.f32.gmra.mrb[0].mxu0 %v544
        %v683 = vpop.f32.mrb[0].mxu0
        %v684 = vadd.f32 0.0, %v683
        %v685 = vpop.f32.mrb[0].mxu0
        %686 = vmatprep.mubr.f32.mxu0 0.0
        %687 = vmatmul.mubr.f32.gmra.mrb[0].mxu0 %v547
        %v688 = vpop.f32.mrb[0].mxu0
        %v689 = vadd.f32 0.0, %v688
        %v690 = vpop.f32.mrb[0].mxu0
        %691 = vmatprep.mubr.f32.mxu0 0.0
        %692 = vmatmul.mubr.f32.gmra.mrb[0].mxu0 %v550
        %v693 = vpop.f32.mrb[0].mxu0
        %v694 = vadd.f32 0.0, %v693
        %v695 = vpop.f32.mrb[0].mxu0
        %696 = vdwg.mxu0
        %v697 = vld [vmem:[%s367] sm:$0xff]
        %v698 = vld [vmem:[%s367 + $0x8] sm:$0xff]
        %v699 = vld [vmem:[%s367 + $0x10] sm:$0xff]
        %v700 = vld [vmem:[%s367 + $0x18] sm:$0xff]
        %v701 = vld [vmem:[%s367 + $0x20] sm:$0xff]
        %v702 = vld [vmem:[%s367 + $0x28] sm:$0xff]
        %v703 = vld [vmem:[%s367 + $0x30] sm:$0xff]
        %v704 = vld [vmem:[%s367 + $0x38] sm:$0xff]
        %v705 = vld [vmem:[%s367 + $0x40] sm:$0xff]
        %v706 = vld [vmem:[%s367 + $0x48] sm:$0xff]
        %v707 = vld [vmem:[%s367 + $0x50] sm:$0xff]
        %v708 = vld [vmem:[%s367 + $0x58] sm:$0xff]
        %v709 = vld [vmem:[%s367 + $0x60] sm:$0xff]
        %v710 = vld [vmem:[%s367 + $0x68] sm:$0xff]
        %v711 = vld [vmem:[%s367 + $0x70] sm:$0xff]
        %v712 = vld [vmem:[%s367 + $0x78] sm:$0xff]
        %v713 = vmul.f32 %v619, %v697
        %v714 = vmul.f32 %v624, %v698
        %v715 = vmul.f32 %v629, %v699
        %v716 = vmul.f32 %v634, %v700
        %v717 = vmul.f32 %v639, %v701
        %v718 = vmul.f32 %v644, %v702
        %v719 = vmul.f32 %v649, %v703
        %v720 = vmul.f32 %v654, %v704
        %v721 = vmul.f32 %v659, %v705
        %v722 = vmul.f32 %v664, %v706
        %v723 = vmul.f32 %v669, %v707
        %v724 = vmul.f32 %v674, %v708
        %v725 = vmul.f32 %v679, %v709
        %v726 = vmul.f32 %v684, %v710
        %v727 = vmul.f32 %v689, %v711
        %v728 = vmul.f32 %v694, %v712
        %v729 = vpack.c.bf16 %v714, %v713
        %v730 = vpack.c.bf16 %v716, %v715
        %v731 = vpack.c.bf16 %v718, %v717
        %v732 = vpack.c.bf16 %v720, %v719
        %v733 = vpack.c.bf16 %v722, %v721
        %v734 = vpack.c.bf16 %v724, %v723
        %v735 = vpack.c.bf16 %v726, %v725
        %v736 = vpack.c.bf16 %v728, %v727
        %v737 = vld [vmem:[%s4] sm:$0xff]
        %v738 = vld [vmem:[%s4 + $0x8] sm:$0xff]
        %v739 = vld [vmem:[%s4 + $0x10] sm:$0xff]
        %v740 = vld [vmem:[%s4 + $0x18] sm:$0xff]
        %v741 = vld [vmem:[#allocation5] sm:$0x3]
        %v743 = vlaneseq
        %v744 = vshrl.u32 %v743, 7
        %v745 = vsub.s32 0, %v744
        %v746 = vrot.slane %v741, %v745
        %v747 = vlaneseq
        %v748 = vshrl.u32 %v747, 7
        %v749 = vsub.s32 1, %v748
        %v750 = vrot.slane %v741, %v749
        %v757 = vunpack.c.l.b16 %v737
        %v758 = vunpack.c.h.b16 %v737
        %v759 = vunpack.c.l.b16 %v738
        %v760 = vunpack.c.h.b16 %v738
        %v761 = vunpack.c.l.b16 %v739
        %v762 = vunpack.c.h.b16 %v739
        %v763 = vunpack.c.l.b16 %v740
        %v764 = vunpack.c.h.b16 %v740
        %v765 = vpack.c.b16 %v759, %v757
        %v766 = vpack.c.b16 %v760, %v758
        %v767 = vpack.c.b16 %v763, %v761
        %v768 = vpack.c.b16 %v764, %v762
        %vm773 = vcmask 261120
        %v775 = vsel %vm773, %v729, 0
        %v778 = vsel %vm773, %v730, 0
        %v781 = vsel %vm773, %v731, 0
        %v784 = vsel %vm773, %v732, 0
        %v787 = vsel %vm773, %v733, 0
        %v790 = vsel %vm773, %v734, 0
        %v793 = vsel %vm773, %v735, 0
        %v796 = vsel %vm773, %v736, 0
        %798 = vmatprep.subr.bf16.mxu0 %v766
        %799 = vmatpush1.bf16.msra.mxu0 %v765
        %800 = vmatprep.subr.bf16.mxu0 %v768
        %801 = vmatpush1.bf16.msra.mxu0 %v767
        %802 = vmatprep.subr.bf16.mxu0 0
        %803 = vmatpush1.bf16.msra.mxu0 0
        %804 = vmatprep.subr.bf16.mxu0 0
        %805 = vmatpush1.bf16.msra.mxu0 0
        %806 = vmatprep.subr.bf16.mxu0 0
        %807 = vmatpush1.bf16.msra.mxu0 0
        %808 = vmatprep.subr.bf16.mxu0 0
        %809 = vmatpush1.bf16.msra.mxu0 0
        %810 = vmatprep.subr.bf16.mxu0 0
        %811 = vmatpush1.bf16.msra.mxu0 0
        %812 = vmatprep.subr.bf16.mxu0 0
        %813 = vmatpush1.bf16.msra.mxu0 0
        %814 = vmatprep.subr.bf16.mxu0 0
        %815 = vmatpush1.bf16.msra.mxu0 0
        %816 = vmatprep.subr.bf16.mxu0 0
        %817 = vmatpush1.bf16.msra.mxu0 0
        %818 = vmatprep.subr.bf16.mxu0 0
        %819 = vmatpush1.bf16.msra.mxu0 0
        %820 = vmatprep.subr.bf16.mxu0 0
        %821 = vmatpush1.bf16.msra.mxu0 0
        %822 = vmatprep.subr.bf16.mxu0 0
        %823 = vmatpush1.bf16.msra.mxu0 0
        %824 = vmatprep.subr.bf16.mxu0 0
        %825 = vmatpush1.bf16.msra.mxu0 0
        %826 = vmatprep.subr.bf16.mxu0 0
        %827 = vmatpush1.bf16.msra.mxu0 0
        %828 = vmatprep.subr.bf16.mxu0 0
        %829 = vmatpush1.bf16.msra.mxu0 0
        %830 = vmatprep.mubr.bf16.mxu0 0
        %831 = vmatmul.mubr.bf16.gmra.mrb[0].mxu0 %v775
        %v832 = vpop.f32.mrb[0].mxu0
        %v833 = vadd.f32 %v746, %v832
        %v834 = vpop.f32.mrb[0].mxu0
        %v835 = vadd.f32 %v750, %v834
        %v836 = vpop.f32.mrb[0].mxu0
        %v837 = vadd.f32 %v746, %v836
        %v838 = vpop.f32.mrb[0].mxu0
        %v839 = vadd.f32 %v750, %v838
        %840 = vmatprep.mubr.bf16.mxu0 0
        %841 = vmatmul.mubr.bf16.gmra.mrb[0].mxu0 %v778
        %v842 = vpop.f32.mrb[0].mxu0
        %v843 = vadd.f32 %v746, %v842
        %v844 = vpop.f32.mrb[0].mxu0
        %v845 = vadd.f32 %v750, %v844
        %v846 = vpop.f32.mrb[0].mxu0
        %v847 = vadd.f32 %v746, %v846
        %v848 = vpop.f32.mrb[0].mxu0
        %v849 = vadd.f32 %v750, %v848
        %850 = vmatprep.mubr.bf16.mxu0 0
        %851 = vmatmul.mubr.bf16.gmra.mrb[0].mxu0 %v781
        %v852 = vpop.f32.mrb[0].mxu0
        %v853 = vadd.f32 %v746, %v852
        %v854 = vpop.f32.mrb[0].mxu0
        %v855 = vadd.f32 %v750, %v854
        %v856 = vpop.f32.mrb[0].mxu0
        %v857 = vadd.f32 %v746, %v856
        %v858 = vpop.f32.mrb[0].mxu0
        %v859 = vadd.f32 %v750, %v858
        %860 = vmatprep.mubr.bf16.mxu0 0
        %861 = vmatmul.mubr.bf16.gmra.mrb[0].mxu0 %v784
        %v862 = vpop.f32.mrb[0].mxu0
        %v863 = vadd.f32 %v746, %v862
        %v864 = vpop.f32.mrb[0].mxu0
        %v865 = vadd.f32 %v750, %v864
        %v866 = vpop.f32.mrb[0].mxu0
        %v867 = vadd.f32 %v746, %v866
        %v868 = vpop.f32.mrb[0].mxu0
        %v869 = vadd.f32 %v750, %v868
        %870 = vmatprep.mubr.bf16.mxu0 0
        %871 = vmatmul.mubr.bf16.gmra.mrb[0].mxu0 %v787
        %v872 = vpop.f32.mrb[0].mxu0
        %v873 = vadd.f32 %v746, %v872
        %v874 = vpop.f32.mrb[0].mxu0
        %v875 = vadd.f32 %v750, %v874
        %v876 = vpop.f32.mrb[0].mxu0
        %v877 = vadd.f32 %v746, %v876
        %v878 = vpop.f32.mrb[0].mxu0
        %v879 = vadd.f32 %v750, %v878
        %880 = vmatprep.mubr.bf16.mxu0 0
        %881 = vmatmul.mubr.bf16.gmra.mrb[0].mxu0 %v790
        %v882 = vpop.f32.mrb[0].mxu0
        %v883 = vadd.f32 %v746, %v882
        %v884 = vpop.f32.mrb[0].mxu0
        %v885 = vadd.f32 %v750, %v884
        %v886 = vpop.f32.mrb[0].mxu0
        %v887 = vadd.f32 %v746, %v886
        %v888 = vpop.f32.mrb[0].mxu0
        %v889 = vadd.f32 %v750, %v888
        %890 = vmatprep.mubr.bf16.mxu0 0
        %891 = vmatmul.mubr.bf16.gmra.mrb[0].mxu0 %v793
        %v892 = vpop.f32.mrb[0].mxu0
        %v893 = vadd.f32 %v746, %v892
        %v894 = vpop.f32.mrb[0].mxu0
        %v895 = vadd.f32 %v750, %v894
        %v896 = vpop.f32.mrb[0].mxu0
        %v897 = vadd.f32 %v746, %v896
        %v898 = vpop.f32.mrb[0].mxu0
        %v899 = vadd.f32 %v750, %v898
        %900 = vmatprep.mubr.bf16.mxu0 0
        %901 = vmatmul.mubr.bf16.gmra.mrb[0].mxu0 %v796
        %v902 = vpop.f32.mrb[0].mxu0
        %v903 = vadd.f32 %v746, %v902
        %v904 = vpop.f32.mrb[0].mxu0
        %v905 = vadd.f32 %v750, %v904
        %v906 = vpop.f32.mrb[0].mxu0
        %v907 = vadd.f32 %v746, %v906
        %v908 = vpop.f32.mrb[0].mxu0
        %v909 = vadd.f32 %v750, %v908
        %910 = vdwg.mxu0
        %vm911 = vcmp.gt.f32.partialorder %v833, 0.0
        %vm912 = vcmp.gt.f32.partialorder %v835, 0.0
        %vm913 = vcmp.gt.f32.partialorder %v837, 0.0
        %vm914 = vcmp.gt.f32.partialorder %v839, 0.0
        %vm915 = vcmp.gt.f32.partialorder %v843, 0.0
        %vm916 = vcmp.gt.f32.partialorder %v845, 0.0
        %vm917 = vcmp.gt.f32.partialorder %v847, 0.0
        %vm918 = vcmp.gt.f32.partialorder %v849, 0.0
        %vm919 = vcmp.gt.f32.partialorder %v853, 0.0
        %vm920 = vcmp.gt.f32.partialorder %v855, 0.0
        %vm921 = vcmp.gt.f32.partialorder %v857, 0.0
        %vm922 = vcmp.gt.f32.partialorder %v859, 0.0
        %vm923 = vcmp.gt.f32.partialorder %v863, 0.0
        %vm924 = vcmp.gt.f32.partialorder %v865, 0.0
        %vm925 = vcmp.gt.f32.partialorder %v867, 0.0
        %vm926 = vcmp.gt.f32.partialorder %v869, 0.0
        %vm927 = vcmp.gt.f32.partialorder %v873, 0.0
        %vm928 = vcmp.gt.f32.partialorder %v875, 0.0
        %vm929 = vcmp.gt.f32.partialorder %v877, 0.0
        %vm930 = vcmp.gt.f32.partialorder %v879, 0.0
        %vm931 = vcmp.gt.f32.partialorder %v883, 0.0
        %vm932 = vcmp.gt.f32.partialorder %v885, 0.0
        %vm933 = vcmp.gt.f32.partialorder %v887, 0.0
        %vm934 = vcmp.gt.f32.partialorder %v889, 0.0
        %vm935 = vcmp.gt.f32.partialorder %v893, 0.0
        %vm936 = vcmp.gt.f32.partialorder %v895, 0.0
        %vm937 = vcmp.gt.f32.partialorder %v897, 0.0
        %vm938 = vcmp.gt.f32.partialorder %v899, 0.0
        %vm939 = vcmp.gt.f32.partialorder %v903, 0.0
        %vm940 = vcmp.gt.f32.partialorder %v905, 0.0
        %vm941 = vcmp.gt.f32.partialorder %v907, 0.0
        %vm942 = vcmp.gt.f32.partialorder %v909, 0.0
        %v943 = vmul.f32 %v833, 0.01
        %v944 = vmul.f32 %v835, 0.01
        %v945 = vmul.f32 %v837, 0.01
        %v946 = vmul.f32 %v839, 0.01
        %v947 = vmul.f32 %v843, 0.01
        %v948 = vmul.f32 %v845, 0.01
        %v949 = vmul.f32 %v847, 0.01
        %v950 = vmul.f32 %v849, 0.01
        %v951 = vmul.f32 %v853, 0.01
        %v952 = vmul.f32 %v855, 0.01
        %v953 = vmul.f32 %v857, 0.01
        %v954 = vmul.f32 %v859, 0.01
        %v955 = vmul.f32 %v863, 0.01
        %v956 = vmul.f32 %v865, 0.01
        %v957 = vmul.f32 %v867, 0.01
        %v958 = vmul.f32 %v869, 0.01
        %v959 = vmul.f32 %v873, 0.01
        %v960 = vmul.f32 %v875, 0.01
        %v961 = vmul.f32 %v877, 0.01
        %v962 = vmul.f32 %v879, 0.01
        %v963 = vmul.f32 %v883, 0.01
        %v964 = vmul.f32 %v885, 0.01
        %v965 = vmul.f32 %v887, 0.01
        %v966 = vmul.f32 %v889, 0.01
        %v967 = vmul.f32 %v893, 0.01
        %v968 = vmul.f32 %v895, 0.01
        %v969 = vmul.f32 %v897, 0.01
        %v970 = vmul.f32 %v899, 0.01
        %v971 = vmul.f32 %v903, 0.01
        %v972 = vmul.f32 %v905, 0.01
        %v973 = vmul.f32 %v907, 0.01
        %v974 = vmul.f32 %v909, 0.01
        %v975 = vsel %vm911, %v833, %v943
        %v976 = vsel %vm912, %v835, %v944
        %v977 = vsel %vm913, %v837, %v945
        %v978 = vsel %vm914, %v839, %v946
        %v979 = vsel %vm915, %v843, %v947
        %v980 = vsel %vm916, %v845, %v948
        %v981 = vsel %vm917, %v847, %v949
        %v982 = vsel %vm918, %v849, %v950
        %v983 = vsel %vm919, %v853, %v951
        %v984 = vsel %vm920, %v855, %v952
        %v985 = vsel %vm921, %v857, %v953
        %v986 = vsel %vm922, %v859, %v954
        %v987 = vsel %vm923, %v863, %v955
        %v988 = vsel %vm924, %v865, %v956
        %v989 = vsel %vm925, %v867, %v957
        %v990 = vsel %vm926, %v869, %v958
        %v991 = vsel %vm927, %v873, %v959
        %v992 = vsel %vm928, %v875, %v960
        %v993 = vsel %vm929, %v877, %v961
        %v994 = vsel %vm930, %v879, %v962
        %v995 = vsel %vm931, %v883, %v963
        %v996 = vsel %vm932, %v885, %v964
        %v997 = vsel %vm933, %v887, %v965
        %v998 = vsel %vm934, %v889, %v966
        %v999 = vsel %vm935, %v893, %v967
        %v1000 = vsel %vm936, %v895, %v968
        %v1001 = vsel %vm937, %v897, %v969
        %v1002 = vsel %vm938, %v899, %v970
        %v1003 = vsel %vm939, %v903, %v971
        %v1004 = vsel %vm940, %v905, %v972
        %v1005 = vsel %vm941, %v907, %v973
        %v1006 = vsel %vm942, %v909, %v974
        %v1007 = vpack.c.bf16 %v977, %v975
        %v1008 = vpack.c.bf16 %v978, %v976
        %v1009 = vpack.c.bf16 %v981, %v979
        %v1010 = vpack.c.bf16 %v982, %v980
        %v1011 = vpack.c.bf16 %v985, %v983
        %v1012 = vpack.c.bf16 %v986, %v984
        %v1013 = vpack.c.bf16 %v989, %v987
        %v1014 = vpack.c.bf16 %v990, %v988
        %v1015 = vpack.c.bf16 %v993, %v991
        %v1016 = vpack.c.bf16 %v994, %v992
        %v1017 = vpack.c.bf16 %v997, %v995
        %v1018 = vpack.c.bf16 %v998, %v996
        %v1019 = vpack.c.bf16 %v1001, %v999
        %v1020 = vpack.c.bf16 %v1002, %v1000
        %v1021 = vpack.c.bf16 %v1005, %v1003
        %v1022 = vpack.c.bf16 %v1006, %v1004
        %v1023 = vld [vmem:[%s6] sm:$0xff]
        %v1024 = vld [vmem:[%s6 + $0x8] sm:$0xff]
        %v1025 = vld [vmem:[%s6 + $0x10] sm:$0xff]
        %v1026 = vld [vmem:[%s6 + $0x18] sm:$0xff]
        %v1027 = vld [vmem:[%s6 + $0x20] sm:$0xff]
        %v1028 = vld [vmem:[%s6 + $0x28] sm:$0xff]
        %v1029 = vld [vmem:[%s6 + $0x30] sm:$0xff]
        %v1030 = vld [vmem:[%s6 + $0x38] sm:$0xff]
        %v1031 = vld [vmem:[%s6 + $0x40] sm:$0xff]
        %v1032 = vld [vmem:[%s6 + $0x48] sm:$0xff]
        %v1033 = vld [vmem:[%s6 + $0x50] sm:$0xff]
        %v1034 = vld [vmem:[%s6 + $0x58] sm:$0xff]
        %v1035 = vld [vmem:[%s6 + $0x60] sm:$0xff]
        %v1036 = vld [vmem:[%s6 + $0x68] sm:$0xff]
        %v1037 = vld [vmem:[%s6 + $0x70] sm:$0xff]
        %v1038 = vld [vmem:[%s6 + $0x78] sm:$0xff]
        %v1039 = vld [vmem:[%s6 + $0x80] sm:$0xff]
        %v1040 = vld [vmem:[%s6 + $0x88] sm:$0xff]
        %v1041 = vld [vmem:[%s6 + $0x90] sm:$0xff]
        %v1042 = vld [vmem:[%s6 + $0x98] sm:$0xff]
        %v1043 = vld [vmem:[%s6 + $0xa0] sm:$0xff]
        %v1044 = vld [vmem:[%s6 + $0xa8] sm:$0xff]
        %v1045 = vld [vmem:[%s6 + $0xb0] sm:$0xff]
        %v1046 = vld [vmem:[%s6 + $0xb8] sm:$0xff]
        %v1047 = vld [vmem:[%s6 + $0xc0] sm:$0xff]
        %v1048 = vld [vmem:[%s6 + $0xc8] sm:$0xff]
        %v1049 = vld [vmem:[%s6 + $0xd0] sm:$0xff]
        %v1050 = vld [vmem:[%s6 + $0xd8] sm:$0xff]
        %v1051 = vld [vmem:[%s6 + $0xe0] sm:$0xff]
        %v1052 = vld [vmem:[%s6 + $0xe8] sm:$0xff]
        %v1053 = vld [vmem:[%s6 + $0xf0] sm:$0xff]
        %v1054 = vld [vmem:[%s6 + $0xf8] sm:$0xff]
        %v1055 = vld [vmem:[%s6 + $0x100] sm:$0xff]
        %v1056 = vld [vmem:[%s6 + $0x108] sm:$0xff]
        %v1057 = vld [vmem:[%s6 + $0x110] sm:$0xff]
        %v1058 = vld [vmem:[%s6 + $0x118] sm:$0xff]
        %v1059 = vld [vmem:[%s6 + $0x120] sm:$0xff]
        %v1060 = vld [vmem:[%s6 + $0x128] sm:$0xff]
        %v1061 = vld [vmem:[%s6 + $0x130] sm:$0xff]
        %v1062 = vld [vmem:[%s6 + $0x138] sm:$0xff]
        %v1063 = vld [vmem:[%s6 + $0x140] sm:$0xff]
        %v1064 = vld [vmem:[%s6 + $0x148] sm:$0xff]
        %v1065 = vld [vmem:[%s6 + $0x150] sm:$0xff]
        %v1066 = vld [vmem:[%s6 + $0x158] sm:$0xff]
        %v1067 = vld [vmem:[%s6 + $0x160] sm:$0xff]
        %v1068 = vld [vmem:[%s6 + $0x168] sm:$0xff]
        %v1069 = vld [vmem:[%s6 + $0x170] sm:$0xff]
        %v1070 = vld [vmem:[%s6 + $0x178] sm:$0xff]
        %v1071 = vld [vmem:[%s6 + $0x180] sm:$0xff]
        %v1072 = vld [vmem:[%s6 + $0x188] sm:$0xff]
        %v1073 = vld [vmem:[%s6 + $0x190] sm:$0xff]
        %v1074 = vld [vmem:[%s6 + $0x198] sm:$0xff]
        %v1075 = vld [vmem:[%s6 + $0x1a0] sm:$0xff]
        %v1076 = vld [vmem:[%s6 + $0x1a8] sm:$0xff]
        %v1077 = vld [vmem:[%s6 + $0x1b0] sm:$0xff]
        %v1078 = vld [vmem:[%s6 + $0x1b8] sm:$0xff]
        %v1079 = vld [vmem:[%s6 + $0x1c0] sm:$0xff]
        %v1080 = vld [vmem:[%s6 + $0x1c8] sm:$0xff]
        %v1081 = vld [vmem:[%s6 + $0x1d0] sm:$0xff]
        %v1082 = vld [vmem:[%s6 + $0x1d8] sm:$0xff]
        %v1083 = vld [vmem:[%s6 + $0x1e0] sm:$0xff]
        %v1084 = vld [vmem:[%s6 + $0x1e8] sm:$0xff]
        %v1085 = vld [vmem:[%s6 + $0x1f0] sm:$0xff]
        %v1086 = vld [vmem:[%s6 + $0x1f8] sm:$0xff]
        %v1087 = vld [vmem:[#allocation7] sm:$0xf]
        %v1089 = vlaneseq
        %v1090 = vshrl.u32 %v1089, 7
        %v1091 = vsub.s32 0, %v1090
        %v1092 = vrot.slane %v1087, %v1091
        %v1093 = vlaneseq
        %v1094 = vshrl.u32 %v1093, 7
        %v1095 = vsub.s32 1, %v1094
        %v1096 = vrot.slane %v1087, %v1095
        %v1097 = vlaneseq
        %v1098 = vshrl.u32 %v1097, 7
        %v1099 = vsub.s32 2, %v1098
        %v1100 = vrot.slane %v1087, %v1099
        %v1101 = vlaneseq
        %v1102 = vshrl.u32 %v1101, 7
        %v1103 = vsub.s32 3, %v1102
        %v1104 = vrot.slane %v1087, %v1103
        %v1173 = vunpack.c.l.b16 %v1023
        %v1174 = vunpack.c.h.b16 %v1023
        %v1175 = vunpack.c.l.b16 %v1024
        %v1176 = vunpack.c.h.b16 %v1024
        %v1177 = vunpack.c.l.b16 %v1025
        %v1178 = vunpack.c.h.b16 %v1025
        %v1179 = vunpack.c.l.b16 %v1026
        %v1180 = vunpack.c.h.b16 %v1026
        %v1181 = vunpack.c.l.b16 %v1027
        %v1182 = vunpack.c.h.b16 %v1027
        %v1183 = vunpack.c.l.b16 %v1028
        %v1184 = vunpack.c.h.b16 %v1028
        %v1185 = vunpack.c.l.b16 %v1029
        %v1186 = vunpack.c.h.b16 %v1029
        %v1187 = vunpack.c.l.b16 %v1030
        %v1188 = vunpack.c.h.b16 %v1030
        %v1189 = vunpack.c.l.b16 %v1031
        %v1190 = vunpack.c.h.b16 %v1031
        %v1191 = vunpack.c.l.b16 %v1032
        %v1192 = vunpack.c.h.b16 %v1032
        %v1193 = vunpack.c.l.b16 %v1033
        %v1194 = vunpack.c.h.b16 %v1033
        %v1195 = vunpack.c.l.b16 %v1034
        %v1196 = vunpack.c.h.b16 %v1034
        %v1197 = vunpack.c.l.b16 %v1035
        %v1198 = vunpack.c.h.b16 %v1035
        %v1199 = vunpack.c.l.b16 %v1036
        %v1200 = vunpack.c.h.b16 %v1036
        %v1201 = vunpack.c.l.b16 %v1037
        %v1202 = vunpack.c.h.b16 %v1037
        %v1203 = vunpack.c.l.b16 %v1038
        %v1204 = vunpack.c.h.b16 %v1038
        %v1205 = vunpack.c.l.b16 %v1039
        %v1206 = vunpack.c.h.b16 %v1039
        %v1207 = vunpack.c.l.b16 %v1040
        %v1208 = vunpack.c.h.b16 %v1040
        %v1209 = vunpack.c.l.b16 %v1041
        %v1210 = vunpack.c.h.b16 %v1041
        %v1211 = vunpack.c.l.b16 %v1042
        %v1212 = vunpack.c.h.b16 %v1042
        %v1213 = vunpack.c.l.b16 %v1043
        %v1214 = vunpack.c.h.b16 %v1043
        %v1215 = vunpack.c.l.b16 %v1044
        %v1216 = vunpack.c.h.b16 %v1044
        %v1217 = vunpack.c.l.b16 %v1045
        %v1218 = vunpack.c.h.b16 %v1045
        %v1219 = vunpack.c.l.b16 %v1046
        %v1220 = vunpack.c.h.b16 %v1046
        %v1221 = vunpack.c.l.b16 %v1047
        %v1222 = vunpack.c.h.b16 %v1047
        %v1223 = vunpack.c.l.b16 %v1048
        %v1224 = vunpack.c.h.b16 %v1048
        %v1225 = vunpack.c.l.b16 %v1049
        %v1226 = vunpack.c.h.b16 %v1049
        %v1227 = vunpack.c.l.b16 %v1050
        %v1228 = vunpack.c.h.b16 %v1050
        %v1229 = vunpack.c.l.b16 %v1051
        %v1230 = vunpack.c.h.b16 %v1051
        %v1231 = vunpack.c.l.b16 %v1052
        %v1232 = vunpack.c.h.b16 %v1052
        %v1233 = vunpack.c.l.b16 %v1053
        %v1234 = vunpack.c.h.b16 %v1053
        %v1235 = vunpack.c.l.b16 %v1054
        %v1236 = vunpack.c.h.b16 %v1054
        %v1237 = vunpack.c.l.b16 %v1055
        %v1238 = vunpack.c.h.b16 %v1055
        %v1239 = vunpack.c.l.b16 %v1056
        %v1240 = vunpack.c.h.b16 %v1056
        %v1241 = vunpack.c.l.b16 %v1057
        %v1242 = vunpack.c.h.b16 %v1057
        %v1243 = vunpack.c.l.b16 %v1058
        %v1244 = vunpack.c.h.b16 %v1058
        %v1245 = vunpack.c.l.b16 %v1059
        %v1246 = vunpack.c.h.b16 %v1059
        %v1247 = vunpack.c.l.b16 %v1060
        %v1248 = vunpack.c.h.b16 %v1060
        %v1249 = vunpack.c.l.b16 %v1061
        %v1250 = vunpack.c.h.b16 %v1061
        %v1251 = vunpack.c.l.b16 %v1062
        %v1252 = vunpack.c.h.b16 %v1062
        %v1253 = vunpack.c.l.b16 %v1063
        %v1254 = vunpack.c.h.b16 %v1063
        %v1255 = vunpack.c.l.b16 %v1064
        %v1256 = vunpack.c.h.b16 %v1064
        %v1257 = vunpack.c.l.b16 %v1065
        %v1258 = vunpack.c.h.b16 %v1065
        %v1259 = vunpack.c.l.b16 %v1066
        %v1260 = vunpack.c.h.b16 %v1066
        %v1261 = vunpack.c.l.b16 %v1067
        %v1262 = vunpack.c.h.b16 %v1067
        %v1263 = vunpack.c.l.b16 %v1068
        %v1264 = vunpack.c.h.b16 %v1068
        %v1265 = vunpack.c.l.b16 %v1069
        %v1266 = vunpack.c.h.b16 %v1069
        %v1267 = vunpack.c.l.b16 %v1070
        %v1268 = vunpack.c.h.b16 %v1070
        %v1269 = vunpack.c.l.b16 %v1071
        %v1270 = vunpack.c.h.b16 %v1071
        %v1271 = vunpack.c.l.b16 %v1072
        %v1272 = vunpack.c.h.b16 %v1072
        %v1273 = vunpack.c.l.b16 %v1073
        %v1274 = vunpack.c.h.b16 %v1073
        %v1275 = vunpack.c.l.b16 %v1074
        %v1276 = vunpack.c.h.b16 %v1074
        %v1277 = vunpack.c.l.b16 %v1075
        %v1278 = vunpack.c.h.b16 %v1075
        %v1279 = vunpack.c.l.b16 %v1076
        %v1280 = vunpack.c.h.b16 %v1076
        %v1281 = vunpack.c.l.b16 %v1077
        %v1282 = vunpack.c.h.b16 %v1077
        %v1283 = vunpack.c.l.b16 %v1078
        %v1284 = vunpack.c.h.b16 %v1078
        %v1285 = vunpack.c.l.b16 %v1079
        %v1286 = vunpack.c.h.b16 %v1079
        %v1287 = vunpack.c.l.b16 %v1080
        %v1288 = vunpack.c.h.b16 %v1080
        %v1289 = vunpack.c.l.b16 %v1081
        %v1290 = vunpack.c.h.b16 %v1081
        %v1291 = vunpack.c.l.b16 %v1082
        %v1292 = vunpack.c.h.b16 %v1082
        %v1293 = vunpack.c.l.b16 %v1083
        %v1294 = vunpack.c.h.b16 %v1083
        %v1295 = vunpack.c.l.b16 %v1084
        %v1296 = vunpack.c.h.b16 %v1084
        %v1297 = vunpack.c.l.b16 %v1085
        %v1298 = vunpack.c.h.b16 %v1085
        %v1299 = vunpack.c.l.b16 %v1086
        %v1300 = vunpack.c.h.b16 %v1086
        %v1301 = vpack.c.b16 %v1177, %v1173
        %v1302 = vpack.c.b16 %v1178, %v1174
        %v1303 = vpack.c.b16 %v1179, %v1175
        %v1304 = vpack.c.b16 %v1180, %v1176
        %v1305 = vpack.c.b16 %v1185, %v1181
        %v1306 = vpack.c.b16 %v1186, %v1182
        %v1307 = vpack.c.b16 %v1187, %v1183
        %v1308 = vpack.c.b16 %v1188, %v1184
        %v1309 = vpack.c.b16 %v1193, %v1189
        %v1310 = vpack.c.b16 %v1194, %v1190
        %v1311 = vpack.c.b16 %v1195, %v1191
        %v1312 = vpack.c.b16 %v1196, %v1192
        %v1313 = vpack.c.b16 %v1201, %v1197
        %v1314 = vpack.c.b16 %v1202, %v1198
        %v1315 = vpack.c.b16 %v1203, %v1199
        %v1316 = vpack.c.b16 %v1204, %v1200
        %v1317 = vpack.c.b16 %v1209, %v1205
        %v1318 = vpack.c.b16 %v1210, %v1206
        %v1319 = vpack.c.b16 %v1211, %v1207
        %v1320 = vpack.c.b16 %v1212, %v1208
        %v1321 = vpack.c.b16 %v1217, %v1213
        %v1322 = vpack.c.b16 %v1218, %v1214
        %v1323 = vpack.c.b16 %v1219, %v1215
        %v1324 = vpack.c.b16 %v1220, %v1216
        %v1325 = vpack.c.b16 %v1225, %v1221
        %v1326 = vpack.c.b16 %v1226, %v1222
        %v1327 = vpack.c.b16 %v1227, %v1223
        %v1328 = vpack.c.b16 %v1228, %v1224
        %v1329 = vpack.c.b16 %v1233, %v1229
        %v1330 = vpack.c.b16 %v1234, %v1230
        %v1331 = vpack.c.b16 %v1235, %v1231
        %v1332 = vpack.c.b16 %v1236, %v1232
        %v1333 = vpack.c.b16 %v1241, %v1237
        %v1334 = vpack.c.b16 %v1242, %v1238
        %v1335 = vpack.c.b16 %v1243, %v1239
        %v1336 = vpack.c.b16 %v1244, %v1240
        %v1337 = vpack.c.b16 %v1249, %v1245
        %v1338 = vpack.c.b16 %v1250, %v1246
        %v1339 = vpack.c.b16 %v1251, %v1247
        %v1340 = vpack.c.b16 %v1252, %v1248
        %v1341 = vpack.c.b16 %v1257, %v1253
        %v1342 = vpack.c.b16 %v1258, %v1254
        %v1343 = vpack.c.b16 %v1259, %v1255
        %v1344 = vpack.c.b16 %v1260, %v1256
        %v1345 = vpack.c.b16 %v1265, %v1261
        %v1346 = vpack.c.b16 %v1266, %v1262
        %v1347 = vpack.c.b16 %v1267, %v1263
        %v1348 = vpack.c.b16 %v1268, %v1264
        %v1349 = vpack.c.b16 %v1273, %v1269
        %v1350 = vpack.c.b16 %v1274, %v1270
        %v1351 = vpack.c.b16 %v1275, %v1271
        %v1352 = vpack.c.b16 %v1276, %v1272
        %v1353 = vpack.c.b16 %v1281, %v1277
        %v1354 = vpack.c.b16 %v1282, %v1278
        %v1355 = vpack.c.b16 %v1283, %v1279
        %v1356 = vpack.c.b16 %v1284, %v1280
        %v1357 = vpack.c.b16 %v1289, %v1285
        %v1358 = vpack.c.b16 %v1290, %v1286
        %v1359 = vpack.c.b16 %v1291, %v1287
        %v1360 = vpack.c.b16 %v1292, %v1288
        %v1361 = vpack.c.b16 %v1297, %v1293
        %v1362 = vpack.c.b16 %v1298, %v1294
        %v1363 = vpack.c.b16 %v1299, %v1295
        %v1364 = vpack.c.b16 %v1300, %v1296
        %1429 = vmatprep.subr.bf16.mxu0 %v1302
        %1430 = vmatpush1.bf16.msra.mxu0 %v1301
        %1431 = vmatprep.subr.bf16.mxu0 %v1306
        %1432 = vmatpush1.bf16.msra.mxu0 %v1305
        %1433 = vmatprep.subr.bf16.mxu0 %v1310
        %1434 = vmatpush1.bf16.msra.mxu0 %v1309
        %1435 = vmatprep.subr.bf16.mxu0 %v1314
        %1436 = vmatpush1.bf16.msra.mxu0 %v1313
        %1437 = vmatprep.subr.bf16.mxu0 %v1318
        %1438 = vmatpush1.bf16.msra.mxu0 %v1317
        %1439 = vmatprep.subr.bf16.mxu0 %v1322
        %1440 = vmatpush1.bf16.msra.mxu0 %v1321
        %1441 = vmatprep.subr.bf16.mxu0 %v1326
        %1442 = vmatpush1.bf16.msra.mxu0 %v1325
        %1443 = vmatprep.subr.bf16.mxu0 %v1330
        %1444 = vmatpush1.bf16.msra.mxu0 %v1329
        %1445 = vmatprep.subr.bf16.mxu0 %v1334
        %1446 = vmatpush1.bf16.msra.mxu0 %v1333
        %1447 = vmatprep.subr.bf16.mxu0 %v1338
        %1448 = vmatpush1.bf16.msra.mxu0 %v1337
        %1449 = vmatprep.subr.bf16.mxu0 %v1342
        %1450 = vmatpush1.bf16.msra.mxu0 %v1341
        %1451 = vmatprep.subr.bf16.mxu0 %v1346
        %1452 = vmatpush1.bf16.msra.mxu0 %v1345
        %1453 = vmatprep.subr.bf16.mxu0 %v1350
        %1454 = vmatpush1.bf16.msra.mxu0 %v1349
        %1455 = vmatprep.subr.bf16.mxu0 %v1354
        %1456 = vmatpush1.bf16.msra.mxu0 %v1353
        %1457 = vmatprep.subr.bf16.mxu0 %v1358
        %1458 = vmatpush1.bf16.msra.mxu0 %v1357
        %1459 = vmatprep.subr.bf16.mxu0 %v1362
        %1460 = vmatpush1.bf16.msra.mxu0 %v1361
        %1461 = vmatprep.mubr.bf16.mxu0 %v1008
        %1462 = vmatmul.mubr.bf16.gmra.mrb[0].mxu0 %v1007
        %v1463 = vpop.f32.mrb[0].mxu0
        %v1464 = vadd.f32 %v1092, %v1463
        %v1465 = vpop.f32.mrb[0].mxu0
        %v1466 = vadd.f32 %v1096, %v1465
        %v1467 = vpop.f32.mrb[0].mxu0
        %v1468 = vadd.f32 %v1092, %v1467
        %v1469 = vpop.f32.mrb[0].mxu0
        %v1470 = vadd.f32 %v1096, %v1469
        %1471 = vmatprep.mubr.bf16.mxu0 %v1010
        %1472 = vmatmul.mubr.bf16.gmra.mrb[0].mxu0 %v1009
        %v1473 = vpop.f32.mrb[0].mxu0
        %v1474 = vadd.f32 %v1092, %v1473
        %v1475 = vpop.f32.mrb[0].mxu0
        %v1476 = vadd.f32 %v1096, %v1475
        %v1477 = vpop.f32.mrb[0].mxu0
        %v1478 = vadd.f32 %v1092, %v1477
        %v1479 = vpop.f32.mrb[0].mxu0
        %v1480 = vadd.f32 %v1096, %v1479
        %1481 = vmatprep.mubr.bf16.mxu0 %v1012
        %1482 = vmatmul.mubr.bf16.gmra.mrb[0].mxu0 %v1011
        %v1483 = vpop.f32.mrb[0].mxu0
        %v1484 = vadd.f32 %v1092, %v1483
        %v1485 = vpop.f32.mrb[0].mxu0
        %v1486 = vadd.f32 %v1096, %v1485
        %v1487 = vpop.f32.mrb[0].mxu0
        %v1488 = vadd.f32 %v1092, %v1487
        %v1489 = vpop.f32.mrb[0].mxu0
        %v1490 = vadd.f32 %v1096, %v1489
        %1491 = vmatprep.mubr.bf16.mxu0 %v1014
        %1492 = vmatmul.mubr.bf16.gmra.mrb[0].mxu0 %v1013
        %v1493 = vpop.f32.mrb[0].mxu0
        %v1494 = vadd.f32 %v1092, %v1493
        %v1495 = vpop.f32.mrb[0].mxu0
        %v1496 = vadd.f32 %v1096, %v1495
        %v1497 = vpop.f32.mrb[0].mxu0
        %v1498 = vadd.f32 %v1092, %v1497
        %v1499 = vpop.f32.mrb[0].mxu0
        %v1500 = vadd.f32 %v1096, %v1499
        %1501 = vmatprep.mubr.bf16.mxu0 %v1016
        %1502 = vmatmul.mubr.bf16.gmra.mrb[0].mxu0 %v1015
        %v1503 = vpop.f32.mrb[0].mxu0
        %v1504 = vadd.f32 %v1092, %v1503
        %v1505 = vpop.f32.mrb[0].mxu0
        %v1506 = vadd.f32 %v1096, %v1505
        %v1507 = vpop.f32.mrb[0].mxu0
        %v1508 = vadd.f32 %v1092, %v1507
        %v1509 = vpop.f32.mrb[0].mxu0
        %v1510 = vadd.f32 %v1096, %v1509
        %1511 = vmatprep.mubr.bf16.mxu0 %v1018
        %1512 = vmatmul.mubr.bf16.gmra.mrb[0].mxu0 %v1017
        %v1513 = vpop.f32.mrb[0].mxu0
        %v1514 = vadd.f32 %v1092, %v1513
        %v1515 = vpop.f32.mrb[0].mxu0
        %v1516 = vadd.f32 %v1096, %v1515
        %v1517 = vpop.f32.mrb[0].mxu0
        %v1518 = vadd.f32 %v1092, %v1517
        %v1519 = vpop.f32.mrb[0].mxu0
        %v1520 = vadd.f32 %v1096, %v1519
        %1521 = vmatprep.mubr.bf16.mxu0 %v1020
        %1522 = vmatmul.mubr.bf16.gmra.mrb[0].mxu0 %v1019
        %v1523 = vpop.f32.mrb[0].mxu0
        %v1524 = vadd.f32 %v1092, %v1523
        %v1525 = vpop.f32.mrb[0].mxu0
        %v1526 = vadd.f32 %v1096, %v1525
        %v1527 = vpop.f32.mrb[0].mxu0
        %v1528 = vadd.f32 %v1092, %v1527
        %v1529 = vpop.f32.mrb[0].mxu0
        %v1530 = vadd.f32 %v1096, %v1529
        %1531 = vmatprep.mubr.bf16.mxu0 %v1022
        %1532 = vmatmul.mubr.bf16.gmra.mrb[0].mxu0 %v1021
        %v1533 = vpop.f32.mrb[0].mxu0
        %v1534 = vadd.f32 %v1092, %v1533
        %v1535 = vpop.f32.mrb[0].mxu0
        %v1536 = vadd.f32 %v1096, %v1535
        %v1537 = vpop.f32.mrb[0].mxu0
        %v1538 = vadd.f32 %v1092, %v1537
        %v1539 = vpop.f32.mrb[0].mxu0
        %v1540 = vadd.f32 %v1096, %v1539
        %1541 = vdwg.mxu0
        %1542 = vmatprep.subr.bf16.mxu0 %v1304
        %1543 = vmatpush1.bf16.msra.mxu0 %v1303
        %1544 = vmatprep.subr.bf16.mxu0 %v1308
        %1545 = vmatpush1.bf16.msra.mxu0 %v1307
        %1546 = vmatprep.subr.bf16.mxu0 %v1312
        %1547 = vmatpush1.bf16.msra.mxu0 %v1311
        %1548 = vmatprep.subr.bf16.mxu0 %v1316
        %1549 = vmatpush1.bf16.msra.mxu0 %v1315
        %1550 = vmatprep.subr.bf16.mxu0 %v1320
        %1551 = vmatpush1.bf16.msra.mxu0 %v1319
        %1552 = vmatprep.subr.bf16.mxu0 %v1324
        %1553 = vmatpush1.bf16.msra.mxu0 %v1323
        %1554 = vmatprep.subr.bf16.mxu0 %v1328
        %1555 = vmatpush1.bf16.msra.mxu0 %v1327
        %1556 = vmatprep.subr.bf16.mxu0 %v1332
        %1557 = vmatpush1.bf16.msra.mxu0 %v1331
        %1558 = vmatprep.subr.bf16.mxu0 %v1336
        %1559 = vmatpush1.bf16.msra.mxu0 %v1335
        %1560 = vmatprep.subr.bf16.mxu0 %v1340
        %1561 = vmatpush1.bf16.msra.mxu0 %v1339
        %1562 = vmatprep.subr.bf16.mxu0 %v1344
        %1563 = vmatpush1.bf16.msra.mxu0 %v1343
        %1564 = vmatprep.subr.bf16.mxu0 %v1348
        %1565 = vmatpush1.bf16.msra.mxu0 %v1347
        %1566 = vmatprep.subr.bf16.mxu0 %v1352
        %1567 = vmatpush1.bf16.msra.mxu0 %v1351
        %1568 = vmatprep.subr.bf16.mxu0 %v1356
        %1569 = vmatpush1.bf16.msra.mxu0 %v1355
        %1570 = vmatprep.subr.bf16.mxu0 %v1360
        %1571 = vmatpush1.bf16.msra.mxu0 %v1359
        %1572 = vmatprep.subr.bf16.mxu0 %v1364
        %1573 = vmatpush1.bf16.msra.mxu0 %v1363
        %1574 = vmatprep.mubr.bf16.mxu0 %v1008
        %1575 = vmatmul.mubr.bf16.gmra.mrb[0].mxu0 %v1007
        %v1576 = vpop.f32.mrb[0].mxu0
        %v1577 = vadd.f32 %v1100, %v1576
        %v1578 = vpop.f32.mrb[0].mxu0
        %v1579 = vadd.f32 %v1104, %v1578
        %v1580 = vpop.f32.mrb[0].mxu0
        %v1581 = vadd.f32 %v1100, %v1580
        %v1582 = vpop.f32.mrb[0].mxu0
        %v1583 = vadd.f32 %v1104, %v1582
        %1584 = vmatprep.mubr.bf16.mxu0 %v1010
        %1585 = vmatmul.mubr.bf16.gmra.mrb[0].mxu0 %v1009
        %v1586 = vpop.f32.mrb[0].mxu0
        %v1587 = vadd.f32 %v1100, %v1586
        %v1588 = vpop.f32.mrb[0].mxu0
        %v1589 = vadd.f32 %v1104, %v1588
        %v1590 = vpop.f32.mrb[0].mxu0
        %v1591 = vadd.f32 %v1100, %v1590
        %v1592 = vpop.f32.mrb[0].mxu0
        %v1593 = vadd.f32 %v1104, %v1592
        %1594 = vmatprep.mubr.bf16.mxu0 %v1012
        %1595 = vmatmul.mubr.bf16.gmra.mrb[0].mxu0 %v1011
        %v1596 = vpop.f32.mrb[0].mxu0
        %v1597 = vadd.f32 %v1100, %v1596
        %v1598 = vpop.f32.mrb[0].mxu0
        %v1599 = vadd.f32 %v1104, %v1598
        %v1600 = vpop.f32.mrb[0].mxu0
        %v1601 = vadd.f32 %v1100, %v1600
        %v1602 = vpop.f32.mrb[0].mxu0
        %v1603 = vadd.f32 %v1104, %v1602
        %1604 = vmatprep.mubr.bf16.mxu0 %v1014
        %1605 = vmatmul.mubr.bf16.gmra.mrb[0].mxu0 %v1013
        %v1606 = vpop.f32.mrb[0].mxu0
        %v1607 = vadd.f32 %v1100, %v1606
        %v1608 = vpop.f32.mrb[0].mxu0
        %v1609 = vadd.f32 %v1104, %v1608
        %v1610 = vpop.f32.mrb[0].mxu0
        %v1611 = vadd.f32 %v1100, %v1610
        %v1612 = vpop.f32.mrb[0].mxu0
        %v1613 = vadd.f32 %v1104, %v1612
        %1614 = vmatprep.mubr.bf16.mxu0 %v1016
        %1615 = vmatmul.mubr.bf16.gmra.mrb[0].mxu0 %v1015
        %v1616 = vpop.f32.mrb[0].mxu0
        %v1617 = vadd.f32 %v1100, %v1616
        %v1618 = vpop.f32.mrb[0].mxu0
        %v1619 = vadd.f32 %v1104, %v1618
        %v1620 = vpop.f32.mrb[0].mxu0
        %v1621 = vadd.f32 %v1100, %v1620
        %v1622 = vpop.f32.mrb[0].mxu0
        %v1623 = vadd.f32 %v1104, %v1622
        %1624 = vmatprep.mubr.bf16.mxu0 %v1018
        %1625 = vmatmul.mubr.bf16.gmra.mrb[0].mxu0 %v1017
        %v1626 = vpop.f32.mrb[0].mxu0
        %v1627 = vadd.f32 %v1100, %v1626
        %v1628 = vpop.f32.mrb[0].mxu0
        %v1629 = vadd.f32 %v1104, %v1628
        %v1630 = vpop.f32.mrb[0].mxu0
        %v1631 = vadd.f32 %v1100, %v1630
        %v1632 = vpop.f32.mrb[0].mxu0
        %v1633 = vadd.f32 %v1104, %v1632
        %1634 = vmatprep.mubr.bf16.mxu0 %v1020
        %1635 = vmatmul.mubr.bf16.gmra.mrb[0].mxu0 %v1019
        %v1636 = vpop.f32.mrb[0].mxu0
        %v1637 = vadd.f32 %v1100, %v1636
        %v1638 = vpop.f32.mrb[0].mxu0
        %v1639 = vadd.f32 %v1104, %v1638
        %v1640 = vpop.f32.mrb[0].mxu0
        %v1641 = vadd.f32 %v1100, %v1640
        %v1642 = vpop.f32.mrb[0].mxu0
        %v1643 = vadd.f32 %v1104, %v1642
        %1644 = vmatprep.mubr.bf16.mxu0 %v1022
        %1645 = vmatmul.mubr.bf16.gmra.mrb[0].mxu0 %v1021
        %v1646 = vpop.f32.mrb[0].mxu0
        %v1647 = vadd.f32 %v1100, %v1646
        %v1648 = vpop.f32.mrb[0].mxu0
        %v1649 = vadd.f32 %v1104, %v1648
        %v1650 = vpop.f32.mrb[0].mxu0
        %v1651 = vadd.f32 %v1100, %v1650
        %v1652 = vpop.f32.mrb[0].mxu0
        %v1653 = vadd.f32 %v1104, %v1652
        %1654 = vdwg.mxu0
        %vm1655 = vcmp.gt.f32.partialorder %v1464, 0.0
        %vm1656 = vcmp.gt.f32.partialorder %v1466, 0.0
        %vm1657 = vcmp.gt.f32.partialorder %v1577, 0.0
        %vm1658 = vcmp.gt.f32.partialorder %v1579, 0.0
        %vm1659 = vcmp.gt.f32.partialorder %v1468, 0.0
        %vm1660 = vcmp.gt.f32.partialorder %v1470, 0.0
        %vm1661 = vcmp.gt.f32.partialorder %v1581, 0.0
        %vm1662 = vcmp.gt.f32.partialorder %v1583, 0.0
        %vm1663 = vcmp.gt.f32.partialorder %v1474, 0.0
        %vm1664 = vcmp.gt.f32.partialorder %v1476, 0.0
        %vm1665 = vcmp.gt.f32.partialorder %v1587, 0.0
        %vm1666 = vcmp.gt.f32.partialorder %v1589, 0.0
        %vm1667 = vcmp.gt.f32.partialorder %v1478, 0.0
        %vm1668 = vcmp.gt.f32.partialorder %v1480, 0.0
        %vm1669 = vcmp.gt.f32.partialorder %v1591, 0.0
        %vm1670 = vcmp.gt.f32.partialorder %v1593, 0.0
        %vm1671 = vcmp.gt.f32.partialorder %v1484, 0.0
        %vm1672 = vcmp.gt.f32.partialorder %v1486, 0.0
        %vm1673 = vcmp.gt.f32.partialorder %v1597, 0.0
        %vm1674 = vcmp.gt.f32.partialorder %v1599, 0.0
        %vm1675 = vcmp.gt.f32.partialorder %v1488, 0.0
        %vm1676 = vcmp.gt.f32.partialorder %v1490, 0.0
        %vm1677 = vcmp.gt.f32.partialorder %v1601, 0.0
        %vm1678 = vcmp.gt.f32.partialorder %v1603, 0.0
        %vm1679 = vcmp.gt.f32.partialorder %v1494, 0.0
        %vm1680 = vcmp.gt.f32.partialorder %v1496, 0.0
        %vm1681 = vcmp.gt.f32.partialorder %v1607, 0.0
        %vm1682 = vcmp.gt.f32.partialorder %v1609, 0.0
        %vm1683 = vcmp.gt.f32.partialorder %v1498, 0.0
        %vm1684 = vcmp.gt.f32.partialorder %v1500, 0.0
        %vm1685 = vcmp.gt.f32.partialorder %v1611, 0.0
        %vm1686 = vcmp.gt.f32.partialorder %v1613, 0.0
        %vm1687 = vcmp.gt.f32.partialorder %v1504, 0.0
        %vm1688 = vcmp.gt.f32.partialorder %v1506, 0.0
        %vm1689 = vcmp.gt.f32.partialorder %v1617, 0.0
        %vm1690 = vcmp.gt.f32.partialorder %v1619, 0.0
        %vm1691 = vcmp.gt.f32.partialorder %v1508, 0.0
        %vm1692 = vcmp.gt.f32.partialorder %v1510, 0.0
        %vm1693 = vcmp.gt.f32.partialorder %v1621, 0.0
        %vm1694 = vcmp.gt.f32.partialorder %v1623, 0.0
        %vm1695 = vcmp.gt.f32.partialorder %v1514, 0.0
        %vm1696 = vcmp.gt.f32.partialorder %v1516, 0.0
        %vm1697 = vcmp.gt.f32.partialorder %v1627, 0.0
        %vm1698 = vcmp.gt.f32.partialorder %v1629, 0.0
        %vm1699 = vcmp.gt.f32.partialorder %v1518, 0.0
        %vm1700 = vcmp.gt.f32.partialorder %v1520, 0.0
        %vm1701 = vcmp.gt.f32.partialorder %v1631, 0.0
        %vm1702 = vcmp.gt.f32.partialorder %v1633, 0.0
        %vm1703 = vcmp.gt.f32.partialorder %v1524, 0.0
        %vm1704 = vcmp.gt.f32.partialorder %v1526, 0.0
        %vm1705 = vcmp.gt.f32.partialorder %v1637, 0.0
        %vm1706 = vcmp.gt.f32.partialorder %v1639, 0.0
        %vm1707 = vcmp.gt.f32.partialorder %v1528, 0.0
        %vm1708 = vcmp.gt.f32.partialorder %v1530, 0.0
        %vm1709 = vcmp.gt.f32.partialorder %v1641, 0.0
        %vm1710 = vcmp.gt.f32.partialorder %v1643, 0.0
        %vm1711 = vcmp.gt.f32.partialorder %v1534, 0.0
        %vm1712 = vcmp.gt.f32.partialorder %v1536, 0.0
        %vm1713 = vcmp.gt.f32.partialorder %v1647, 0.0
        %vm1714 = vcmp.gt.f32.partialorder %v1649, 0.0
        %vm1715 = vcmp.gt.f32.partialorder %v1538, 0.0
        %vm1716 = vcmp.gt.f32.partialorder %v1540, 0.0
        %vm1717 = vcmp.gt.f32.partialorder %v1651, 0.0
        %vm1718 = vcmp.gt.f32.partialorder %v1653, 0.0
        %v1719 = vmul.f32 %v1464, 0.01
        %v1720 = vmul.f32 %v1466, 0.01
        %v1721 = vmul.f32 %v1577, 0.01
        %v1722 = vmul.f32 %v1579, 0.01
        %v1723 = vmul.f32 %v1468, 0.01
        %v1724 = vmul.f32 %v1470, 0.01
        %v1725 = vmul.f32 %v1581, 0.01
        %v1726 = vmul.f32 %v1583, 0.01
        %v1727 = vmul.f32 %v1474, 0.01
        %v1728 = vmul.f32 %v1476, 0.01
        %v1729 = vmul.f32 %v1587, 0.01
        %v1730 = vmul.f32 %v1589, 0.01
        %v1731 = vmul.f32 %v1478, 0.01
        %v1732 = vmul.f32 %v1480, 0.01
        %v1733 = vmul.f32 %v1591, 0.01
        %v1734 = vmul.f32 %v1593, 0.01
        %v1735 = vmul.f32 %v1484, 0.01
        %v1736 = vmul.f32 %v1486, 0.01
        %v1737 = vmul.f32 %v1597, 0.01
        %v1738 = vmul.f32 %v1599, 0.01
        %v1739 = vmul.f32 %v1488, 0.01
        %v1740 = vmul.f32 %v1490, 0.01
        %v1741 = vmul.f32 %v1601, 0.01
        %v1742 = vmul.f32 %v1603, 0.01
        %v1743 = vmul.f32 %v1494, 0.01
        %v1744 = vmul.f32 %v1496, 0.01
        %v1745 = vmul.f32 %v1607, 0.01
        %v1746 = vmul.f32 %v1609, 0.01
        %v1747 = vmul.f32 %v1498, 0.01
        %v1748 = vmul.f32 %v1500, 0.01
        %v1749 = vmul.f32 %v1611, 0.01
        %v1750 = vmul.f32 %v1613, 0.01
        %v1751 = vmul.f32 %v1504, 0.01
        %v1752 = vmul.f32 %v1506, 0.01
        %v1753 = vmul.f32 %v1617, 0.01
        %v1754 = vmul.f32 %v1619, 0.01
        %v1755 = vmul.f32 %v1508, 0.01
        %v1756 = vmul.f32 %v1510, 0.01
        %v1757 = vmul.f32 %v1621, 0.01
        %v1758 = vmul.f32 %v1623, 0.01
        %v1759 = vmul.f32 %v1514, 0.01
        %v1760 = vmul.f32 %v1516, 0.01
        %v1761 = vmul.f32 %v1627, 0.01
        %v1762 = vmul.f32 %v1629, 0.01
        %v1763 = vmul.f32 %v1518, 0.01
        %v1764 = vmul.f32 %v1520, 0.01
        %v1765 = vmul.f32 %v1631, 0.01
        %v1766 = vmul.f32 %v1633, 0.01
        %v1767 = vmul.f32 %v1524, 0.01
        %v1768 = vmul.f32 %v1526, 0.01
        %v1769 = vmul.f32 %v1637, 0.01
        %v1770 = vmul.f32 %v1639, 0.01
        %v1771 = vmul.f32 %v1528, 0.01
        %v1772 = vmul.f32 %v1530, 0.01
        %v1773 = vmul.f32 %v1641, 0.01
        %v1774 = vmul.f32 %v1643, 0.01
        %v1775 = vmul.f32 %v1534, 0.01
        %v1776 = vmul.f32 %v1536, 0.01
        %v1777 = vmul.f32 %v1647, 0.01
        %v1778 = vmul.f32 %v1649, 0.01
        %v1779 = vmul.f32 %v1538, 0.01
        %v1780 = vmul.f32 %v1540, 0.01
        %v1781 = vmul.f32 %v1651, 0.01
        %v1782 = vmul.f32 %v1653, 0.01
        %v1783 = vsel %vm1655, %v1464, %v1719
        %v1784 = vsel %vm1656, %v1466, %v1720
        %v1785 = vsel %vm1657, %v1577, %v1721
        %v1786 = vsel %vm1658, %v1579, %v1722
        %v1787 = vsel %vm1659, %v1468, %v1723
        %v1788 = vsel %vm1660, %v1470, %v1724
        %v1789 = vsel %vm1661, %v1581, %v1725
        %v1790 = vsel %vm1662, %v1583, %v1726
        %v1791 = vsel %vm1663, %v1474, %v1727
        %v1792 = vsel %vm1664, %v1476, %v1728
        %v1793 = vsel %vm1665, %v1587, %v1729
        %v1794 = vsel %vm1666, %v1589, %v1730
        %v1795 = vsel %vm1667, %v1478, %v1731
        %v1796 = vsel %vm1668, %v1480, %v1732
        %v1797 = vsel %vm1669, %v1591, %v1733
        %v1798 = vsel %vm1670, %v1593, %v1734
        %v1799 = vsel %vm1671, %v1484, %v1735
        %v1800 = vsel %vm1672, %v1486, %v1736
        %v1801 = vsel %vm1673, %v1597, %v1737
        %v1802 = vsel %vm1674, %v1599, %v1738
        %v1803 = vsel %vm1675, %v1488, %v1739
        %v1804 = vsel %vm1676, %v1490, %v1740
        %v1805 = vsel %vm1677, %v1601, %v1741
        %v1806 = vsel %vm1678, %v1603, %v1742
        %v1807 = vsel %vm1679, %v1494, %v1743
        %v1808 = vsel %vm1680, %v1496, %v1744
        %v1809 = vsel %vm1681, %v1607, %v1745
        %v1810 = vsel %vm1682, %v1609, %v1746
        %v1811 = vsel %vm1683, %v1498, %v1747
        %v1812 = vsel %vm1684, %v1500, %v1748
        %v1813 = vsel %vm1685, %v1611, %v1749
        %v1814 = vsel %vm1686, %v1613, %v1750
        %v1815 = vsel %vm1687, %v1504, %v1751
        %v1816 = vsel %vm1688, %v1506, %v1752
        %v1817 = vsel %vm1689, %v1617, %v1753
        %v1818 = vsel %vm1690, %v1619, %v1754
        %v1819 = vsel %vm1691, %v1508, %v1755
        %v1820 = vsel %vm1692, %v1510, %v1756
        %v1821 = vsel %vm1693, %v1621, %v1757
        %v1822 = vsel %vm1694, %v1623, %v1758
        %v1823 = vsel %vm1695, %v1514, %v1759
        %v1824 = vsel %vm1696, %v1516, %v1760
        %v1825 = vsel %vm1697, %v1627, %v1761
        %v1826 = vsel %vm1698, %v1629, %v1762
        %v1827 = vsel %vm1699, %v1518, %v1763
        %v1828 = vsel %vm1700, %v1520, %v1764
        %v1829 = vsel %vm1701, %v1631, %v1765
        %v1830 = vsel %vm1702, %v1633, %v1766
        %v1831 = vsel %vm1703, %v1524, %v1767
        %v1832 = vsel %vm1704, %v1526, %v1768
        %v1833 = vsel %vm1705, %v1637, %v1769
        %v1834 = vsel %vm1706, %v1639, %v1770
        %v1835 = vsel %vm1707, %v1528, %v1771
        %v1836 = vsel %vm1708, %v1530, %v1772
        %v1837 = vsel %vm1709, %v1641, %v1773
        %v1838 = vsel %vm1710, %v1643, %v1774
        %v1839 = vsel %vm1711, %v1534, %v1775
        %v1840 = vsel %vm1712, %v1536, %v1776
        %v1841 = vsel %vm1713, %v1647, %v1777
        %v1842 = vsel %vm1714, %v1649, %v1778
        %v1843 = vsel %vm1715, %v1538, %v1779
        %v1844 = vsel %vm1716, %v1540, %v1780
        %v1845 = vsel %vm1717, %v1651, %v1781
        %v1846 = vsel %vm1718, %v1653, %v1782
        %v1847 = vlaneseq
        %v1848 = vshrl.u32 %v1847, 7
        %v1849 = vadd.s32 %v1848, 8
        %v1850 = vadd.s32 %v1848, 16
        %v1851 = vld [vmem:[%s362] sm:$0x1]
        %v1852 = vlaneseq
        %v1853 = vshrl.u32 %v1852, 7
        %v1854 = vsub.s32 0, %v1853
        %v1855 = vrot.slane %v1851, %v1854
        %vm1856 = vcmp.eq.s32.totalorder %v1848, %v1855
        %vm1857 = vcmp.eq.s32.totalorder %v1849, %v1855
        %vm1858 = vcmp.eq.s32.totalorder %v1850, %v1855
        %v1859 = vsel %vm1856, 1, 0
        %v1860 = vsel %vm1857, 1, 0
        %v1861 = vsel %vm1858, 1, 0
        %v1862 = vcvt.s32.f32 %v1859
        %v1863 = vcvt.s32.f32 %v1860
        %v1864 = vcvt.s32.f32 %v1861
        %v1865 = vld [vmem:[#allocation2] sm:$0xff]
        %v1866 = vld [vmem:[#allocation2 + $0x8] sm:$0xff]
        %v1867 = vld [vmem:[#allocation2 + $0x10] sm:$0xff]
        %v1868 = vld [vmem:[#allocation2 + $0x18] sm:$0xff]
        %v1869 = vld [vmem:[#allocation2 + $0x20] sm:$0xff]
        %v1870 = vld [vmem:[#allocation2 + $0x28] sm:$0xff]
        %v1871 = vld [vmem:[#allocation2 + $0x30] sm:$0xff]
        %v1872 = vld [vmem:[#allocation2 + $0x38] sm:$0xff]
        %v1873 = vld [vmem:[#allocation2 + $0x40] sm:$0xff]
        %v1874 = vld [vmem:[#allocation2 + $0x48] sm:$0xff]
        %v1875 = vld [vmem:[#allocation2 + $0x50] sm:$0xff]
        %v1876 = vld [vmem:[#allocation2 + $0x58] sm:$0xff]
        %1877 = vmatprep.subr.mxu0 %v1784
        %1878 = vmatpush1.msra.mxu0 %v1783
        %1879 = vmatprep.subr.mxu0 %v1788
        %1880 = vmatpush1.msra.mxu0 %v1787
        %1881 = vmatprep.subr.mxu0 %v1792
        %1882 = vmatpush1.msra.mxu0 %v1791
        %1883 = vmatprep.subr.mxu0 %v1796
        %1884 = vmatpush1.msra.mxu0 %v1795
        %1885 = vmatprep.subr.mxu0 %v1800
        %1886 = vmatpush1.msra.mxu0 %v1799
        %1887 = vmatprep.subr.mxu0 %v1804
        %1888 = vmatpush1.msra.mxu0 %v1803
        %1889 = vmatprep.subr.mxu0 %v1808
        %1890 = vmatpush1.msra.mxu0 %v1807
        %1891 = vmatprep.subr.mxu0 %v1812
        %1892 = vmatpush1.msra.mxu0 %v1811
        %1893 = vmatprep.subr.mxu0 %v1816
        %1894 = vmatpush1.msra.mxu0 %v1815
        %1895 = vmatprep.subr.mxu0 %v1820
        %1896 = vmatpush1.msra.mxu0 %v1819
        %1897 = vmatprep.subr.mxu0 %v1824
        %1898 = vmatpush1.msra.mxu0 %v1823
        %1899 = vmatprep.subr.mxu0 %v1828
        %1900 = vmatpush1.msra.mxu0 %v1827
        %1901 = vmatprep.subr.mxu0 %v1832
        %1902 = vmatpush1.msra.mxu0 %v1831
        %1903 = vmatprep.subr.mxu0 %v1836
        %1904 = vmatpush1.msra.mxu0 %v1835
        %1905 = vmatprep.subr.mxu0 %v1840
        %1906 = vmatpush1.msra.mxu0 %v1839
        %1907 = vmatprep.subr.mxu0 %v1844
        %1908 = vmatpush1.msra.mxu0 %v1843
        %1909 = vmatprep.subr.mxu0 0.0
        %1910 = vmatpush1.msra.mxu0 0.0
        %1911 = vmatprep.subr.mxu0 0.0
        %1912 = vmatpush1.msra.mxu0 0.0
        %1913 = vmatprep.subr.mxu0 0.0
        %1914 = vmatpush1.msra.mxu0 0.0
        %1915 = vmatprep.subr.mxu0 0.0
        %1916 = vmatpush1.msra.mxu0 0.0
        %1917 = vmatprep.subr.mxu0 0.0
        %1918 = vmatpush1.msra.mxu0 0.0
        %1919 = vmatprep.subr.mxu0 0.0
        %1920 = vmatpush1.msra.mxu0 0.0
        %1921 = vmatprep.subr.mxu0 0.0
        %1922 = vmatpush1.msra.mxu0 0.0
        %1923 = vmatprep.subr.mxu0 0.0
        %1924 = vmatpush1.msra.mxu0 0.0
        %1925 = vmatprep.subr.mxu0 0.0
        %1926 = vmatpush1.msra.mxu0 0.0
        %1927 = vmatprep.subr.mxu0 0.0
        %1928 = vmatpush1.msra.mxu0 0.0
        %1929 = vmatprep.subr.mxu0 0.0
        %1930 = vmatpush1.msra.mxu0 0.0
        %1931 = vmatprep.subr.mxu0 0.0
        %1932 = vmatpush1.msra.mxu0 0.0
        %1933 = vmatprep.subr.mxu0 0.0
        %1934 = vmatpush1.msra.mxu0 0.0
        %1935 = vmatprep.subr.mxu0 0.0
        %1936 = vmatpush1.msra.mxu0 0.0
        %1937 = vmatprep.subr.mxu0 0.0
        %1938 = vmatpush1.msra.mxu0 0.0
        %1939 = vmatprep.subr.mxu0 0.0
        %1940 = vmatpush1.msra.mxu0 0.0
        %1941 = vmatprep.mubr.f32.mxu0 0.0
        %1942 = vmatmul.mubr.f32.gmra.mrb[0].mxu0 %v1862
        %v1943 = vpop.f32.mrb[0].mxu0
        %v1944 = vadd.f32 0.0, %v1943
        %v1945 = vpop.f32.mrb[0].mxu0
        %v1946 = vadd.f32 0.0, %v1945
        %1947 = vmatprep.mubr.f32.mxu0 0.0
        %1948 = vmatmul.mubr.f32.gmra.mrb[0].mxu0 %v1863
        %v1949 = vpop.f32.mrb[0].mxu0
        %v1950 = vadd.f32 0.0, %v1949
        %v1951 = vpop.f32.mrb[0].mxu0
        %v1952 = vadd.f32 0.0, %v1951
        %1953 = vmatprep.mubr.f32.mxu0 0.0
        %1954 = vmatmul.mubr.f32.gmra.mrb[0].mxu0 %v1864
        %v1955 = vpop.f32.mrb[0].mxu0
        %v1956 = vadd.f32 0.0, %v1955
        %v1957 = vpop.f32.mrb[0].mxu0
        %v1958 = vadd.f32 0.0, %v1957
        %1959 = vdwg.mxu0
        %1960 = vmatprep.subr.mxu0 %v1786
        %1961 = vmatpush1.msra.mxu0 %v1785
        %1962 = vmatprep.subr.mxu0 %v1790
        %1963 = vmatpush1.msra.mxu0 %v1789
        %1964 = vmatprep.subr.mxu0 %v1794
        %1965 = vmatpush1.msra.mxu0 %v1793
        %1966 = vmatprep.subr.mxu0 %v1798
        %1967 = vmatpush1.msra.mxu0 %v1797
        %1968 = vmatprep.subr.mxu0 %v1802
        %1969 = vmatpush1.msra.mxu0 %v1801
        %1970 = vmatprep.subr.mxu0 %v1806
        %1971 = vmatpush1.msra.mxu0 %v1805
        %1972 = vmatprep.subr.mxu0 %v1810
        %1973 = vmatpush1.msra.mxu0 %v1809
        %1974 = vmatprep.subr.mxu0 %v1814
        %1975 = vmatpush1.msra.mxu0 %v1813
        %1976 = vmatprep.subr.mxu0 %v1818
        %1977 = vmatpush1.msra.mxu0 %v1817
        %1978 = vmatprep.subr.mxu0 %v1822
        %1979 = vmatpush1.msra.mxu0 %v1821
        %1980 = vmatprep.subr.mxu0 %v1826
        %1981 = vmatpush1.msra.mxu0 %v1825
        %1982 = vmatprep.subr.mxu0 %v1830
        %1983 = vmatpush1.msra.mxu0 %v1829
        %1984 = vmatprep.subr.mxu0 %v1834
        %1985 = vmatpush1.msra.mxu0 %v1833
        %1986 = vmatprep.subr.mxu0 %v1838
        %1987 = vmatpush1.msra.mxu0 %v1837
        %1988 = vmatprep.subr.mxu0 %v1842
        %1989 = vmatpush1.msra.mxu0 %v1841
        %1990 = vmatprep.subr.mxu0 %v1846
        %1991 = vmatpush1.msra.mxu0 %v1845
        %1992 = vmatprep.subr.mxu0 0.0
        %1993 = vmatpush1.msra.mxu0 0.0
        %1994 = vmatprep.subr.mxu0 0.0
        %1995 = vmatpush1.msra.mxu0 0.0
        %1996 = vmatprep.subr.mxu0 0.0
        %1997 = vmatpush1.msra.mxu0 0.0
        %1998 = vmatprep.subr.mxu0 0.0
        %1999 = vmatpush1.msra.mxu0 0.0
        %2000 = vmatprep.subr.mxu0 0.0
        %2001 = vmatpush1.msra.mxu0 0.0
        %2002 = vmatprep.subr.mxu0 0.0
        %2003 = vmatpush1.msra.mxu0 0.0
        %2004 = vmatprep.subr.mxu0 0.0
        %2005 = vmatpush1.msra.mxu0 0.0
        %2006 = vmatprep.subr.mxu0 0.0
        %2007 = vmatpush1.msra.mxu0 0.0
        %2008 = vmatprep.subr.mxu0 0.0
        %2009 = vmatpush1.msra.mxu0 0.0
        %2010 = vmatprep.subr.mxu0 0.0
        %2011 = vmatpush1.msra.mxu0 0.0
        %2012 = vmatprep.subr.mxu0 0.0
        %2013 = vmatpush1.msra.mxu0 0.0
        %2014 = vmatprep.subr.mxu0 0.0
        %2015 = vmatpush1.msra.mxu0 0.0
        %2016 = vmatprep.subr.mxu0 0.0
        %2017 = vmatpush1.msra.mxu0 0.0
        %2018 = vmatprep.subr.mxu0 0.0
        %2019 = vmatpush1.msra.mxu0 0.0
        %2020 = vmatprep.subr.mxu0 0.0
        %2021 = vmatpush1.msra.mxu0 0.0
        %2022 = vmatprep.subr.mxu0 0.0
        %2023 = vmatpush1.msra.mxu0 0.0
        %2024 = vmatprep.mubr.f32.mxu0 0.0
        %2025 = vmatmul.mubr.f32.gmra.mrb[0].mxu0 %v1862
        %v2026 = vpop.f32.mrb[0].mxu0
        %v2027 = vadd.f32 0.0, %v2026
        %v2028 = vpop.f32.mrb[0].mxu0
        %v2029 = vadd.f32 0.0, %v2028
        %2030 = vmatprep.mubr.f32.mxu0 0.0
        %2031 = vmatmul.mubr.f32.gmra.mrb[0].mxu0 %v1863
        %v2032 = vpop.f32.mrb[0].mxu0
        %v2033 = vadd.f32 0.0, %v2032
        %v2034 = vpop.f32.mrb[0].mxu0
        %v2035 = vadd.f32 0.0, %v2034
        %2036 = vmatprep.mubr.f32.mxu0 0.0
        %2037 = vmatmul.mubr.f32.gmra.mrb[0].mxu0 %v1864
        %v2038 = vpop.f32.mrb[0].mxu0
        %v2039 = vadd.f32 0.0, %v2038
        %v2040 = vpop.f32.mrb[0].mxu0
        %v2041 = vadd.f32 0.0, %v2040
        %2042 = vdwg.mxu0
        %v2043 = vadd.f32 %v1865, %v1944
        %v2044 = vadd.f32 %v1866, %v1946
        %v2045 = vadd.f32 %v1867, %v2027
        %v2046 = vadd.f32 %v1868, %v2029
        %v2047 = vadd.f32 %v1869, %v1950
        %v2048 = vadd.f32 %v1870, %v1952
        %v2049 = vadd.f32 %v1871, %v2033
        %v2050 = vadd.f32 %v1872, %v2035
        %v2051 = vadd.f32 %v1873, %v1956
        %v2052 = vadd.f32 %v1874, %v1958
        %v2053 = vadd.f32 %v1875, %v2039
        %v2054 = vadd.f32 %v1876, %v2041
        %2055 = vst [vmem:[#allocation2] sm:$0xff] %v2043
        %2056 = vst [vmem:[#allocation2 + $0x8] sm:$0xff] %v2044
        %2057 = vst [vmem:[#allocation2 + $0x10] sm:$0xff] %v2045
        %2058 = vst [vmem:[#allocation2 + $0x18] sm:$0xff] %v2046
        %2059 = vst [vmem:[#allocation2 + $0x20] sm:$0xff] %v2047
        %2060 = vst [vmem:[#allocation2 + $0x28] sm:$0xff] %v2048
        %2061 = vst [vmem:[#allocation2 + $0x30] sm:$0xff] %v2049
        %2062 = vst [vmem:[#allocation2 + $0x38] sm:$0xff] %v2050
        %2063 = vst [vmem:[#allocation2 + $0x40] sm:$0xff] %v2051
        %2064 = vst [vmem:[#allocation2 + $0x48] sm:$0xff] %v2052
        %2065 = vst [vmem:[#allocation2 + $0x50] sm:$0xff] %v2053
        %2066 = vst [vmem:[#allocation2 + $0x58] sm:$0xff] %v2054
        %p2067 = scmp.eq.s32.totalorder %s21, 1
        // Predicated region
        $region69: #{mddnet_forward.2} parent=51 // pred_check
          %p2068 = pneg %p2067
        $region70: #{mddnet_forward.2} parent=51 // pred_check_branch
          %2070 = sbr.rel (%p2068) target = $region72
        $region71: #{mddnet_forward.2} parent=51 // pred_region
          %v2071 = vld [vmem:[#allocation2] sm:$0xff]
          %v2072 = vld [vmem:[#allocation2 + $0x8] sm:$0xff]
          %v2073 = vld [vmem:[#allocation2 + $0x10] sm:$0xff]
          %v2074 = vld [vmem:[#allocation2 + $0x18] sm:$0xff]
          %v2075 = vld [vmem:[#allocation2 + $0x20] sm:$0xff]
          %v2076 = vld [vmem:[#allocation2 + $0x28] sm:$0xff]
          %v2077 = vld [vmem:[#allocation2 + $0x30] sm:$0xff]
          %v2078 = vld [vmem:[#allocation2 + $0x38] sm:$0xff]
          %v2079 = vld [vmem:[#allocation2 + $0x40] sm:$0xff]
          %v2080 = vld [vmem:[#allocation2 + $0x48] sm:$0xff]
          %v2081 = vld [vmem:[#allocation2 + $0x50] sm:$0xff]
          %v2082 = vld [vmem:[#allocation2 + $0x58] sm:$0xff]
          %v2083 = vpack.c.bf16 %v2075, %v2071
          %v2084 = vpack.c.bf16 %v2076, %v2072
          %v2085 = vpack.c.bf16 %v2077, %v2073
          %v2086 = vpack.c.bf16 %v2078, %v2074
          %v2087 = vpack.c.bf16 %v2079, %v2079
          %v2088 = vpack.c.bf16 %v2080, %v2080
          %v2089 = vpack.c.bf16 %v2081, %v2081
          %v2090 = vpack.c.bf16 %v2082, %v2082
          %v2099 = vunpack.c.l.b16 %v2083
          %v2100 = vunpack.c.l.b16 %v2084
          %v2101 = vunpack.c.l.b16 %v2085
          %v2102 = vunpack.c.l.b16 %v2086
          %v2103 = vunpack.c.h.b16 %v2083
          %v2104 = vunpack.c.h.b16 %v2084
          %v2105 = vunpack.c.h.b16 %v2085
          %v2106 = vunpack.c.h.b16 %v2086
          %v2107 = vunpack.c.l.b16 %v2087
          %v2108 = vunpack.c.l.b16 %v2088
          %v2109 = vunpack.c.l.b16 %v2089
          %v2110 = vunpack.c.l.b16 %v2090
          %v2111 = vpack.c.b16 %v2100, %v2099
          %v2112 = vpack.c.b16 %v2102, %v2101
          %v2113 = vpack.c.b16 %v2104, %v2103
          %v2114 = vpack.c.b16 %v2106, %v2105
          %v2115 = vpack.c.b16 %v2108, %v2107
          %v2116 = vpack.c.b16 %v2110, %v2109
          %2123 = vst [vmem:[%s8] sm:$0xff] %v2111
          %2124 = vst [vmem:[%s8 + $0x8] sm:$0xff] %v2112
          %2125 = vst [vmem:[%s8 + $0x10] sm:$0xff] %v2113
          %2126 = vst [vmem:[%s8 + $0x18] sm:$0xff] %v2114
          %2127 = vst [vmem:[%s8 + $0x20] sm:$0xff] %v2115
          %2128 = vst [vmem:[%s8 + $0x28] sm:$0xff] %v2116
        $region72: #{mddnet_forward.2} parent=51 // pred_fallthru
          _
        // Predicated region
        $region73: #{mddnet_forward.2} parent=51 // pred_check
          %p2129 = pneg %p217
        $region74: #{mddnet_forward.2} parent=51 // pred_check_branch
          %2131 = sbr.rel (%p2129) target = $region76
        $region75: #{mddnet_forward.2} parent=51 // pred_region
          _
        $region76: #{mddnet_forward.2} parent=51 // pred_fallthru
          _
        // Predicated region
        $region77: #{mddnet_forward.2} parent=51 // pred_check
          %p2132 = pneg %p217
        $region78: #{mddnet_forward.2} parent=51 // pred_check_branch
          %2134 = sbr.rel (%p2132) target = $region80
        $region79: #{mddnet_forward.2} parent=51 // pred_region
          _
        $region80: #{mddnet_forward.2} parent=51 // pred_fallthru
          _
      $region52: #{mddnet_forward.2} parent=5 // pred_fallthru
        _
      %p2135 = scmp.le.s32.totalorder 2, %s16
      // Predicated region
      $region81: #{mddnet_forward.2} parent=5 // pred_check
        %p2136 = pneg %p2135
      $region82: #{mddnet_forward.2} parent=5 // pred_check_branch
        %2138 = sbr.rel (%p2136) target = $region84
      $region83: #{mddnet_forward.2} parent=5 // pred_region
        %s2139 = ssub.s32 %s16, 2
      $region84: #{mddnet_forward.2} parent=5 // pred_fallthru
        _
    $region6: #{mddnet_forward.2} parent=1 // loop_footer
      %s20 = sadd.s32 1, %s16
    $region7: #{mddnet_forward.2} parent=1 // loop_footer_branch
      %15 = sbr.rel target = $region3
    $region8: #{mddnet_forward.2} parent=1 // loop_exit
      _
    %2140 = vsyncpa [#allocation4], 1
    %s2141 = scalar_lea.sflag [#allocation4], 1
    %2142 = vsyncpa %s2141, 1
    %2143 = vsyncpa [#allocation6], 1

// kernel: mddnet_forward.3
$region0: #{mddnet_forward.3}
  #allocation0 [shape = 'u32[]', space=smem, size = 0x4, offset = 0x4, fixed_abs, tag = 'smem constant byte address 0x4 - core index']
  #allocation1 [shape = 'u32[144,128]{1,0:T(1,128)}', space=vmem, size = 0x12000, scoped, tag = 'internal scratch']
  %s0 = inlined_call_operand.vmem [shape: f32[24,32], index: 0, kind: input, shape index: {}]
  %s1 = inlined_call_operand.vmem [shape: bf16[24,512], index: 1, kind: input, shape index: {}]
  %s2 = inlined_call_operand.vmem [shape: bf16[32,1024], index: 2, kind: input, shape index: {}]
  %s3 = inlined_call_operand.vmem [shape: bf16[512,1024], index: 3, kind: input, shape index: {}]
  %s4 = inlined_call_operand.vmem [shape: f32[1,1024], index: 4, kind: input, shape index: {}]
  %s5 = inlined_call_operand.vmem [shape: bf16[1024,32], index: 5, kind: input, shape index: {}]
  %s6 = inlined_call_operand.vmem [shape: f32[1,32], index: 6, kind: input, shape index: {}]
  %s7 = inlined_call_operand.vmem [shape: f32[1,32], index: 7, kind: input, shape index: {}]
  %s8 = inlined_call_operand.vmem [shape: f32[1,32], index: 8, kind: input, shape index: {}]
  %s9 = inlined_call_operand.hbm [shape: f32[24,32], index: 9, kind: output, shape index: {}]
  %s10 = sld [smem:[#allocation0]]
  $region69: #{mddnet_forward.3} parent=0
    _
  %s12 = ssub.s32 1, %s10
  %s13 = scalar_select 0, %s12, %s10
  $region1: #{mddnet_forward.3} parent=0
    #allocation2 [shape = 'u8[8192]{0}', space=vmem, size = 0x2000, scoped, tag = 'output window, operand 0']
    #allocation3 [shape = 's32[2]{0}', space=sflag, size = 0x8, scoped, tag = 'scoped memory for mddnet_forward.3']
    %14 = vsyncpa [#allocation3], 0
    %s15 = scalar_lea.sflag [#allocation3], 1
    %16 = vsyncpa %s15, 0
    loop: start=0, step=1, limit=5
    $region2: #{mddnet_forward.3} parent=1 // loop_pre_header
      _
    $region3: #{mddnet_forward.3} parent=1 // loop_header
      %s18 = sphi 0, %s22
      %p19 = scmp.ge.s32.totalorder %s18, 5
      %s28 = sphi 0, %s30
      %s31 = sphi 0, %s28
      %s32 = sphi 0, %s31
      %s48 = sphi 0, %s32
      %s54 = sphi 0, %s56
      %s57 = sphi 0, %s54
      %s58 = sphi 0, %s57
      %s74 = sphi 0, %s58
      %s78 = sphi 0, %s78
      %s80 = sphi 0, %s78
      %s81 = sphi 0, %s80
      %s95 = sphi 0, %s81
      %s99 = sphi 0, %s99
      %s101 = sphi 0, %s99
      %s102 = sphi 0, %s101
      %s116 = sphi 0, %s102
      %s120 = sphi 0, %s120
      %s122 = sphi 0, %s120
      %s123 = sphi 0, %s122
      %s137 = sphi 0, %s123
      %s141 = sphi 0, %s141
      %s143 = sphi 0, %s141
      %s144 = sphi 0, %s143
      %s158 = sphi 0, %s144
      %s162 = sphi 0, %s162
      %s164 = sphi 0, %s162
      %s165 = sphi 0, %s164
      %s179 = sphi 0, %s165
      %s183 = sphi 0, %s183
      %s185 = sphi 0, %s183
      %s186 = sphi 0, %s185
      %s200 = sphi 0, %s186
      %s204 = sphi 0, %s204
      %s206 = sphi 0, %s204
      %s207 = sphi 0, %s206
      %s221 = sphi 0, %s207
      %s227 = sphi 0, %s229
      %s230 = sphi 0, %s227
      %s231 = sphi 0, %s230
      %s247 = sphi 0, %s231
    $region4: #{mddnet_forward.3} parent=1 // loop_header_branch
      %21 = sbr.rel (%p19) target = $region8
    $region5: #{mddnet_forward.3} parent=1 // loop_body
      %s23 = ssub.s32 %s18, 1
      %s24 = ssub.s32 %s18, 2
      %s25 = sadd.s32 %s18, 1
      %s26 = ssub.s32 %s18, %s25
      %p27 = scmp.eq.s32.totalorder %s26, 0
      %s29 = sadd.s32 %s28, 1
      %s30 = scalar_select %p27, %s28, %s29
      %p33 = pneg %p27
      %p34 = scmp.eq.s32.totalorder %s18, 2
      %p35 = por %p33, %p34
      %p36 = scmp.ne.s32.totalorder %s28, %s31
      %p37 = scmp.eq.s32.totalorder %s18, 0
      %p38 = por %p36, %p37
      %p39 = scmp.ne.s32.totalorder %s28, %s31
      %p40 = scmp.eq.s32.totalorder %s23, 2
      %p41 = por %p39, %p40
      %p42 = scmp.ne.s32.totalorder %s31, %s32
      %p43 = scmp.eq.s32.totalorder %s23, 0
      %p44 = por %p42, %p43
      %p45 = scmp.ne.s32.totalorder %s31, %s32
      %p46 = scmp.eq.s32.totalorder %s24, 2
      %p47 = por %p45, %p46
      %p49 = scmp.ne.s32.totalorder %s32, %s48
      %p50 = scmp.eq.s32.totalorder %s24, 0
      %p51 = por %p49, %p50
      %s52 = ssub.s32 %s18, %s25
      %p53 = scmp.eq.s32.totalorder %s52, 0
      %s55 = sadd.s32 %s54, 1
      %s56 = scalar_select %p53, %s54, %s55
      %p59 = pneg %p53
      %p60 = scmp.eq.s32.totalorder %s18, 2
      %p61 = por %p59, %p60
      %p62 = scmp.ne.s32.totalorder %s54, %s57
      %p63 = scmp.eq.s32.totalorder %s18, 0
      %p64 = por %p62, %p63
      %p65 = scmp.ne.s32.totalorder %s54, %s57
      %p66 = scmp.eq.s32.totalorder %s23, 2
      %p67 = por %p65, %p66
      %p68 = scmp.ne.s32.totalorder %s57, %s58
      %p69 = scmp.eq.s32.totalorder %s23, 0
      %p70 = por %p68, %p69
      %p71 = scmp.ne.s32.totalorder %s57, %s58
      %p72 = scmp.eq.s32.totalorder %s24, 2
      %p73 = por %p71, %p72
      %p75 = scmp.ne.s32.totalorder %s58, %s74
      %p76 = scmp.eq.s32.totalorder %s24, 0
      %p77 = por %p75, %p76
      %s79 = sadd.s32 %s78, 1
      %p82 = scmp.eq.s32.totalorder %s18, 2
      %p83 = scmp.ne.s32.totalorder %s78, %s80
      %p84 = scmp.eq.s32.totalorder %s18, 0
      %p85 = por %p83, %p84
      %p86 = scmp.ne.s32.totalorder %s78, %s80
      %p87 = scmp.eq.s32.totalorder %s23, 2
      %p88 = por %p86, %p87
      %p89 = scmp.ne.s32.totalorder %s80, %s81
      %p90 = scmp.eq.s32.totalorder %s23, 0
      %p91 = por %p89, %p90
      %p92 = scmp.ne.s32.totalorder %s80, %s81
      %p93 = scmp.eq.s32.totalorder %s24, 2
      %p94 = por %p92, %p93
      %p96 = scmp.ne.s32.totalorder %s81, %s95
      %p97 = scmp.eq.s32.totalorder %s24, 0
      %p98 = por %p96, %p97
      %s100 = sadd.s32 %s99, 1
      %p103 = scmp.eq.s32.totalorder %s18, 2
      %p104 = scmp.ne.s32.totalorder %s99, %s101
      %p105 = scmp.eq.s32.totalorder %s18, 0
      %p106 = por %p104, %p105
      %p107 = scmp.ne.s32.totalorder %s99, %s101
      %p108 = scmp.eq.s32.totalorder %s23, 2
      %p109 = por %p107, %p108
      %p110 = scmp.ne.s32.totalorder %s101, %s102
      %p111 = scmp.eq.s32.totalorder %s23, 0
      %p112 = por %p110, %p111
      %p113 = scmp.ne.s32.totalorder %s101, %s102
      %p114 = scmp.eq.s32.totalorder %s24, 2
      %p115 = por %p113, %p114
      %p117 = scmp.ne.s32.totalorder %s102, %s116
      %p118 = scmp.eq.s32.totalorder %s24, 0
      %p119 = por %p117, %p118
      %s121 = sadd.s32 %s120, 1
      %p124 = scmp.eq.s32.totalorder %s18, 2
      %p125 = scmp.ne.s32.totalorder %s120, %s122
      %p126 = scmp.eq.s32.totalorder %s18, 0
      %p127 = por %p125, %p126
      %p128 = scmp.ne.s32.totalorder %s120, %s122
      %p129 = scmp.eq.s32.totalorder %s23, 2
      %p130 = por %p128, %p129
      %p131 = scmp.ne.s32.totalorder %s122, %s123
      %p132 = scmp.eq.s32.totalorder %s23, 0
      %p133 = por %p131, %p132
      %p134 = scmp.ne.s32.totalorder %s122, %s123
      %p135 = scmp.eq.s32.totalorder %s24, 2
      %p136 = por %p134, %p135
      %p138 = scmp.ne.s32.totalorder %s123, %s137
      %p139 = scmp.eq.s32.totalorder %s24, 0
      %p140 = por %p138, %p139
      %s142 = sadd.s32 %s141, 1
      %p145 = scmp.eq.s32.totalorder %s18, 2
      %p146 = scmp.ne.s32.totalorder %s141, %s143
      %p147 = scmp.eq.s32.totalorder %s18, 0
      %p148 = por %p146, %p147
      %p149 = scmp.ne.s32.totalorder %s141, %s143
      %p150 = scmp.eq.s32.totalorder %s23, 2
      %p151 = por %p149, %p150
      %p152 = scmp.ne.s32.totalorder %s143, %s144
      %p153 = scmp.eq.s32.totalorder %s23, 0
      %p154 = por %p152, %p153
      %p155 = scmp.ne.s32.totalorder %s143, %s144
      %p156 = scmp.eq.s32.totalorder %s24, 2
      %p157 = por %p155, %p156
      %p159 = scmp.ne.s32.totalorder %s144, %s158
      %p160 = scmp.eq.s32.totalorder %s24, 0
      %p161 = por %p159, %p160
      %s163 = sadd.s32 %s162, 1
      %p166 = scmp.eq.s32.totalorder %s18, 2
      %p167 = scmp.ne.s32.totalorder %s162, %s164
      %p168 = scmp.eq.s32.totalorder %s18, 0
      %p169 = por %p167, %p168
      %p170 = scmp.ne.s32.totalorder %s162, %s164
      %p171 = scmp.eq.s32.totalorder %s23, 2
      %p172 = por %p170, %p171
      %p173 = scmp.ne.s32.totalorder %s164, %s165
      %p174 = scmp.eq.s32.totalorder %s23, 0
      %p175 = por %p173, %p174
      %p176 = scmp.ne.s32.totalorder %s164, %s165
      %p177 = scmp.eq.s32.totalorder %s24, 2
      %p178 = por %p176, %p177
      %p180 = scmp.ne.s32.totalorder %s165, %s179
      %p181 = scmp.eq.s32.totalorder %s24, 0
      %p182 = por %p180, %p181
      %s184 = sadd.s32 %s183, 1
      %p187 = scmp.eq.s32.totalorder %s18, 2
      %p188 = scmp.ne.s32.totalorder %s183, %s185
      %p189 = scmp.eq.s32.totalorder %s18, 0
      %p190 = por %p188, %p189
      %p191 = scmp.ne.s32.totalorder %s183, %s185
      %p192 = scmp.eq.s32.totalorder %s23, 2
      %p193 = por %p191, %p192
      %p194 = scmp.ne.s32.totalorder %s185, %s186
      %p195 = scmp.eq.s32.totalorder %s23, 0
      %p196 = por %p194, %p195
      %p197 = scmp.ne.s32.totalorder %s185, %s186
      %p198 = scmp.eq.s32.totalorder %s24, 2
      %p199 = por %p197, %p198
      %p201 = scmp.ne.s32.totalorder %s186, %s200
      %p202 = scmp.eq.s32.totalorder %s24, 0
      %p203 = por %p201, %p202
      %s205 = sadd.s32 %s204, 1
      %p208 = scmp.eq.s32.totalorder %s18, 2
      %p209 = scmp.ne.s32.totalorder %s204, %s206
      %p210 = scmp.eq.s32.totalorder %s18, 0
      %p211 = por %p209, %p210
      %p212 = scmp.ne.s32.totalorder %s204, %s206
      %p213 = scmp.eq.s32.totalorder %s23, 2
      %p214 = por %p212, %p213
      %p215 = scmp.ne.s32.totalorder %s206, %s207
      %p216 = scmp.eq.s32.totalorder %s23, 0
      %p217 = por %p215, %p216
      %p218 = scmp.ne.s32.totalorder %s206, %s207
      %p219 = scmp.eq.s32.totalorder %s24, 2
      %p220 = por %p218, %p219
      %p222 = scmp.ne.s32.totalorder %s207, %s221
      %p223 = scmp.eq.s32.totalorder %s24, 0
      %p224 = por %p222, %p223
      %s225 = ssub.s32 %s18, %s25
      %p226 = scmp.eq.s32.totalorder %s225, 0
      %s228 = sadd.s32 %s227, 1
      %s229 = scalar_select %p226, %s227, %s228
      %p232 = pneg %p226
      %p233 = scmp.eq.s32.totalorder %s18, 2
      %p234 = por %p232, %p233
      %p235 = scmp.ne.s32.totalorder %s227, %s230
      %p236 = scmp.eq.s32.totalorder %s18, 0
      %p237 = por %p235, %p236
      %p238 = scmp.ne.s32.totalorder %s227, %s230
      %p239 = scmp.eq.s32.totalorder %s23, 2
      %p240 = por %p238, %p239
      %p241 = scmp.ne.s32.totalorder %s230, %s231
      %p242 = scmp.eq.s32.totalorder %s23, 0
      %p243 = por %p241, %p242
      %p244 = scmp.ne.s32.totalorder %s230, %s231
      %p245 = scmp.eq.s32.totalorder %s24, 2
      %p246 = por %p244, %p245
      %p248 = scmp.ne.s32.totalorder %s231, %s247
      %p249 = scmp.eq.s32.totalorder %s24, 0
      %p250 = por %p248, %p249
      %p251 = scmp.le.s32.totalorder 1, %s18
      %p252 = scmp.lt.s32.totalorder %s18, 4
      %p253 = pnand %p251, %p252
      %p254 = pneg %p253
      // Predicated region
      $region9: #{mddnet_forward.3} parent=5 // pred_check
        _
      $region10: #{mddnet_forward.3} parent=5 // pred_check_branch
        %256 = sbr.rel (%p253) target = $region12
      $region11: #{mddnet_forward.3} parent=5 // pred_region
        %s257 = ssub.s32 %s18, 1
        // Predicated region
        $region13: #{mddnet_forward.3} parent=11 // pred_check
          %p258 = pneg %p91
        $region14: #{mddnet_forward.3} parent=11 // pred_check_branch
          %260 = sbr.rel (%p258) target = $region16
        $region15: #{mddnet_forward.3} parent=11 // pred_region
          _
        $region16: #{mddnet_forward.3} parent=11 // pred_fallthru
          _
        // Predicated region
        $region17: #{mddnet_forward.3} parent=11 // pred_check
          %p261 = pneg %p112
        $region18: #{mddnet_forward.3} parent=11 // pred_check_branch
          %263 = sbr.rel (%p261) target = $region20
        $region19: #{mddnet_forward.3} parent=11 // pred_region
          _
        $region20: #{mddnet_forward.3} parent=11 // pred_fallthru
          _
        // Predicated region
        $region21: #{mddnet_forward.3} parent=11 // pred_check
          %p264 = pneg %p133
        $region22: #{mddnet_forward.3} parent=11 // pred_check_branch
          %266 = sbr.rel (%p264) target = $region24
        $region23: #{mddnet_forward.3} parent=11 // pred_region
          _
        $region24: #{mddnet_forward.3} parent=11 // pred_fallthru
          _
        // Predicated region
        $region25: #{mddnet_forward.3} parent=11 // pred_check
          %p267 = pneg %p154
        $region26: #{mddnet_forward.3} parent=11 // pred_check_branch
          %269 = sbr.rel (%p267) target = $region28
        $region27: #{mddnet_forward.3} parent=11 // pred_region
          _
        $region28: #{mddnet_forward.3} parent=11 // pred_fallthru
          _
        // Predicated region
        $region29: #{mddnet_forward.3} parent=11 // pred_check
          %p270 = pneg %p175
        $region30: #{mddnet_forward.3} parent=11 // pred_check_branch
          %272 = sbr.rel (%p270) target = $region32
        $region31: #{mddnet_forward.3} parent=11 // pred_region
          _
        $region32: #{mddnet_forward.3} parent=11 // pred_fallthru
          _
        // Predicated region
        $region33: #{mddnet_forward.3} parent=11 // pred_check
          %p273 = pneg %p196
        $region34: #{mddnet_forward.3} parent=11 // pred_check_branch
          %275 = sbr.rel (%p273) target = $region36
        $region35: #{mddnet_forward.3} parent=11 // pred_region
          _
        $region36: #{mddnet_forward.3} parent=11 // pred_fallthru
          _
        // Predicated region
        $region37: #{mddnet_forward.3} parent=11 // pred_check
          %p276 = pneg %p217
        $region38: #{mddnet_forward.3} parent=11 // pred_check_branch
          %278 = sbr.rel (%p276) target = $region40
        $region39: #{mddnet_forward.3} parent=11 // pred_region
          _
        $region40: #{mddnet_forward.3} parent=11 // pred_fallthru
          _
      $region12: #{mddnet_forward.3} parent=5 // pred_fallthru
        _
      %p279 = scmp.lt.s32.totalorder %s18, 3
      // Predicated region
      $region41: #{mddnet_forward.3} parent=5 // pred_check
        %p280 = pneg %p279
      $region42: #{mddnet_forward.3} parent=5 // pred_check_branch
        %282 = sbr.rel (%p280) target = $region44
      $region43: #{mddnet_forward.3} parent=5 // pred_region
        // Predicated region
        $region45: #{mddnet_forward.3} parent=43 // pred_check
          %p283 = pneg %p38
        $region46: #{mddnet_forward.3} parent=43 // pred_check_branch
          %285 = sbr.rel (%p283) target = $region48
        $region47: #{mddnet_forward.3} parent=43 // pred_region
          %p286 = scmp.lt.s32.totalorder %s18, 2
          %s287 = scalar_select %p286, %s18, 2
          %s288 = smul.addr %s287, 8
          %s289 = scalar_lea.vmem %s0, %s288
        $region48: #{mddnet_forward.3} parent=43 // pred_fallthru
          _
        // Predicated region
        $region49: #{mddnet_forward.3} parent=43 // pred_check
          %p290 = pneg %p64
        $region50: #{mddnet_forward.3} parent=43 // pred_check_branch
          %292 = sbr.rel (%p290) target = $region52
        $region51: #{mddnet_forward.3} parent=43 // pred_region
          %p293 = scmp.lt.s32.totalorder %s18, 2
          %s294 = scalar_select %p293, %s18, 2
          %s295 = smul.addr %s294, 4
          %s296 = smul.addr %s295, 4
          %s297 = scalar_lea.vmem %s1, %s296
        $region52: #{mddnet_forward.3} parent=43 // pred_fallthru
          _
      $region44: #{mddnet_forward.3} parent=5 // pred_fallthru
        _
      %p298 = scmp.le.s32.totalorder 1, %s18
      %p299 = scmp.lt.s32.totalorder %s18, 4
      %p300 = pnand %p298, %p299
      %p301 = pneg %p300
      // Predicated region
      $region53: #{mddnet_forward.3} parent=5 // pred_check
        _
      $region54: #{mddnet_forward.3} parent=5 // pred_check_branch
        %303 = sbr.rel (%p300) target = $region56
      $region55: #{mddnet_forward.3} parent=5 // pred_region
        %s304 = ssub.s32 %s18, 1
        %p305 = scmp.lt.s32.totalorder %s23, 2
        %s306 = scalar_select %p305, %s23, 2
        %s307 = smul.addr %s306, 8
        %s308 = scalar_lea.vmem %s0, %s307
        %p309 = pneg %p44
        %p310 = pneg %p41
        %p311 = scmp.lt.s32.totalorder %s23, 2
        %s312 = scalar_select %p311, %s23, 2
        %s313 = smul.addr %s312, 4
        %s314 = smul.addr %s313, 4
        %s315 = scalar_lea.vmem %s1, %s314
        %p316 = pneg %p70
        %p317 = pneg %p67
        %p318 = pneg %p91
        %p319 = pneg %p88
        %p320 = pneg %p112
        %p321 = pneg %p109
        %p322 = pneg %p133
        %p323 = pneg %p130
        %p324 = pneg %p154
        %p325 = pneg %p151
        %p326 = pneg %p175
        %p327 = pneg %p172
        %p328 = pneg %p196
        %p329 = pneg %p193
        %p330 = pneg %p217
        %p331 = pneg %p214
        %p332 = pneg %p243
        %p333 = pneg %p240
        %s334 = sand.u32 %s230, 1
        %s335 = scalar_lea.sflag [#allocation3], %s334
        %s336 = sand.u32 %s230, 1
        %s337 = smul.addr %s336, 8
        %s338 = scalar_lea.vmem [#allocation2], %s337
        %p339 = scmp.lt.s32.totalorder %s23, 2
        %s340 = scalar_select %p339, %s23, 2
        %s341 = smul.addr %s340, 8
        %s342 = scalar_lea.vmem %s0, %s341
        %p343 = scmp.lt.s32.totalorder %s23, 2
        %s344 = scalar_select %p343, %s23, 2
        %s345 = smul.addr %s344, 4
        %s346 = smul.addr %s345, 4
        %s347 = scalar_lea.vmem %s1, %s346
        %v349 = vld [vmem:[%s342] sm:$0xff]
        %v350 = vpack.c.bf16 %v349, %v349
        %v351 = vld [vmem:[%s2] sm:$0xff]
        %v352 = vld [vmem:[%s2 + $0x8] sm:$0xff]
        %v353 = vld [vmem:[%s2 + $0x10] sm:$0xff]
        %v354 = vld [vmem:[%s2 + $0x18] sm:$0xff]
        %v355 = vld [vmem:[%s2 + $0x20] sm:$0xff]
        %v356 = vld [vmem:[%s2 + $0x28] sm:$0xff]
        %v357 = vld [vmem:[%s2 + $0x30] sm:$0xff]
        %v358 = vld [vmem:[%s2 + $0x38] sm:$0xff]
        %v359 = vld [vmem:[%s2 + $0x40] sm:$0xff]
        %v360 = vld [vmem:[%s2 + $0x48] sm:$0xff]
        %v361 = vld [vmem:[%s2 + $0x50] sm:$0xff]
        %v362 = vld [vmem:[%s2 + $0x58] sm:$0xff]
        %v363 = vld [vmem:[%s2 + $0x60] sm:$0xff]
        %v364 = vld [vmem:[%s2 + $0x68] sm:$0xff]
        %v365 = vld [vmem:[%s2 + $0x70] sm:$0xff]
        %v366 = vld [vmem:[%s2 + $0x78] sm:$0xff]
        %v367 = vld [vmem:[%s347] sm:$0xff]
        %v368 = vld [vmem:[%s347 + $0x8] sm:$0xff]
        %v369 = vld [vmem:[%s3] sm:$0xff]
        %v370 = vld [vmem:[%s3 + $0x8] sm:$0xff]
        %v371 = vld [vmem:[%s3 + $0x10] sm:$0xff]
        %v372 = vld [vmem:[%s3 + $0x18] sm:$0xff]
        %v373 = vld [vmem:[%s3 + $0x20] sm:$0xff]
        %v374 = vld [vmem:[%s3 + $0x28] sm:$0xff]
        %v375 = vld [vmem:[%s3 + $0x30] sm:$0xff]
        %v376 = vld [vmem:[%s3 + $0x38] sm:$0xff]
        %v377 = vld [vmem:[%s3 + $0x40] sm:$0xff]
        %v378 = vld [vmem:[%s3 + $0x48] sm:$0xff]
        %v379 = vld [vmem:[%s3 + $0x50] sm:$0xff]
        %v380 = vld [vmem:[%s3 + $0x58] sm:$0xff]
        %v381 = vld [vmem:[%s3 + $0x60] sm:$0xff]
        %v382 = vld [vmem:[%s3 + $0x68] sm:$0xff]
        %v383 = vld [vmem:[%s3 + $0x70] sm:$0xff]
        %v384 = vld [vmem:[%s3 + $0x78] sm:$0xff]
        %v385 = vld [vmem:[%s3 + $0x80] sm:$0xff]
        %v386 = vld [vmem:[%s3 + $0x88] sm:$0xff]
        %v387 = vld [vmem:[%s3 + $0x90] sm:$0xff]
        %v388 = vld [vmem:[%s3 + $0x98] sm:$0xff]
        %v389 = vld [vmem:[%s3 + $0xa0] sm:$0xff]
        %v390 = vld [vmem:[%s3 + $0xa8] sm:$0xff]
        %v391 = vld [vmem:[%s3 + $0xb0] sm:$0xff]
        %v392 = vld [vmem:[%s3 + $0xb8] sm:$0xff]
        %v393 = vld [vmem:[%s3 + $0xc0] sm:$0xff]
        %v394 = vld [vmem:[%s3 + $0xc8] sm:$0xff]
        %v395 = vld [vmem:[%s3 + $0xd0] sm:$0xff]
        %v396 = vld [vmem:[%s3 + $0xd8] sm:$0xff]
        %v397 = vld [vmem:[%s3 + $0xe0] sm:$0xff]
        %v398 = vld [vmem:[%s3 + $0xe8] sm:$0xff]
        %v399 = vld [vmem:[%s3 + $0xf0] sm:$0xff]
        %v400 = vld [vmem:[%s3 + $0xf8] sm:$0xff]
        %v401 = vld [vmem:[%s3 + $0x100] sm:$0xff]
        %v402 = vld [vmem:[%s3 + $0x108] sm:$0xff]
        %v403 = vld [vmem:[%s3 + $0x110] sm:$0xff]
        %v404 = vld [vmem:[%s3 + $0x118] sm:$0xff]
        %v405 = vld [vmem:[%s3 + $0x120] sm:$0xff]
        %v406 = vld [vmem:[%s3 + $0x128] sm:$0xff]
        %v407 = vld [vmem:[%s3 + $0x130] sm:$0xff]
        %v408 = vld [vmem:[%s3 + $0x138] sm:$0xff]
        %v409 = vld [vmem:[%s3 + $0x140] sm:$0xff]
        %v410 = vld [vmem:[%s3 + $0x148] sm:$0xff]
        %v411 = vld [vmem:[%s3 + $0x150] sm:$0xff]
        %v412 = vld [vmem:[%s3 + $0x158] sm:$0xff]
        %v413 = vld [vmem:[%s3 + $0x160] sm:$0xff]
        %v414 = vld [vmem:[%s3 + $0x168] sm:$0xff]
        %v415 = vld [vmem:[%s3 + $0x170] sm:$0xff]
        %v416 = vld [vmem:[%s3 + $0x178] sm:$0xff]
        %v417 = vld [vmem:[%s3 + $0x180] sm:$0xff]
        %v418 = vld [vmem:[%s3 + $0x188] sm:$0xff]
        %v419 = vld [vmem:[%s3 + $0x190] sm:$0xff]
        %v420 = vld [vmem:[%s3 + $0x198] sm:$0xff]
        %v421 = vld [vmem:[%s3 + $0x1a0] sm:$0xff]
        %v422 = vld [vmem:[%s3 + $0x1a8] sm:$0xff]
        %v423 = vld [vmem:[%s3 + $0x1b0] sm:$0xff]
        %v424 = vld [vmem:[%s3 + $0x1b8] sm:$0xff]
        %v425 = vld [vmem:[%s3 + $0x1c0] sm:$0xff]
        %v426 = vld [vmem:[%s3 + $0x1c8] sm:$0xff]
        %v427 = vld [vmem:[%s3 + $0x1d0] sm:$0xff]
        %v428 = vld [vmem:[%s3 + $0x1d8] sm:$0xff]
        %v429 = vld [vmem:[%s3 + $0x1e0] sm:$0xff]
        %v430 = vld [vmem:[%s3 + $0x1e8] sm:$0xff]
        %v431 = vld [vmem:[%s3 + $0x1f0] sm:$0xff]
        %v432 = vld [vmem:[%s3 + $0x1f8] sm:$0xff]
        %v433 = vld [vmem:[%s3 + $0x200] sm:$0xff]
        %v434 = vld [vmem:[%s3 + $0x208] sm:$0xff]
        %v435 = vld [vmem:[%s3 + $0x210] sm:$0xff]
        %v436 = vld [vmem:[%s3 + $0x218] sm:$0xff]
        %v437 = vld [vmem:[%s3 + $0x220] sm:$0xff]
        %v438 = vld [vmem:[%s3 + $0x228] sm:$0xff]
        %v439 = vld [vmem:[%s3 + $0x230] sm:$0xff]
        %v440 = vld [vmem:[%s3 + $0x238] sm:$0xff]
        %v441 = vld [vmem:[%s3 + $0x240] sm:$0xff]
        %v442 = vld [vmem:[%s3 + $0x248] sm:$0xff]
        %v443 = vld [vmem:[%s3 + $0x250] sm:$0xff]
        %v444 = vld [vmem:[%s3 + $0x258] sm:$0xff]
        %v445 = vld [vmem:[%s3 + $0x260] sm:$0xff]
        %v446 = vld [vmem:[%s3 + $0x268] sm:$0xff]
        %v447 = vld [vmem:[%s3 + $0x270] sm:$0xff]
        %v448 = vld [vmem:[%s3 + $0x278] sm:$0xff]
        %v449 = vld [vmem:[%s3 + $0x280] sm:$0xff]
        %v450 = vld [vmem:[%s3 + $0x288] sm:$0xff]
        %v451 = vld [vmem:[%s3 + $0x290] sm:$0xff]
        %v452 = vld [vmem:[%s3 + $0x298] sm:$0xff]
        %v453 = vld [vmem:[%s3 + $0x2a0] sm:$0xff]
        %v454 = vld [vmem:[%s3 + $0x2a8] sm:$0xff]
        %v455 = vld [vmem:[%s3 + $0x2b0] sm:$0xff]
        %v456 = vld [vmem:[%s3 + $0x2b8] sm:$0xff]
        %v457 = vld [vmem:[%s3 + $0x2c0] sm:$0xff]
        %v458 = vld [vmem:[%s3 + $0x2c8] sm:$0xff]
        %v459 = vld [vmem:[%s3 + $0x2d0] sm:$0xff]
        %v460 = vld [vmem:[%s3 + $0x2d8] sm:$0xff]
        %v461 = vld [vmem:[%s3 + $0x2e0] sm:$0xff]
        %v462 = vld [vmem:[%s3 + $0x2e8] sm:$0xff]
        %v463 = vld [vmem:[%s3 + $0x2f0] sm:$0xff]
        %v464 = vld [vmem:[%s3 + $0x2f8] sm:$0xff]
        %v465 = vld [vmem:[%s3 + $0x300] sm:$0xff]
        %v466 = vld [vmem:[%s3 + $0x308] sm:$0xff]
        %v467 = vld [vmem:[%s3 + $0x310] sm:$0xff]
        %v468 = vld [vmem:[%s3 + $0x318] sm:$0xff]
        %v469 = vld [vmem:[%s3 + $0x320] sm:$0xff]
        %v470 = vld [vmem:[%s3 + $0x328] sm:$0xff]
        %v471 = vld [vmem:[%s3 + $0x330] sm:$0xff]
        %v472 = vld [vmem:[%s3 + $0x338] sm:$0xff]
        %v473 = vld [vmem:[%s3 + $0x340] sm:$0xff]
        %v474 = vld [vmem:[%s3 + $0x348] sm:$0xff]
        %v475 = vld [vmem:[%s3 + $0x350] sm:$0xff]
        %v476 = vld [vmem:[%s3 + $0x358] sm:$0xff]
        %v477 = vld [vmem:[%s3 + $0x360] sm:$0xff]
        %v478 = vld [vmem:[%s3 + $0x368] sm:$0xff]
        %v479 = vld [vmem:[%s3 + $0x370] sm:$0xff]
        %v480 = vld [vmem:[%s3 + $0x378] sm:$0xff]
        %v481 = vld [vmem:[%s3 + $0x380] sm:$0xff]
        %v482 = vld [vmem:[%s3 + $0x388] sm:$0xff]
        %v483 = vld [vmem:[%s3 + $0x390] sm:$0xff]
        %v484 = vld [vmem:[%s3 + $0x398] sm:$0xff]
        %v485 = vld [vmem:[%s3 + $0x3a0] sm:$0xff]
        %v486 = vld [vmem:[%s3 + $0x3a8] sm:$0xff]
        %v487 = vld [vmem:[%s3 + $0x3b0] sm:$0xff]
        %v488 = vld [vmem:[%s3 + $0x3b8] sm:$0xff]
        %v489 = vld [vmem:[%s3 + $0x3c0] sm:$0xff]
        %v490 = vld [vmem:[%s3 + $0x3c8] sm:$0xff]
        %v491 = vld [vmem:[%s3 + $0x3d0] sm:$0xff]
        %v492 = vld [vmem:[%s3 + $0x3d8] sm:$0xff]
        %v493 = vld [vmem:[%s3 + $0x3e0] sm:$0xff]
        %v494 = vld [vmem:[%s3 + $0x3e8] sm:$0xff]
        %v495 = vld [vmem:[%s3 + $0x3f0] sm:$0xff]
        %v496 = vld [vmem:[%s3 + $0x3f8] sm:$0xff]
        %v497 = vld [vmem:[%s3 + $0x400] sm:$0xff]
        %v498 = vld [vmem:[%s3 + $0x408] sm:$0xff]
        %v499 = vld [vmem:[%s3 + $0x410] sm:$0xff]
        %v500 = vld [vmem:[%s3 + $0x418] sm:$0xff]
        %v501 = vld [vmem:[%s3 + $0x420] sm:$0xff]
        %v502 = vld [vmem:[%s3 + $0x428] sm:$0xff]
        %v503 = vld [vmem:[%s3 + $0x430] sm:$0xff]
        %v504 = vld [vmem:[%s3 + $0x438] sm:$0xff]
        %v505 = vld [vmem:[%s3 + $0x440] sm:$0xff]
        %v506 = vld [vmem:[%s3 + $0x448] sm:$0xff]
        %v507 = vld [vmem:[%s3 + $0x450] sm:$0xff]
        %v508 = vld [vmem:[%s3 + $0x458] sm:$0xff]
        %v509 = vld [vmem:[%s3 + $0x460] sm:$0xff]
        %v510 = vld [vmem:[%s3 + $0x468] sm:$0xff]
        %v511 = vld [vmem:[%s3 + $0x470] sm:$0xff]
        %v512 = vld [vmem:[%s3 + $0x478] sm:$0xff]
        %v513 = vld [vmem:[%s3 + $0x480] sm:$0xff]
        %v514 = vld [vmem:[%s3 + $0x488] sm:$0xff]
        %v515 = vld [vmem:[%s3 + $0x490] sm:$0xff]
        %v516 = vld [vmem:[%s3 + $0x498] sm:$0xff]
        %v517 = vld [vmem:[%s3 + $0x4a0] sm:$0xff]
        %v518 = vld [vmem:[%s3 + $0x4a8] sm:$0xff]
        %v519 = vld [vmem:[%s3 + $0x4b0] sm:$0xff]
        %v520 = vld [vmem:[%s3 + $0x4b8] sm:$0xff]
        %v521 = vld [vmem:[%s3 + $0x4c0] sm:$0xff]
        %v522 = vld [vmem:[%s3 + $0x4c8] sm:$0xff]
        %v523 = vld [vmem:[%s3 + $0x4d0] sm:$0xff]
        %v524 = vld [vmem:[%s3 + $0x4d8] sm:$0xff]
        %v525 = vld [vmem:[%s3 + $0x4e0] sm:$0xff]
        %v526 = vld [vmem:[%s3 + $0x4e8] sm:$0xff]
        %v527 = vld [vmem:[%s3 + $0x4f0] sm:$0xff]
        %v528 = vld [vmem:[%s3 + $0x4f8] sm:$0xff]
        %v529 = vld [vmem:[%s3 + $0x500] sm:$0xff]
        %v530 = vld [vmem:[%s3 + $0x508] sm:$0xff]
        %v531 = vld [vmem:[%s3 + $0x510] sm:$0xff]
        %v532 = vld [vmem:[%s3 + $0x518] sm:$0xff]
        %v533 = vld [vmem:[%s3 + $0x520] sm:$0xff]
        %v534 = vld [vmem:[%s3 + $0x528] sm:$0xff]
        %v535 = vld [vmem:[%s3 + $0x530] sm:$0xff]
        %v536 = vld [vmem:[%s3 + $0x538] sm:$0xff]
        %v537 = vld [vmem:[%s3 + $0x540] sm:$0xff]
        %v538 = vld [vmem:[%s3 + $0x548] sm:$0xff]
        %v539 = vld [vmem:[%s3 + $0x550] sm:$0xff]
        %v540 = vld [vmem:[%s3 + $0x558] sm:$0xff]
        %v541 = vld [vmem:[%s3 + $0x560] sm:$0xff]
        %v542 = vld [vmem:[%s3 + $0x568] sm:$0xff]
        %v543 = vld [vmem:[%s3 + $0x570] sm:$0xff]
        %v544 = vld [vmem:[%s3 + $0x578] sm:$0xff]
        %v545 = vld [vmem:[%s3 + $0x580] sm:$0xff]
        %v546 = vld [vmem:[%s3 + $0x588] sm:$0xff]
        %v547 = vld [vmem:[%s3 + $0x590] sm:$0xff]
        %v548 = vld [vmem:[%s3 + $0x598] sm:$0xff]
        %v549 = vld [vmem:[%s3 + $0x5a0] sm:$0xff]
        %v550 = vld [vmem:[%s3 + $0x5a8] sm:$0xff]
        %v551 = vld [vmem:[%s3 + $0x5b0] sm:$0xff]
        %v552 = vld [vmem:[%s3 + $0x5b8] sm:$0xff]
        %v553 = vld [vmem:[%s3 + $0x5c0] sm:$0xff]
        %v554 = vld [vmem:[%s3 + $0x5c8] sm:$0xff]
        %v555 = vld [vmem:[%s3 + $0x5d0] sm:$0xff]
        %v556 = vld [vmem:[%s3 + $0x5d8] sm:$0xff]
        %v557 = vld [vmem:[%s3 + $0x5e0] sm:$0xff]
        %v558 = vld [vmem:[%s3 + $0x5e8] sm:$0xff]
        %v559 = vld [vmem:[%s3 + $0x5f0] sm:$0xff]
        %v560 = vld [vmem:[%s3 + $0x5f8] sm:$0xff]
        %v561 = vld [vmem:[%s3 + $0x600] sm:$0xff]
        %v562 = vld [vmem:[%s3 + $0x608] sm:$0xff]
        %v563 = vld [vmem:[%s3 + $0x610] sm:$0xff]
        %v564 = vld [vmem:[%s3 + $0x618] sm:$0xff]
        %v565 = vld [vmem:[%s3 + $0x620] sm:$0xff]
        %v566 = vld [vmem:[%s3 + $0x628] sm:$0xff]
        %v567 = vld [vmem:[%s3 + $0x630] sm:$0xff]
        %v568 = vld [vmem:[%s3 + $0x638] sm:$0xff]
        %v569 = vld [vmem:[%s3 + $0x640] sm:$0xff]
        %v570 = vld [vmem:[%s3 + $0x648] sm:$0xff]
        %v571 = vld [vmem:[%s3 + $0x650] sm:$0xff]
        %v572 = vld [vmem:[%s3 + $0x658] sm:$0xff]
        %v573 = vld [vmem:[%s3 + $0x660] sm:$0xff]
        %v574 = vld [vmem:[%s3 + $0x668] sm:$0xff]
        %v575 = vld [vmem:[%s3 + $0x670] sm:$0xff]
        %v576 = vld [vmem:[%s3 + $0x678] sm:$0xff]
        %v577 = vld [vmem:[%s3 + $0x680] sm:$0xff]
        %v578 = vld [vmem:[%s3 + $0x688] sm:$0xff]
        %v579 = vld [vmem:[%s3 + $0x690] sm:$0xff]
        %v580 = vld [vmem:[%s3 + $0x698] sm:$0xff]
        %v581 = vld [vmem:[%s3 + $0x6a0] sm:$0xff]
        %v582 = vld [vmem:[%s3 + $0x6a8] sm:$0xff]
        %v583 = vld [vmem:[%s3 + $0x6b0] sm:$0xff]
        %v584 = vld [vmem:[%s3 + $0x6b8] sm:$0xff]
        %v585 = vld [vmem:[%s3 + $0x6c0] sm:$0xff]
        %v586 = vld [vmem:[%s3 + $0x6c8] sm:$0xff]
        %v587 = vld [vmem:[%s3 + $0x6d0] sm:$0xff]
        %v588 = vld [vmem:[%s3 + $0x6d8] sm:$0xff]
        %v589 = vld [vmem:[%s3 + $0x6e0] sm:$0xff]
        %v590 = vld [vmem:[%s3 + $0x6e8] sm:$0xff]
        %v591 = vld [vmem:[%s3 + $0x6f0] sm:$0xff]
        %v592 = vld [vmem:[%s3 + $0x6f8] sm:$0xff]
        %v593 = vld [vmem:[%s3 + $0x700] sm:$0xff]
        %v594 = vld [vmem:[%s3 + $0x708] sm:$0xff]
        %v595 = vld [vmem:[%s3 + $0x710] sm:$0xff]
        %v596 = vld [vmem:[%s3 + $0x718] sm:$0xff]
        %v597 = vld [vmem:[%s3 + $0x720] sm:$0xff]
        %v598 = vld [vmem:[%s3 + $0x728] sm:$0xff]
        %v599 = vld [vmem:[%s3 + $0x730] sm:$0xff]
        %v600 = vld [vmem:[%s3 + $0x738] sm:$0xff]
        %v601 = vld [vmem:[%s3 + $0x740] sm:$0xff]
        %v602 = vld [vmem:[%s3 + $0x748] sm:$0xff]
        %v603 = vld [vmem:[%s3 + $0x750] sm:$0xff]
        %v604 = vld [vmem:[%s3 + $0x758] sm:$0xff]
        %v605 = vld [vmem:[%s3 + $0x760] sm:$0xff]
        %v606 = vld [vmem:[%s3 + $0x768] sm:$0xff]
        %v607 = vld [vmem:[%s3 + $0x770] sm:$0xff]
        %v608 = vld [vmem:[%s3 + $0x778] sm:$0xff]
        %v609 = vld [vmem:[%s3 + $0x780] sm:$0xff]
        %v610 = vld [vmem:[%s3 + $0x788] sm:$0xff]
        %v611 = vld [vmem:[%s3 + $0x790] sm:$0xff]
        %v612 = vld [vmem:[%s3 + $0x798] sm:$0xff]
        %v613 = vld [vmem:[%s3 + $0x7a0] sm:$0xff]
        %v614 = vld [vmem:[%s3 + $0x7a8] sm:$0xff]
        %v615 = vld [vmem:[%s3 + $0x7b0] sm:$0xff]
        %v616 = vld [vmem:[%s3 + $0x7b8] sm:$0xff]
        %v617 = vld [vmem:[%s3 + $0x7c0] sm:$0xff]
        %v618 = vld [vmem:[%s3 + $0x7c8] sm:$0xff]
        %v619 = vld [vmem:[%s3 + $0x7d0] sm:$0xff]
        %v620 = vld [vmem:[%s3 + $0x7d8] sm:$0xff]
        %v621 = vld [vmem:[%s3 + $0x7e0] sm:$0xff]
        %v622 = vld [vmem:[%s3 + $0x7e8] sm:$0xff]
        %v623 = vld [vmem:[%s3 + $0x7f0] sm:$0xff]
        %v624 = vld [vmem:[%s3 + $0x7f8] sm:$0xff]
        %v627 = vunpack.c.l.b16 %v367
        %v628 = vunpack.c.h.b16 %v367
        %v629 = vunpack.c.l.b16 %v368
        %v630 = vunpack.c.h.b16 %v368
        %v631 = vpack.c.b16 %v627, %v627
        %v632 = vpack.c.b16 %v628, %v628
        %v633 = vpack.c.b16 %v629, %v629
        %v634 = vpack.c.b16 %v630, %v630
        %v895 = vunpack.c.l.b16 %v369
        %v896 = vunpack.c.h.b16 %v369
        %v897 = vunpack.c.l.b16 %v370
        %v898 = vunpack.c.h.b16 %v370
        %v899 = vunpack.c.l.b16 %v371
        %v900 = vunpack.c.h.b16 %v371
        %v901 = vunpack.c.l.b16 %v372
        %v902 = vunpack.c.h.b16 %v372
        %v903 = vunpack.c.l.b16 %v373
        %v904 = vunpack.c.h.b16 %v373
        %v905 = vunpack.c.l.b16 %v374
        %v906 = vunpack.c.h.b16 %v374
        %v907 = vunpack.c.l.b16 %v375
        %v908 = vunpack.c.h.b16 %v375
        %v909 = vunpack.c.l.b16 %v376
        %v910 = vunpack.c.h.b16 %v376
        %v911 = vunpack.c.l.b16 %v377
        %v912 = vunpack.c.h.b16 %v377
        %v913 = vunpack.c.l.b16 %v378
        %v914 = vunpack.c.h.b16 %v378
        %v915 = vunpack.c.l.b16 %v379
        %v916 = vunpack.c.h.b16 %v379
        %v917 = vunpack.c.l.b16 %v380
        %v918 = vunpack.c.h.b16 %v380
        %v919 = vunpack.c.l.b16 %v381
        %v920 = vunpack.c.h.b16 %v381
        %v921 = vunpack.c.l.b16 %v382
        %v922 = vunpack.c.h.b16 %v382
        %v923 = vunpack.c.l.b16 %v383
        %v924 = vunpack.c.h.b16 %v383
        %v925 = vunpack.c.l.b16 %v384
        %v926 = vunpack.c.h.b16 %v384
        %v927 = vunpack.c.l.b16 %v385
        %v928 = vunpack.c.h.b16 %v385
        %v929 = vunpack.c.l.b16 %v386
        %v930 = vunpack.c.h.b16 %v386
        %v931 = vunpack.c.l.b16 %v387
        %v932 = vunpack.c.h.b16 %v387
        %v933 = vunpack.c.l.b16 %v388
        %v934 = vunpack.c.h.b16 %v388
        %v935 = vunpack.c.l.b16 %v389
        %v936 = vunpack.c.h.b16 %v389
        %v937 = vunpack.c.l.b16 %v390
        %v938 = vunpack.c.h.b16 %v390
        %v939 = vunpack.c.l.b16 %v391
        %v940 = vunpack.c.h.b16 %v391
        %v941 = vunpack.c.l.b16 %v392
        %v942 = vunpack.c.h.b16 %v392
        %v943 = vunpack.c.l.b16 %v393
        %v944 = vunpack.c.h.b16 %v393
        %v945 = vunpack.c.l.b16 %v394
        %v946 = vunpack.c.h.b16 %v394
        %v947 = vunpack.c.l.b16 %v395
        %v948 = vunpack.c.h.b16 %v395
        %v949 = vunpack.c.l.b16 %v396
        %v950 = vunpack.c.h.b16 %v396
        %v951 = vunpack.c.l.b16 %v397
        %v952 = vunpack.c.h.b16 %v397
        %v953 = vunpack.c.l.b16 %v398
        %v954 = vunpack.c.h.b16 %v398
        %v955 = vunpack.c.l.b16 %v399
        %v956 = vunpack.c.h.b16 %v399
        %v957 = vunpack.c.l.b16 %v400
        %v958 = vunpack.c.h.b16 %v400
        %v959 = vunpack.c.l.b16 %v401
        %v960 = vunpack.c.h.b16 %v401
        %v961 = vunpack.c.l.b16 %v402
        %v962 = vunpack.c.h.b16 %v402
        %v963 = vunpack.c.l.b16 %v403
        %v964 = vunpack.c.h.b16 %v403
        %v965 = vunpack.c.l.b16 %v404
        %v966 = vunpack.c.h.b16 %v404
        %v967 = vunpack.c.l.b16 %v405
        %v968 = vunpack.c.h.b16 %v405
        %v969 = vunpack.c.l.b16 %v406
        %v970 = vunpack.c.h.b16 %v406
        %v971 = vunpack.c.l.b16 %v407
        %v972 = vunpack.c.h.b16 %v407
        %v973 = vunpack.c.l.b16 %v408
        %v974 = vunpack.c.h.b16 %v408
        %v975 = vunpack.c.l.b16 %v409
        %v976 = vunpack.c.h.b16 %v409
        %v977 = vunpack.c.l.b16 %v410
        %v978 = vunpack.c.h.b16 %v410
        %v979 = vunpack.c.l.b16 %v411
        %v980 = vunpack.c.h.b16 %v411
        %v981 = vunpack.c.l.b16 %v412
        %v982 = vunpack.c.h.b16 %v412
        %v983 = vunpack.c.l.b16 %v413
        %v984 = vunpack.c.h.b16 %v413
        %v985 = vunpack.c.l.b16 %v414
        %v986 = vunpack.c.h.b16 %v414
        %v987 = vunpack.c.l.b16 %v415
        %v988 = vunpack.c.h.b16 %v415
        %v989 = vunpack.c.l.b16 %v416
        %v990 = vunpack.c.h.b16 %v416
        %v991 = vunpack.c.l.b16 %v417
        %v992 = vunpack.c.h.b16 %v417
        %v993 = vunpack.c.l.b16 %v418
        %v994 = vunpack.c.h.b16 %v418
        %v995 = vunpack.c.l.b16 %v419
        %v996 = vunpack.c.h.b16 %v419
        %v997 = vunpack.c.l.b16 %v420
        %v998 = vunpack.c.h.b16 %v420
        %v999 = vunpack.c.l.b16 %v421
        %v1000 = vunpack.c.h.b16 %v421
        %v1001 = vunpack.c.l.b16 %v422
        %v1002 = vunpack.c.h.b16 %v422
        %v1003 = vunpack.c.l.b16 %v423
        %v1004 = vunpack.c.h.b16 %v423
        %v1005 = vunpack.c.l.b16 %v424
        %v1006 = vunpack.c.h.b16 %v424
        %v1007 = vunpack.c.l.b16 %v425
        %v1008 = vunpack.c.h.b16 %v425
        %v1009 = vunpack.c.l.b16 %v426
        %v1010 = vunpack.c.h.b16 %v426
        %v1011 = vunpack.c.l.b16 %v427
        %v1012 = vunpack.c.h.b16 %v427
        %v1013 = vunpack.c.l.b16 %v428
        %v1014 = vunpack.c.h.b16 %v428
        %v1015 = vunpack.c.l.b16 %v429
        %v1016 = vunpack.c.h.b16 %v429
        %v1017 = vunpack.c.l.b16 %v430
        %v1018 = vunpack.c.h.b16 %v430
        %v1019 = vunpack.c.l.b16 %v431
        %v1020 = vunpack.c.h.b16 %v431
        %v1021 = vunpack.c.l.b16 %v432
        %v1022 = vunpack.c.h.b16 %v432
        %v1023 = vunpack.c.l.b16 %v433
        %v1024 = vunpack.c.h.b16 %v433
        %v1025 = vunpack.c.l.b16 %v434
        %v1026 = vunpack.c.h.b16 %v434
        %v1027 = vunpack.c.l.b16 %v435
        %v1028 = vunpack.c.h.b16 %v435
        %v1029 = vunpack.c.l.b16 %v436
        %v1030 = vunpack.c.h.b16 %v436
        %v1031 = vunpack.c.l.b16 %v437
        %v1032 = vunpack.c.h.b16 %v437
        %v1033 = vunpack.c.l.b16 %v438
        %v1034 = vunpack.c.h.b16 %v438
        %v1035 = vunpack.c.l.b16 %v439
        %v1036 = vunpack.c.h.b16 %v439
        %v1037 = vunpack.c.l.b16 %v440
        %v1038 = vunpack.c.h.b16 %v440
        %v1039 = vunpack.c.l.b16 %v441
        %v1040 = vunpack.c.h.b16 %v441
        %v1041 = vunpack.c.l.b16 %v442
        %v1042 = vunpack.c.h.b16 %v442
        %v1043 = vunpack.c.l.b16 %v443
        %v1044 = vunpack.c.h.b16 %v443
        %v1045 = vunpack.c.l.b16 %v444
        %v1046 = vunpack.c.h.b16 %v444
        %v1047 = vunpack.c.l.b16 %v445
        %v1048 = vunpack.c.h.b16 %v445
        %v1049 = vunpack.c.l.b16 %v446
        %v1050 = vunpack.c.h.b16 %v446
        %v1051 = vunpack.c.l.b16 %v447
        %v1052 = vunpack.c.h.b16 %v447
        %v1053 = vunpack.c.l.b16 %v448
        %v1054 = vunpack.c.h.b16 %v448
        %v1055 = vunpack.c.l.b16 %v449
        %v1056 = vunpack.c.h.b16 %v449
        %v1057 = vunpack.c.l.b16 %v450
        %v1058 = vunpack.c.h.b16 %v450
        %v1059 = vunpack.c.l.b16 %v451
        %v1060 = vunpack.c.h.b16 %v451
        %v1061 = vunpack.c.l.b16 %v452
        %v1062 = vunpack.c.h.b16 %v452
        %v1063 = vunpack.c.l.b16 %v453
        %v1064 = vunpack.c.h.b16 %v453
        %v1065 = vunpack.c.l.b16 %v454
        %v1066 = vunpack.c.h.b16 %v454
        %v1067 = vunpack.c.l.b16 %v455
        %v1068 = vunpack.c.h.b16 %v455
        %v1069 = vunpack.c.l.b16 %v456
        %v1070 = vunpack.c.h.b16 %v456
        %v1071 = vunpack.c.l.b16 %v457
        %v1072 = vunpack.c.h.b16 %v457
        %v1073 = vunpack.c.l.b16 %v458
        %v1074 = vunpack.c.h.b16 %v458
        %v1075 = vunpack.c.l.b16 %v459
        %v1076 = vunpack.c.h.b16 %v459
        %v1077 = vunpack.c.l.b16 %v460
        %v1078 = vunpack.c.h.b16 %v460
        %v1079 = vunpack.c.l.b16 %v461
        %v1080 = vunpack.c.h.b16 %v461
        %v1081 = vunpack.c.l.b16 %v462
        %v1082 = vunpack.c.h.b16 %v462
        %v1083 = vunpack.c.l.b16 %v463
        %v1084 = vunpack.c.h.b16 %v463
        %v1085 = vunpack.c.l.b16 %v464
        %v1086 = vunpack.c.h.b16 %v464
        %v1087 = vunpack.c.l.b16 %v465
        %v1088 = vunpack.c.h.b16 %v465
        %v1089 = vunpack.c.l.b16 %v466
        %v1090 = vunpack.c.h.b16 %v466
        %v1091 = vunpack.c.l.b16 %v467
        %v1092 = vunpack.c.h.b16 %v467
        %v1093 = vunpack.c.l.b16 %v468
        %v1094 = vunpack.c.h.b16 %v468
        %v1095 = vunpack.c.l.b16 %v469
        %v1096 = vunpack.c.h.b16 %v469
        %v1097 = vunpack.c.l.b16 %v470
        %v1098 = vunpack.c.h.b16 %v470
        %v1099 = vunpack.c.l.b16 %v471
        %v1100 = vunpack.c.h.b16 %v471
        %v1101 = vunpack.c.l.b16 %v472
        %v1102 = vunpack.c.h.b16 %v472
        %v1103 = vunpack.c.l.b16 %v473
        %v1104 = vunpack.c.h.b16 %v473
        %v1105 = vunpack.c.l.b16 %v474
        %v1106 = vunpack.c.h.b16 %v474
        %v1107 = vunpack.c.l.b16 %v475
        %v1108 = vunpack.c.h.b16 %v475
        %v1109 = vunpack.c.l.b16 %v476
        %v1110 = vunpack.c.h.b16 %v476
        %v1111 = vunpack.c.l.b16 %v477
        %v1112 = vunpack.c.h.b16 %v477
        %v1113 = vunpack.c.l.b16 %v478
        %v1114 = vunpack.c.h.b16 %v478
        %v1115 = vunpack.c.l.b16 %v479
        %v1116 = vunpack.c.h.b16 %v479
        %v1117 = vunpack.c.l.b16 %v480
        %v1118 = vunpack.c.h.b16 %v480
        %v1119 = vunpack.c.l.b16 %v481
        %v1120 = vunpack.c.h.b16 %v481
        %v1121 = vunpack.c.l.b16 %v482
        %v1122 = vunpack.c.h.b16 %v482
        %v1123 = vunpack.c.l.b16 %v483
        %v1124 = vunpack.c.h.b16 %v483
        %v1125 = vunpack.c.l.b16 %v484
        %v1126 = vunpack.c.h.b16 %v484
        %v1127 = vunpack.c.l.b16 %v485
        %v1128 = vunpack.c.h.b16 %v485
        %v1129 = vunpack.c.l.b16 %v486
        %v1130 = vunpack.c.h.b16 %v486
        %v1131 = vunpack.c.l.b16 %v487
        %v1132 = vunpack.c.h.b16 %v487
        %v1133 = vunpack.c.l.b16 %v488
        %v1134 = vunpack.c.h.b16 %v488
        %v1135 = vunpack.c.l.b16 %v489
        %v1136 = vunpack.c.h.b16 %v489
        %v1137 = vunpack.c.l.b16 %v490
        %v1138 = vunpack.c.h.b16 %v490
        %v1139 = vunpack.c.l.b16 %v491
        %v1140 = vunpack.c.h.b16 %v491
        %v1141 = vunpack.c.l.b16 %v492
        %v1142 = vunpack.c.h.b16 %v492
        %v1143 = vunpack.c.l.b16 %v493
        %v1144 = vunpack.c.h.b16 %v493
        %v1145 = vunpack.c.l.b16 %v494
        %v1146 = vunpack.c.h.b16 %v494
        %v1147 = vunpack.c.l.b16 %v495
        %v1148 = vunpack.c.h.b16 %v495
        %v1149 = vunpack.c.l.b16 %v496
        %v1150 = vunpack.c.h.b16 %v496
        %v1151 = vunpack.c.l.b16 %v497
        %v1152 = vunpack.c.h.b16 %v497
        %v1153 = vunpack.c.l.b16 %v498
        %v1154 = vunpack.c.h.b16 %v498
        %v1155 = vunpack.c.l.b16 %v499
        %v1156 = vunpack.c.h.b16 %v499
        %v1157 = vunpack.c.l.b16 %v500
        %v1158 = vunpack.c.h.b16 %v500
        %v1159 = vunpack.c.l.b16 %v501
        %v1160 = vunpack.c.h.b16 %v501
        %v1161 = vunpack.c.l.b16 %v502
        %v1162 = vunpack.c.h.b16 %v502
        %v1163 = vunpack.c.l.b16 %v503
        %v1164 = vunpack.c.h.b16 %v503
        %v1165 = vunpack.c.l.b16 %v504
        %v1166 = vunpack.c.h.b16 %v504
        %v1167 = vunpack.c.l.b16 %v505
        %v1168 = vunpack.c.h.b16 %v505
        %v1169 = vunpack.c.l.b16 %v506
        %v1170 = vunpack.c.h.b16 %v506
        %v1171 = vunpack.c.l.b16 %v507
        %v1172 = vunpack.c.h.b16 %v507
        %v1173 = vunpack.c.l.b16 %v508
        %v1174 = vunpack.c.h.b16 %v508
        %v1175 = vunpack.c.l.b16 %v509
        %v1176 = vunpack.c.h.b16 %v509
        %v1177 = vunpack.c.l.b16 %v510
        %v1178 = vunpack.c.h.b16 %v510
        %v1179 = vunpack.c.l.b16 %v511
        %v1180 = vunpack.c.h.b16 %v511
        %v1181 = vunpack.c.l.b16 %v512
        %v1182 = vunpack.c.h.b16 %v512
        %v1183 = vunpack.c.l.b16 %v513
        %v1184 = vunpack.c.h.b16 %v513
        %v1185 = vunpack.c.l.b16 %v514
        %v1186 = vunpack.c.h.b16 %v514
        %v1187 = vunpack.c.l.b16 %v515
        %v1188 = vunpack.c.h.b16 %v515
        %v1189 = vunpack.c.l.b16 %v516
        %v1190 = vunpack.c.h.b16 %v516
        %v1191 = vunpack.c.l.b16 %v517
        %v1192 = vunpack.c.h.b16 %v517
        %v1193 = vunpack.c.l.b16 %v518
        %v1194 = vunpack.c.h.b16 %v518
        %v1195 = vunpack.c.l.b16 %v519
        %v1196 = vunpack.c.h.b16 %v519
        %v1197 = vunpack.c.l.b16 %v520
        %v1198 = vunpack.c.h.b16 %v520
        %v1199 = vunpack.c.l.b16 %v521
        %v1200 = vunpack.c.h.b16 %v521
        %v1201 = vunpack.c.l.b16 %v522
        %v1202 = vunpack.c.h.b16 %v522
        %v1203 = vunpack.c.l.b16 %v523
        %v1204 = vunpack.c.h.b16 %v523
        %v1205 = vunpack.c.l.b16 %v524
        %v1206 = vunpack.c.h.b16 %v524
        %v1207 = vunpack.c.l.b16 %v525
        %v1208 = vunpack.c.h.b16 %v525
        %v1209 = vunpack.c.l.b16 %v526
        %v1210 = vunpack.c.h.b16 %v526
        %v1211 = vunpack.c.l.b16 %v527
        %v1212 = vunpack.c.h.b16 %v527
        %v1213 = vunpack.c.l.b16 %v528
        %v1214 = vunpack.c.h.b16 %v528
        %v1215 = vunpack.c.l.b16 %v529
        %v1216 = vunpack.c.h.b16 %v529
        %v1217 = vunpack.c.l.b16 %v530
        %v1218 = vunpack.c.h.b16 %v530
        %v1219 = vunpack.c.l.b16 %v531
        %v1220 = vunpack.c.h.b16 %v531
        %v1221 = vunpack.c.l.b16 %v532
        %v1222 = vunpack.c.h.b16 %v532
        %v1223 = vunpack.c.l.b16 %v533
        %v1224 = vunpack.c.h.b16 %v533
        %v1225 = vunpack.c.l.b16 %v534
        %v1226 = vunpack.c.h.b16 %v534
        %v1227 = vunpack.c.l.b16 %v535
        %v1228 = vunpack.c.h.b16 %v535
        %v1229 = vunpack.c.l.b16 %v536
        %v1230 = vunpack.c.h.b16 %v536
        %v1231 = vunpack.c.l.b16 %v537
        %v1232 = vunpack.c.h.b16 %v537
        %v1233 = vunpack.c.l.b16 %v538
        %v1234 = vunpack.c.h.b16 %v538
        %v1235 = vunpack.c.l.b16 %v539
        %v1236 = vunpack.c.h.b16 %v539
        %v1237 = vunpack.c.l.b16 %v540
        %v1238 = vunpack.c.h.b16 %v540
        %v1239 = vunpack.c.l.b16 %v541
        %v1240 = vunpack.c.h.b16 %v541
        %v1241 = vunpack.c.l.b16 %v542
        %v1242 = vunpack.c.h.b16 %v542
        %v1243 = vunpack.c.l.b16 %v543
        %v1244 = vunpack.c.h.b16 %v543
        %v1245 = vunpack.c.l.b16 %v544
        %v1246 = vunpack.c.h.b16 %v544
        %v1247 = vunpack.c.l.b16 %v545
        %v1248 = vunpack.c.h.b16 %v545
        %v1249 = vunpack.c.l.b16 %v546
        %v1250 = vunpack.c.h.b16 %v546
        %v1251 = vunpack.c.l.b16 %v547
        %v1252 = vunpack.c.h.b16 %v547
        %v1253 = vunpack.c.l.b16 %v548
        %v1254 = vunpack.c.h.b16 %v548
        %v1255 = vunpack.c.l.b16 %v549
        %v1256 = vunpack.c.h.b16 %v549
        %v1257 = vunpack.c.l.b16 %v550
        %v1258 = vunpack.c.h.b16 %v550
        %v1259 = vunpack.c.l.b16 %v551
        %v1260 = vunpack.c.h.b16 %v551
        %v1261 = vunpack.c.l.b16 %v552
        %v1262 = vunpack.c.h.b16 %v552
        %v1263 = vunpack.c.l.b16 %v553
        %v1264 = vunpack.c.h.b16 %v553
        %v1265 = vunpack.c.l.b16 %v554
        %v1266 = vunpack.c.h.b16 %v554
        %v1267 = vunpack.c.l.b16 %v555
        %v1268 = vunpack.c.h.b16 %v555
        %v1269 = vunpack.c.l.b16 %v556
        %v1270 = vunpack.c.h.b16 %v556
        %v1271 = vunpack.c.l.b16 %v557
        %v1272 = vunpack.c.h.b16 %v557
        %v1273 = vunpack.c.l.b16 %v558
        %v1274 = vunpack.c.h.b16 %v558
        %v1275 = vunpack.c.l.b16 %v559
        %v1276 = vunpack.c.h.b16 %v559
        %v1277 = vunpack.c.l.b16 %v560
        %v1278 = vunpack.c.h.b16 %v560
        %v1279 = vunpack.c.l.b16 %v561
        %v1280 = vunpack.c.h.b16 %v561
        %v1281 = vunpack.c.l.b16 %v562
        %v1282 = vunpack.c.h.b16 %v562
        %v1283 = vunpack.c.l.b16 %v563
        %v1284 = vunpack.c.h.b16 %v563
        %v1285 = vunpack.c.l.b16 %v564
        %v1286 = vunpack.c.h.b16 %v564
        %v1287 = vunpack.c.l.b16 %v565
        %v1288 = vunpack.c.h.b16 %v565
        %v1289 = vunpack.c.l.b16 %v566
        %v1290 = vunpack.c.h.b16 %v566
        %v1291 = vunpack.c.l.b16 %v567
        %v1292 = vunpack.c.h.b16 %v567
        %v1293 = vunpack.c.l.b16 %v568
        %v1294 = vunpack.c.h.b16 %v568
        %v1295 = vunpack.c.l.b16 %v569
        %v1296 = vunpack.c.h.b16 %v569
        %v1297 = vunpack.c.l.b16 %v570
        %v1298 = vunpack.c.h.b16 %v570
        %v1299 = vunpack.c.l.b16 %v571
        %v1300 = vunpack.c.h.b16 %v571
        %v1301 = vunpack.c.l.b16 %v572
        %v1302 = vunpack.c.h.b16 %v572
        %v1303 = vunpack.c.l.b16 %v573
        %v1304 = vunpack.c.h.b16 %v573
        %v1305 = vunpack.c.l.b16 %v574
        %v1306 = vunpack.c.h.b16 %v574
        %v1307 = vunpack.c.l.b16 %v575
        %v1308 = vunpack.c.h.b16 %v575
        %v1309 = vunpack.c.l.b16 %v576
        %v1310 = vunpack.c.h.b16 %v576
        %v1311 = vunpack.c.l.b16 %v577
        %v1312 = vunpack.c.h.b16 %v577
        %v1313 = vunpack.c.l.b16 %v578
        %v1314 = vunpack.c.h.b16 %v578
        %v1315 = vunpack.c.l.b16 %v579
        %v1316 = vunpack.c.h.b16 %v579
        %v1317 = vunpack.c.l.b16 %v580
        %v1318 = vunpack.c.h.b16 %v580
        %v1319 = vunpack.c.l.b16 %v581
        %v1320 = vunpack.c.h.b16 %v581
        %v1321 = vunpack.c.l.b16 %v582
        %v1322 = vunpack.c.h.b16 %v582
        %v1323 = vunpack.c.l.b16 %v583
        %v1324 = vunpack.c.h.b16 %v583
        %v1325 = vunpack.c.l.b16 %v584
        %v1326 = vunpack.c.h.b16 %v584
        %v1327 = vunpack.c.l.b16 %v585
        %v1328 = vunpack.c.h.b16 %v585
        %v1329 = vunpack.c.l.b16 %v586
        %v1330 = vunpack.c.h.b16 %v586
        %v1331 = vunpack.c.l.b16 %v587
        %v1332 = vunpack.c.h.b16 %v587
        %v1333 = vunpack.c.l.b16 %v588
        %v1334 = vunpack.c.h.b16 %v588
        %v1335 = vunpack.c.l.b16 %v589
        %v1336 = vunpack.c.h.b16 %v589
        %v1337 = vunpack.c.l.b16 %v590
        %v1338 = vunpack.c.h.b16 %v590
        %v1339 = vunpack.c.l.b16 %v591
        %v1340 = vunpack.c.h.b16 %v591
        %v1341 = vunpack.c.l.b16 %v592
        %v1342 = vunpack.c.h.b16 %v592
        %v1343 = vunpack.c.l.b16 %v593
        %v1344 = vunpack.c.h.b16 %v593
        %v1345 = vunpack.c.l.b16 %v594
        %v1346 = vunpack.c.h.b16 %v594
        %v1347 = vunpack.c.l.b16 %v595
        %v1348 = vunpack.c.h.b16 %v595
        %v1349 = vunpack.c.l.b16 %v596
        %v1350 = vunpack.c.h.b16 %v596
        %v1351 = vunpack.c.l.b16 %v597
        %v1352 = vunpack.c.h.b16 %v597
        %v1353 = vunpack.c.l.b16 %v598
        %v1354 = vunpack.c.h.b16 %v598
        %v1355 = vunpack.c.l.b16 %v599
        %v1356 = vunpack.c.h.b16 %v599
        %v1357 = vunpack.c.l.b16 %v600
        %v1358 = vunpack.c.h.b16 %v600
        %v1359 = vunpack.c.l.b16 %v601
        %v1360 = vunpack.c.h.b16 %v601
        %v1361 = vunpack.c.l.b16 %v602
        %v1362 = vunpack.c.h.b16 %v602
        %v1363 = vunpack.c.l.b16 %v603
        %v1364 = vunpack.c.h.b16 %v603
        %v1365 = vunpack.c.l.b16 %v604
        %v1366 = vunpack.c.h.b16 %v604
        %v1367 = vunpack.c.l.b16 %v605
        %v1368 = vunpack.c.h.b16 %v605
        %v1369 = vunpack.c.l.b16 %v606
        %v1370 = vunpack.c.h.b16 %v606
        %v1371 = vunpack.c.l.b16 %v607
        %v1372 = vunpack.c.h.b16 %v607
        %v1373 = vunpack.c.l.b16 %v608
        %v1374 = vunpack.c.h.b16 %v608
        %v1375 = vunpack.c.l.b16 %v609
        %v1376 = vunpack.c.h.b16 %v609
        %v1377 = vunpack.c.l.b16 %v610
        %v1378 = vunpack.c.h.b16 %v610
        %v1379 = vunpack.c.l.b16 %v611
        %v1380 = vunpack.c.h.b16 %v611
        %v1381 = vunpack.c.l.b16 %v612
        %v1382 = vunpack.c.h.b16 %v612
        %v1383 = vunpack.c.l.b16 %v613
        %v1384 = vunpack.c.h.b16 %v613
        %v1385 = vunpack.c.l.b16 %v614
        %v1386 = vunpack.c.h.b16 %v614
        %v1387 = vunpack.c.l.b16 %v615
        %v1388 = vunpack.c.h.b16 %v615
        %v1389 = vunpack.c.l.b16 %v616
        %v1390 = vunpack.c.h.b16 %v616
        %v1391 = vunpack.c.l.b16 %v617
        %v1392 = vunpack.c.h.b16 %v617
        %v1393 = vunpack.c.l.b16 %v618
        %v1394 = vunpack.c.h.b16 %v618
        %v1395 = vunpack.c.l.b16 %v619
        %v1396 = vunpack.c.h.b16 %v619
        %v1397 = vunpack.c.l.b16 %v620
        %v1398 = vunpack.c.h.b16 %v620
        %v1399 = vunpack.c.l.b16 %v621
        %v1400 = vunpack.c.h.b16 %v621
        %v1401 = vunpack.c.l.b16 %v622
        %v1402 = vunpack.c.h.b16 %v622
        %v1403 = vunpack.c.l.b16 %v623
        %v1404 = vunpack.c.h.b16 %v623
        %v1405 = vunpack.c.l.b16 %v624
        %v1406 = vunpack.c.h.b16 %v624
        %v1407 = vpack.c.b16 %v903, %v895
        %v1408 = vpack.c.b16 %v904, %v896
        %v1409 = vpack.c.b16 %v905, %v897
        %v1410 = vpack.c.b16 %v906, %v898
        %v1411 = vpack.c.b16 %v907, %v899
        %v1412 = vpack.c.b16 %v908, %v900
        %v1413 = vpack.c.b16 %v909, %v901
        %v1414 = vpack.c.b16 %v910, %v902
        %v1415 = vpack.c.b16 %v919, %v911
        %v1416 = vpack.c.b16 %v920, %v912
        %v1417 = vpack.c.b16 %v921, %v913
        %v1418 = vpack.c.b16 %v922, %v914
        %v1419 = vpack.c.b16 %v923, %v915
        %v1420 = vpack.c.b16 %v924, %v916
        %v1421 = vpack.c.b16 %v925, %v917
        %v1422 = vpack.c.b16 %v926, %v918
        %v1423 = vpack.c.b16 %v935, %v927
        %v1424 = vpack.c.b16 %v936, %v928
        %v1425 = vpack.c.b16 %v937, %v929
        %v1426 = vpack.c.b16 %v938, %v930
        %v1427 = vpack.c.b16 %v939, %v931
        %v1428 = vpack.c.b16 %v940, %v932
        %v1429 = vpack.c.b16 %v941, %v933
        %v1430 = vpack.c.b16 %v942, %v934
        %v1431 = vpack.c.b16 %v951, %v943
        %v1432 = vpack.c.b16 %v952, %v944
        %v1433 = vpack.c.b16 %v953, %v945
        %v1434 = vpack.c.b16 %v954, %v946
        %v1435 = vpack.c.b16 %v955, %v947
        %v1436 = vpack.c.b16 %v956, %v948
        %v1437 = vpack.c.b16 %v957, %v949
        %v1438 = vpack.c.b16 %v958, %v950
        %v1439 = vpack.c.b16 %v967, %v959
        %v1440 = vpack.c.b16 %v968, %v960
        %v1441 = vpack.c.b16 %v969, %v961
        %v1442 = vpack.c.b16 %v970, %v962
        %v1443 = vpack.c.b16 %v971, %v963
        %v1444 = vpack.c.b16 %v972, %v964
        %v1445 = vpack.c.b16 %v973, %v965
        %v1446 = vpack.c.b16 %v974, %v966
        %v1447 = vpack.c.b16 %v983, %v975
        %v1448 = vpack.c.b16 %v984, %v976
        %v1449 = vpack.c.b16 %v985, %v977
        %v1450 = vpack.c.b16 %v986, %v978
        %v1451 = vpack.c.b16 %v987, %v979
        %v1452 = vpack.c.b16 %v988, %v980
        %v1453 = vpack.c.b16 %v989, %v981
        %v1454 = vpack.c.b16 %v990, %v982
        %v1455 = vpack.c.b16 %v999, %v991
        %v1456 = vpack.c.b16 %v1000, %v992
        %v1457 = vpack.c.b16 %v1001, %v993
        %v1458 = vpack.c.b16 %v1002, %v994
        %v1459 = vpack.c.b16 %v1003, %v995
        %v1460 = vpack.c.b16 %v1004, %v996
        %v1461 = vpack.c.b16 %v1005, %v997
        %v1462 = vpack.c.b16 %v1006, %v998
        %v1463 = vpack.c.b16 %v1015, %v1007
        %v1464 = vpack.c.b16 %v1016, %v1008
        %v1465 = vpack.c.b16 %v1017, %v1009
        %v1466 = vpack.c.b16 %v1018, %v1010
        %v1467 = vpack.c.b16 %v1019, %v1011
        %v1468 = vpack.c.b16 %v1020, %v1012
        %v1469 = vpack.c.b16 %v1021, %v1013
        %v1470 = vpack.c.b16 %v1022, %v1014
        %v1471 = vpack.c.b16 %v1031, %v1023
        %v1472 = vpack.c.b16 %v1032, %v1024
        %v1473 = vpack.c.b16 %v1033, %v1025
        %v1474 = vpack.c.b16 %v1034, %v1026
        %v1475 = vpack.c.b16 %v1035, %v1027
        %v1476 = vpack.c.b16 %v1036, %v1028
        %v1477 = vpack.c.b16 %v1037, %v1029
        %v1478 = vpack.c.b16 %v1038, %v1030
        %v1479 = vpack.c.b16 %v1047, %v1039
        %v1480 = vpack.c.b16 %v1048, %v1040
        %v1481 = vpack.c.b16 %v1049, %v1041
        %v1482 = vpack.c.b16 %v1050, %v1042
        %v1483 = vpack.c.b16 %v1051, %v1043
        %v1484 = vpack.c.b16 %v1052, %v1044
        %v1485 = vpack.c.b16 %v1053, %v1045
        %v1486 = vpack.c.b16 %v1054, %v1046
        %v1487 = vpack.c.b16 %v1063, %v1055
        %v1488 = vpack.c.b16 %v1064, %v1056
        %v1489 = vpack.c.b16 %v1065, %v1057
        %v1490 = vpack.c.b16 %v1066, %v1058
        %v1491 = vpack.c.b16 %v1067, %v1059
        %v1492 = vpack.c.b16 %v1068, %v1060
        %v1493 = vpack.c.b16 %v1069, %v1061
        %v1494 = vpack.c.b16 %v1070, %v1062
        %v1495 = vpack.c.b16 %v1079, %v1071
        %v1496 = vpack.c.b16 %v1080, %v1072
        %v1497 = vpack.c.b16 %v1081, %v1073
        %v1498 = vpack.c.b16 %v1082, %v1074
        %v1499 = vpack.c.b16 %v1083, %v1075
        %v1500 = vpack.c.b16 %v1084, %v1076
        %v1501 = vpack.c.b16 %v1085, %v1077
        %v1502 = vpack.c.b16 %v1086, %v1078
        %v1503 = vpack.c.b16 %v1095, %v1087
        %v1504 = vpack.c.b16 %v1096, %v1088
        %v1505 = vpack.c.b16 %v1097, %v1089
        %v1506 = vpack.c.b16 %v1098, %v1090
        %v1507 = vpack.c.b16 %v1099, %v1091
        %v1508 = vpack.c.b16 %v1100, %v1092
        %v1509 = vpack.c.b16 %v1101, %v1093
        %v1510 = vpack.c.b16 %v1102, %v1094
        %v1511 = vpack.c.b16 %v1111, %v1103
        %v1512 = vpack.c.b16 %v1112, %v1104
        %v1513 = vpack.c.b16 %v1113, %v1105
        %v1514 = vpack.c.b16 %v1114, %v1106
        %v1515 = vpack.c.b16 %v1115, %v1107
        %v1516 = vpack.c.b16 %v1116, %v1108
        %v1517 = vpack.c.b16 %v1117, %v1109
        %v1518 = vpack.c.b16 %v1118, %v1110
        %v1519 = vpack.c.b16 %v1127, %v1119
        %v1520 = vpack.c.b16 %v1128, %v1120
        %v1521 = vpack.c.b16 %v1129, %v1121
        %v1522 = vpack.c.b16 %v1130, %v1122
        %v1523 = vpack.c.b16 %v1131, %v1123
        %v1524 = vpack.c.b16 %v1132, %v1124
        %v1525 = vpack.c.b16 %v1133, %v1125
        %v1526 = vpack.c.b16 %v1134, %v1126
        %v1527 = vpack.c.b16 %v1143, %v1135
        %v1528 = vpack.c.b16 %v1144, %v1136
        %v1529 = vpack.c.b16 %v1145, %v1137
        %v1530 = vpack.c.b16 %v1146, %v1138
        %v1531 = vpack.c.b16 %v1147, %v1139
        %v1532 = vpack.c.b16 %v1148, %v1140
        %v1533 = vpack.c.b16 %v1149, %v1141
        %v1534 = vpack.c.b16 %v1150, %v1142
        %v1535 = vpack.c.b16 %v1159, %v1151
        %v1536 = vpack.c.b16 %v1160, %v1152
        %v1537 = vpack.c.b16 %v1161, %v1153
        %v1538 = vpack.c.b16 %v1162, %v1154
        %v1539 = vpack.c.b16 %v1163, %v1155
        %v1540 = vpack.c.b16 %v1164, %v1156
        %v1541 = vpack.c.b16 %v1165, %v1157
        %v1542 = vpack.c.b16 %v1166, %v1158
        %v1543 = vpack.c.b16 %v1175, %v1167
        %v1544 = vpack.c.b16 %v1176, %v1168
        %v1545 = vpack.c.b16 %v1177, %v1169
        %v1546 = vpack.c.b16 %v1178, %v1170
        %v1547 = vpack.c.b16 %v1179, %v1171
        %v1548 = vpack.c.b16 %v1180, %v1172
        %v1549 = vpack.c.b16 %v1181, %v1173
        %v1550 = vpack.c.b16 %v1182, %v1174
        %v1551 = vpack.c.b16 %v1191, %v1183
        %v1552 = vpack.c.b16 %v1192, %v1184
        %v1553 = vpack.c.b16 %v1193, %v1185
        %v1554 = vpack.c.b16 %v1194, %v1186
        %v1555 = vpack.c.b16 %v1195, %v1187
        %v1556 = vpack.c.b16 %v1196, %v1188
        %v1557 = vpack.c.b16 %v1197, %v1189
        %v1558 = vpack.c.b16 %v1198, %v1190
        %v1559 = vpack.c.b16 %v1207, %v1199
        %v1560 = vpack.c.b16 %v1208, %v1200
        %v1561 = vpack.c.b16 %v1209, %v1201
        %v1562 = vpack.c.b16 %v1210, %v1202
        %v1563 = vpack.c.b16 %v1211, %v1203
        %v1564 = vpack.c.b16 %v1212, %v1204
        %v1565 = vpack.c.b16 %v1213, %v1205
        %v1566 = vpack.c.b16 %v1214, %v1206
        %v1567 = vpack.c.b16 %v1223, %v1215
        %v1568 = vpack.c.b16 %v1224, %v1216
        %v1569 = vpack.c.b16 %v1225, %v1217
        %v1570 = vpack.c.b16 %v1226, %v1218
        %v1571 = vpack.c.b16 %v1227, %v1219
        %v1572 = vpack.c.b16 %v1228, %v1220
        %v1573 = vpack.c.b16 %v1229, %v1221
        %v1574 = vpack.c.b16 %v1230, %v1222
        %v1575 = vpack.c.b16 %v1239, %v1231
        %v1576 = vpack.c.b16 %v1240, %v1232
        %v1577 = vpack.c.b16 %v1241, %v1233
        %v1578 = vpack.c.b16 %v1242, %v1234
        %v1579 = vpack.c.b16 %v1243, %v1235
        %v1580 = vpack.c.b16 %v1244, %v1236
        %v1581 = vpack.c.b16 %v1245, %v1237
        %v1582 = vpack.c.b16 %v1246, %v1238
        %v1583 = vpack.c.b16 %v1255, %v1247
        %v1584 = vpack.c.b16 %v1256, %v1248
        %v1585 = vpack.c.b16 %v1257, %v1249
        %v1586 = vpack.c.b16 %v1258, %v1250
        %v1587 = vpack.c.b16 %v1259, %v1251
        %v1588 = vpack.c.b16 %v1260, %v1252
        %v1589 = vpack.c.b16 %v1261, %v1253
        %v1590 = vpack.c.b16 %v1262, %v1254
        %v1591 = vpack.c.b16 %v1271, %v1263
        %v1592 = vpack.c.b16 %v1272, %v1264
        %v1593 = vpack.c.b16 %v1273, %v1265
        %v1594 = vpack.c.b16 %v1274, %v1266
        %v1595 = vpack.c.b16 %v1275, %v1267
        %v1596 = vpack.c.b16 %v1276, %v1268
        %v1597 = vpack.c.b16 %v1277, %v1269
        %v1598 = vpack.c.b16 %v1278, %v1270
        %v1599 = vpack.c.b16 %v1287, %v1279
        %v1600 = vpack.c.b16 %v1288, %v1280
        %v1601 = vpack.c.b16 %v1289, %v1281
        %v1602 = vpack.c.b16 %v1290, %v1282
        %v1603 = vpack.c.b16 %v1291, %v1283
        %v1604 = vpack.c.b16 %v1292, %v1284
        %v1605 = vpack.c.b16 %v1293, %v1285
        %v1606 = vpack.c.b16 %v1294, %v1286
        %v1607 = vpack.c.b16 %v1303, %v1295
        %v1608 = vpack.c.b16 %v1304, %v1296
        %v1609 = vpack.c.b16 %v1305, %v1297
        %v1610 = vpack.c.b16 %v1306, %v1298
        %v1611 = vpack.c.b16 %v1307, %v1299
        %v1612 = vpack.c.b16 %v1308, %v1300
        %v1613 = vpack.c.b16 %v1309, %v1301
        %v1614 = vpack.c.b16 %v1310, %v1302
        %v1615 = vpack.c.b16 %v1319, %v1311
        %v1616 = vpack.c.b16 %v1320, %v1312
        %v1617 = vpack.c.b16 %v1321, %v1313
        %v1618 = vpack.c.b16 %v1322, %v1314
        %v1619 = vpack.c.b16 %v1323, %v1315
        %v1620 = vpack.c.b16 %v1324, %v1316
        %v1621 = vpack.c.b16 %v1325, %v1317
        %v1622 = vpack.c.b16 %v1326, %v1318
        %v1623 = vpack.c.b16 %v1335, %v1327
        %v1624 = vpack.c.b16 %v1336, %v1328
        %v1625 = vpack.c.b16 %v1337, %v1329
        %v1626 = vpack.c.b16 %v1338, %v1330
        %v1627 = vpack.c.b16 %v1339, %v1331
        %v1628 = vpack.c.b16 %v1340, %v1332
        %v1629 = vpack.c.b16 %v1341, %v1333
        %v1630 = vpack.c.b16 %v1342, %v1334
        %v1631 = vpack.c.b16 %v1351, %v1343
        %v1632 = vpack.c.b16 %v1352, %v1344
        %v1633 = vpack.c.b16 %v1353, %v1345
        %v1634 = vpack.c.b16 %v1354, %v1346
        %v1635 = vpack.c.b16 %v1355, %v1347
        %v1636 = vpack.c.b16 %v1356, %v1348
        %v1637 = vpack.c.b16 %v1357, %v1349
        %v1638 = vpack.c.b16 %v1358, %v1350
        %v1639 = vpack.c.b16 %v1367, %v1359
        %v1640 = vpack.c.b16 %v1368, %v1360
        %v1641 = vpack.c.b16 %v1369, %v1361
        %v1642 = vpack.c.b16 %v1370, %v1362
        %v1643 = vpack.c.b16 %v1371, %v1363
        %v1644 = vpack.c.b16 %v1372, %v1364
        %v1645 = vpack.c.b16 %v1373, %v1365
        %v1646 = vpack.c.b16 %v1374, %v1366
        %v1647 = vpack.c.b16 %v1383, %v1375
        %v1648 = vpack.c.b16 %v1384, %v1376
        %v1649 = vpack.c.b16 %v1385, %v1377
        %v1650 = vpack.c.b16 %v1386, %v1378
        %v1651 = vpack.c.b16 %v1387, %v1379
        %v1652 = vpack.c.b16 %v1388, %v1380
        %v1653 = vpack.c.b16 %v1389, %v1381
        %v1654 = vpack.c.b16 %v1390, %v1382
        %v1655 = vpack.c.b16 %v1399, %v1391
        %v1656 = vpack.c.b16 %v1400, %v1392
        %v1657 = vpack.c.b16 %v1401, %v1393
        %v1658 = vpack.c.b16 %v1402, %v1394
        %v1659 = vpack.c.b16 %v1403, %v1395
        %v1660 = vpack.c.b16 %v1404, %v1396
        %v1661 = vpack.c.b16 %v1405, %v1397
        %v1662 = vpack.c.b16 %v1406, %v1398
        %1919 = vmatprep.subr.bf16.mxu0 %v1408
        %1920 = vmatpush1.bf16.msra.mxu0 %v1407
        %1921 = vmatprep.subr.bf16.mxu0 %v1416
        %1922 = vmatpush1.bf16.msra.mxu0 %v1415
        %1923 = vmatprep.subr.bf16.mxu0 %v1424
        %1924 = vmatpush1.bf16.msra.mxu0 %v1423
        %1925 = vmatprep.subr.bf16.mxu0 %v1432
        %1926 = vmatpush1.bf16.msra.mxu0 %v1431
        %1927 = vmatprep.subr.bf16.mxu0 %v1440
        %1928 = vmatpush1.bf16.msra.mxu0 %v1439
        %1929 = vmatprep.subr.bf16.mxu0 %v1448
        %1930 = vmatpush1.bf16.msra.mxu0 %v1447
        %1931 = vmatprep.subr.bf16.mxu0 %v1456
        %1932 = vmatpush1.bf16.msra.mxu0 %v1455
        %1933 = vmatprep.subr.bf16.mxu0 %v1464
        %1934 = vmatpush1.bf16.msra.mxu0 %v1463
        %1935 = vmatprep.subr.bf16.mxu0 %v1472
        %1936 = vmatpush1.bf16.msra.mxu0 %v1471
        %1937 = vmatprep.subr.bf16.mxu0 %v1480
        %1938 = vmatpush1.bf16.msra.mxu0 %v1479
        %1939 = vmatprep.subr.bf16.mxu0 %v1488
        %1940 = vmatpush1.bf16.msra.mxu0 %v1487
        %1941 = vmatprep.subr.bf16.mxu0 %v1496
        %1942 = vmatpush1.bf16.msra.mxu0 %v1495
        %1943 = vmatprep.subr.bf16.mxu0 %v1504
        %1944 = vmatpush1.bf16.msra.mxu0 %v1503
        %1945 = vmatprep.subr.bf16.mxu0 %v1512
        %1946 = vmatpush1.bf16.msra.mxu0 %v1511
        %1947 = vmatprep.subr.bf16.mxu0 %v1520
        %1948 = vmatpush1.bf16.msra.mxu0 %v1519
        %1949 = vmatprep.subr.bf16.mxu0 %v1528
        %1950 = vmatpush1.bf16.msra.mxu0 %v1527
        %1951 = vmatprep.mubr.bf16.mxu0 %v632
        %1952 = vmatmul.mubr.bf16.gmra.mrb[0].mxu0 %v631
        %v1953 = vpop.f32.mrb[0].mxu0
        %v1954 = vadd.f32 0.0, %v1953
        %v1955 = vpop.f32.mrb[0].mxu0
        %v1956 = vadd.f32 0.0, %v1955
        %v1957 = vpop.f32.mrb[0].mxu0
        %v1958 = vpop.f32.mrb[0].mxu0
        %1959 = vdwg.mxu0
        %1960 = vmatprep.subr.bf16.mxu0 %v1536
        %1961 = vmatpush1.bf16.msra.mxu0 %v1535
        %1962 = vmatprep.subr.bf16.mxu0 %v1544
        %1963 = vmatpush1.bf16.msra.mxu0 %v1543
        %1964 = vmatprep.subr.bf16.mxu0 %v1552
        %1965 = vmatpush1.bf16.msra.mxu0 %v1551
        %1966 = vmatprep.subr.bf16.mxu0 %v1560
        %1967 = vmatpush1.bf16.msra.mxu0 %v1559
        %1968 = vmatprep.subr.bf16.mxu0 %v1568
        %1969 = vmatpush1.bf16.msra.mxu0 %v1567
        %1970 = vmatprep.subr.bf16.mxu0 %v1576
        %1971 = vmatpush1.bf16.msra.mxu0 %v1575
        %1972 = vmatprep.subr.bf16.mxu0 %v1584
        %1973 = vmatpush1.bf16.msra.mxu0 %v1583
        %1974 = vmatprep.subr.bf16.mxu0 %v1592
        %1975 = vmatpush1.bf16.msra.mxu0 %v1591
        %1976 = vmatprep.subr.bf16.mxu0 %v1600
        %1977 = vmatpush1.bf16.msra.mxu0 %v1599
        %1978 = vmatprep.subr.bf16.mxu0 %v1608
        %1979 = vmatpush1.bf16.msra.mxu0 %v1607
        %1980 = vmatprep.subr.bf16.mxu0 %v1616
        %1981 = vmatpush1.bf16.msra.mxu0 %v1615
        %1982 = vmatprep.subr.bf16.mxu0 %v1624
        %1983 = vmatpush1.bf16.msra.mxu0 %v1623
        %1984 = vmatprep.subr.bf16.mxu0 %v1632
        %1985 = vmatpush1.bf16.msra.mxu0 %v1631
        %1986 = vmatprep.subr.bf16.mxu0 %v1640
        %1987 = vmatpush1.bf16.msra.mxu0 %v1639
        %1988 = vmatprep.subr.bf16.mxu0 %v1648
        %1989 = vmatpush1.bf16.msra.mxu0 %v1647
        %1990 = vmatprep.subr.bf16.mxu0 %v1656
        %1991 = vmatpush1.bf16.msra.mxu0 %v1655
        %1992 = vmatprep.mubr.bf16.mxu0 %v634
        %1993 = vmatmul.mubr.bf16.gmra.mrb[0].mxu0 %v633
        %v1994 = vpop.f32.mrb[0].mxu0
        %v1995 = vadd.f32 %v1954, %v1994
        %v1996 = vpop.f32.mrb[0].mxu0
        %v1997 = vadd.f32 %v1956, %v1996
        %v1998 = vpop.f32.mrb[0].mxu0
        %v1999 = vpop.f32.mrb[0].mxu0
        %2000 = vdwg.mxu0
        %2001 = vmatprep.subr.bf16.mxu0 %v1410
        %2002 = vmatpush1.bf16.msra.mxu0 %v1409
        %2003 = vmatprep.subr.bf16.mxu0 %v1418
        %2004 = vmatpush1.bf16.msra.mxu0 %v1417
        %2005 = vmatprep.subr.bf16.mxu0 %v1426
        %2006 = vmatpush1.bf16.msra.mxu0 %v1425
        %2007 = vmatprep.subr.bf16.mxu0 %v1434
        %2008 = vmatpush1.bf16.msra.mxu0 %v1433
        %2009 = vmatprep.subr.bf16.mxu0 %v1442
        %2010 = vmatpush1.bf16.msra.mxu0 %v1441
        %2011 = vmatprep.subr.bf16.mxu0 %v1450
        %2012 = vmatpush1.bf16.msra.mxu0 %v1449
        %2013 = vmatprep.subr.bf16.mxu0 %v1458
        %2014 = vmatpush1.bf16.msra.mxu0 %v1457
        %2015 = vmatprep.subr.bf16.mxu0 %v1466
        %2016 = vmatpush1.bf16.msra.mxu0 %v1465
        %2017 = vmatprep.subr.bf16.mxu0 %v1474
        %2018 = vmatpush1.bf16.msra.mxu0 %v1473
        %2019 = vmatprep.subr.bf16.mxu0 %v1482
        %2020 = vmatpush1.bf16.msra.mxu0 %v1481
        %2021 = vmatprep.subr.bf16.mxu0 %v1490
        %2022 = vmatpush1.bf16.msra.mxu0 %v1489
        %2023 = vmatprep.subr.bf16.mxu0 %v1498
        %2024 = vmatpush1.bf16.msra.mxu0 %v1497
        %2025 = vmatprep.subr.bf16.mxu0 %v1506
        %2026 = vmatpush1.bf16.msra.mxu0 %v1505
        %2027 = vmatprep.subr.bf16.mxu0 %v1514
        %2028 = vmatpush1.bf16.msra.mxu0 %v1513
        %2029 = vmatprep.subr.bf16.mxu0 %v1522
        %2030 = vmatpush1.bf16.msra.mxu0 %v1521
        %2031 = vmatprep.subr.bf16.mxu0 %v1530
        %2032 = vmatpush1.bf16.msra.mxu0 %v1529
        %2033 = vmatprep.mubr.bf16.mxu0 %v632
        %2034 = vmatmul.mubr.bf16.gmra.mrb[0].mxu0 %v631
        %v2035 = vpop.f32.mrb[0].mxu0
        %v2036 = vadd.f32 0.0, %v2035
        %v2037 = vpop.f32.mrb[0].mxu0
        %v2038 = vadd.f32 0.0, %v2037
        %v2039 = vpop.f32.mrb[0].mxu0
        %v2040 = vpop.f32.mrb[0].mxu0
        %2041 = vdwg.mxu0
        %2042 = vmatprep.subr.bf16.mxu0 %v1538
        %2043 = vmatpush1.bf16.msra.mxu0 %v1537
        %2044 = vmatprep.subr.bf16.mxu0 %v1546
        %2045 = vmatpush1.bf16.msra.mxu0 %v1545
        %2046 = vmatprep.subr.bf16.mxu0 %v1554
        %2047 = vmatpush1.bf16.msra.mxu0 %v1553
        %2048 = vmatprep.subr.bf16.mxu0 %v1562
        %2049 = vmatpush1.bf16.msra.mxu0 %v1561
        %2050 = vmatprep.subr.bf16.mxu0 %v1570
        %2051 = vmatpush1.bf16.msra.mxu0 %v1569
        %2052 = vmatprep.subr.bf16.mxu0 %v1578
        %2053 = vmatpush1.bf16.msra.mxu0 %v1577
        %2054 = vmatprep.subr.bf16.mxu0 %v1586
        %2055 = vmatpush1.bf16.msra.mxu0 %v1585
        %2056 = vmatprep.subr.bf16.mxu0 %v1594
        %2057 = vmatpush1.bf16.msra.mxu0 %v1593
        %2058 = vmatprep.subr.bf16.mxu0 %v1602
        %2059 = vmatpush1.bf16.msra.mxu0 %v1601
        %2060 = vmatprep.subr.bf16.mxu0 %v1610
        %2061 = vmatpush1.bf16.msra.mxu0 %v1609
        %2062 = vmatprep.subr.bf16.mxu0 %v1618
        %2063 = vmatpush1.bf16.msra.mxu0 %v1617
        %2064 = vmatprep.subr.bf16.mxu0 %v1626
        %2065 = vmatpush1.bf16.msra.mxu0 %v1625
        %2066 = vmatprep.subr.bf16.mxu0 %v1634
        %2067 = vmatpush1.bf16.msra.mxu0 %v1633
        %2068 = vmatprep.subr.bf16.mxu0 %v1642
        %2069 = vmatpush1.bf16.msra.mxu0 %v1641
        %2070 = vmatprep.subr.bf16.mxu0 %v1650
        %2071 = vmatpush1.bf16.msra.mxu0 %v1649
        %2072 = vmatprep.subr.bf16.mxu0 %v1658
        %2073 = vmatpush1.bf16.msra.mxu0 %v1657
        %2074 = vmatprep.mubr.bf16.mxu0 %v634
        %2075 = vmatmul.mubr.bf16.gmra.mrb[0].mxu0 %v633
        %v2076 = vpop.f32.mrb[0].mxu0
        %v2077 = vadd.f32 %v2036, %v2076
        %v2078 = vpop.f32.mrb[0].mxu0
        %v2079 = vadd.f32 %v2038, %v2078
        %v2080 = vpop.f32.mrb[0].mxu0
        %v2081 = vpop.f32.mrb[0].mxu0
        %2082 = vdwg.mxu0
        %2083 = vmatprep.subr.bf16.mxu0 %v1412
        %2084 = vmatpush1.bf16.msra.mxu0 %v1411
        %2085 = vmatprep.subr.bf16.mxu0 %v1420
        %2086 = vmatpush1.bf16.msra.mxu0 %v1419
        %2087 = vmatprep.subr.bf16.mxu0 %v1428
        %2088 = vmatpush1.bf16.msra.mxu0 %v1427
        %2089 = vmatprep.subr.bf16.mxu0 %v1436
        %2090 = vmatpush1.bf16.msra.mxu0 %v1435
        %2091 = vmatprep.subr.bf16.mxu0 %v1444
        %2092 = vmatpush1.bf16.msra.mxu0 %v1443
        %2093 = vmatprep.subr.bf16.mxu0 %v1452
        %2094 = vmatpush1.bf16.msra.mxu0 %v1451
        %2095 = vmatprep.subr.bf16.mxu0 %v1460
        %2096 = vmatpush1.bf16.msra.mxu0 %v1459
        %2097 = vmatprep.subr.bf16.mxu0 %v1468
        %2098 = vmatpush1.bf16.msra.mxu0 %v1467
        %2099 = vmatprep.subr.bf16.mxu0 %v1476
        %2100 = vmatpush1.bf16.msra.mxu0 %v1475
        %2101 = vmatprep.subr.bf16.mxu0 %v1484
        %2102 = vmatpush1.bf16.msra.mxu0 %v1483
        %2103 = vmatprep.subr.bf16.mxu0 %v1492
        %2104 = vmatpush1.bf16.msra.mxu0 %v1491
        %2105 = vmatprep.subr.bf16.mxu0 %v1500
        %2106 = vmatpush1.bf16.msra.mxu0 %v1499
        %2107 = vmatprep.subr.bf16.mxu0 %v1508
        %2108 = vmatpush1.bf16.msra.mxu0 %v1507
        %2109 = vmatprep.subr.bf16.mxu0 %v1516
        %2110 = vmatpush1.bf16.msra.mxu0 %v1515
        %2111 = vmatprep.subr.bf16.mxu0 %v1524
        %2112 = vmatpush1.bf16.msra.mxu0 %v1523
        %2113 = vmatprep.subr.bf16.mxu0 %v1532
        %2114 = vmatpush1.bf16.msra.mxu0 %v1531
        %2115 = vmatprep.mubr.bf16.mxu0 %v632
        %2116 = vmatmul.mubr.bf16.gmra.mrb[0].mxu0 %v631
        %v2117 = vpop.f32.mrb[0].mxu0
        %v2118 = vadd.f32 0.0, %v2117
        %v2119 = vpop.f32.mrb[0].mxu0
        %v2120 = vadd.f32 0.0, %v2119
        %v2121 = vpop.f32.mrb[0].mxu0
        %v2122 = vpop.f32.mrb[0].mxu0
        %2123 = vdwg.mxu0
        %2124 = vmatprep.subr.bf16.mxu0 %v1540
        %2125 = vmatpush1.bf16.msra.mxu0 %v1539
        %2126 = vmatprep.subr.bf16.mxu0 %v1548
        %2127 = vmatpush1.bf16.msra.mxu0 %v1547
        %2128 = vmatprep.subr.bf16.mxu0 %v1556
        %2129 = vmatpush1.bf16.msra.mxu0 %v1555
        %2130 = vmatprep.subr.bf16.mxu0 %v1564
        %2131 = vmatpush1.bf16.msra.mxu0 %v1563
        %2132 = vmatprep.subr.bf16.mxu0 %v1572
        %2133 = vmatpush1.bf16.msra.mxu0 %v1571
        %2134 = vmatprep.subr.bf16.mxu0 %v1580
        %2135 = vmatpush1.bf16.msra.mxu0 %v1579
        %2136 = vmatprep.subr.bf16.mxu0 %v1588
        %2137 = vmatpush1.bf16.msra.mxu0 %v1587
        %2138 = vmatprep.subr.bf16.mxu0 %v1596
        %2139 = vmatpush1.bf16.msra.mxu0 %v1595
        %2140 = vmatprep.subr.bf16.mxu0 %v1604
        %2141 = vmatpush1.bf16.msra.mxu0 %v1603
        %2142 = vmatprep.subr.bf16.mxu0 %v1612
        %2143 = vmatpush1.bf16.msra.mxu0 %v1611
        %2144 = vmatprep.subr.bf16.mxu0 %v1620
        %2145 = vmatpush1.bf16.msra.mxu0 %v1619
        %2146 = vmatprep.subr.bf16.mxu0 %v1628
        %2147 = vmatpush1.bf16.msra.mxu0 %v1627
        %2148 = vmatprep.subr.bf16.mxu0 %v1636
        %2149 = vmatpush1.bf16.msra.mxu0 %v1635
        %2150 = vmatprep.subr.bf16.mxu0 %v1644
        %2151 = vmatpush1.bf16.msra.mxu0 %v1643
        %2152 = vmatprep.subr.bf16.mxu0 %v1652
        %2153 = vmatpush1.bf16.msra.mxu0 %v1651
        %2154 = vmatprep.subr.bf16.mxu0 %v1660
        %2155 = vmatpush1.bf16.msra.mxu0 %v1659
        %2156 = vmatprep.mubr.bf16.mxu0 %v634
        %2157 = vmatmul.mubr.bf16.gmra.mrb[0].mxu0 %v633
        %v2158 = vpop.f32.mrb[0].mxu0
        %v2159 = vadd.f32 %v2118, %v2158
        %v2160 = vpop.f32.mrb[0].mxu0
        %v2161 = vadd.f32 %v2120, %v2160
        %v2162 = vpop.f32.mrb[0].mxu0
        %v2163 = vpop.f32.mrb[0].mxu0
        %2164 = vdwg.mxu0
        %2165 = vmatprep.subr.bf16.mxu0 %v1414
        %2166 = vmatpush1.bf16.msra.mxu0 %v1413
        %2167 = vmatprep.subr.bf16.mxu0 %v1422
        %2168 = vmatpush1.bf16.msra.mxu0 %v1421
        %2169 = vmatprep.subr.bf16.mxu0 %v1430
        %2170 = vmatpush1.bf16.msra.mxu0 %v1429
        %2171 = vmatprep.subr.bf16.mxu0 %v1438
        %2172 = vmatpush1.bf16.msra.mxu0 %v1437
        %2173 = vmatprep.subr.bf16.mxu0 %v1446
        %2174 = vmatpush1.bf16.msra.mxu0 %v1445
        %2175 = vmatprep.subr.bf16.mxu0 %v1454
        %2176 = vmatpush1.bf16.msra.mxu0 %v1453
        %2177 = vmatprep.subr.bf16.mxu0 %v1462
        %2178 = vmatpush1.bf16.msra.mxu0 %v1461
        %2179 = vmatprep.subr.bf16.mxu0 %v1470
        %2180 = vmatpush1.bf16.msra.mxu0 %v1469
        %2181 = vmatprep.subr.bf16.mxu0 %v1478
        %2182 = vmatpush1.bf16.msra.mxu0 %v1477
        %2183 = vmatprep.subr.bf16.mxu0 %v1486
        %2184 = vmatpush1.bf16.msra.mxu0 %v1485
        %2185 = vmatprep.subr.bf16.mxu0 %v1494
        %2186 = vmatpush1.bf16.msra.mxu0 %v1493
        %2187 = vmatprep.subr.bf16.mxu0 %v1502
        %2188 = vmatpush1.bf16.msra.mxu0 %v1501
        %2189 = vmatprep.subr.bf16.mxu0 %v1510
        %2190 = vmatpush1.bf16.msra.mxu0 %v1509
        %2191 = vmatprep.subr.bf16.mxu0 %v1518
        %2192 = vmatpush1.bf16.msra.mxu0 %v1517
        %2193 = vmatprep.subr.bf16.mxu0 %v1526
        %2194 = vmatpush1.bf16.msra.mxu0 %v1525
        %2195 = vmatprep.subr.bf16.mxu0 %v1534
        %2196 = vmatpush1.bf16.msra.mxu0 %v1533
        %2197 = vmatprep.mubr.bf16.mxu0 %v632
        %2198 = vmatmul.mubr.bf16.gmra.mrb[0].mxu0 %v631
        %v2199 = vpop.f32.mrb[0].mxu0
        %v2200 = vadd.f32 0.0, %v2199
        %v2201 = vpop.f32.mrb[0].mxu0
        %v2202 = vadd.f32 0.0, %v2201
        %v2203 = vpop.f32.mrb[0].mxu0
        %v2204 = vpop.f32.mrb[0].mxu0
        %2205 = vdwg.mxu0
        %2206 = vmatprep.subr.bf16.mxu0 %v1542
        %2207 = vmatpush1.bf16.msra.mxu0 %v1541
        %2208 = vmatprep.subr.bf16.mxu0 %v1550
        %2209 = vmatpush1.bf16.msra.mxu0 %v1549
        %2210 = vmatprep.subr.bf16.mxu0 %v1558
        %2211 = vmatpush1.bf16.msra.mxu0 %v1557
        %2212 = vmatprep.subr.bf16.mxu0 %v1566
        %2213 = vmatpush1.bf16.msra.mxu0 %v1565
        %2214 = vmatprep.subr.bf16.mxu0 %v1574
        %2215 = vmatpush1.bf16.msra.mxu0 %v1573
        %2216 = vmatprep.subr.bf16.mxu0 %v1582
        %2217 = vmatpush1.bf16.msra.mxu0 %v1581
        %2218 = vmatprep.subr.bf16.mxu0 %v1590
        %2219 = vmatpush1.bf16.msra.mxu0 %v1589
        %2220 = vmatprep.subr.bf16.mxu0 %v1598
        %2221 = vmatpush1.bf16.msra.mxu0 %v1597
        %2222 = vmatprep.subr.bf16.mxu0 %v1606
        %2223 = vmatpush1.bf16.msra.mxu0 %v1605
        %2224 = vmatprep.subr.bf16.mxu0 %v1614
        %2225 = vmatpush1.bf16.msra.mxu0 %v1613
        %2226 = vmatprep.subr.bf16.mxu0 %v1622
        %2227 = vmatpush1.bf16.msra.mxu0 %v1621
        %2228 = vmatprep.subr.bf16.mxu0 %v1630
        %2229 = vmatpush1.bf16.msra.mxu0 %v1629
        %2230 = vmatprep.subr.bf16.mxu0 %v1638
        %2231 = vmatpush1.bf16.msra.mxu0 %v1637
        %2232 = vmatprep.subr.bf16.mxu0 %v1646
        %2233 = vmatpush1.bf16.msra.mxu0 %v1645
        %2234 = vmatprep.subr.bf16.mxu0 %v1654
        %2235 = vmatpush1.bf16.msra.mxu0 %v1653
        %2236 = vmatprep.subr.bf16.mxu0 %v1662
        %2237 = vmatpush1.bf16.msra.mxu0 %v1661
        %2238 = vmatprep.mubr.bf16.mxu0 %v634
        %2239 = vmatmul.mubr.bf16.gmra.mrb[0].mxu0 %v633
        %v2240 = vpop.f32.mrb[0].mxu0
        %v2241 = vadd.f32 %v2200, %v2240
        %v2242 = vpop.f32.mrb[0].mxu0
        %v2243 = vadd.f32 %v2202, %v2242
        %v2244 = vpop.f32.mrb[0].mxu0
        %v2245 = vpop.f32.mrb[0].mxu0
        %2246 = vdwg.mxu0
        %v2263 = vunpack.c.l.b16 %v351
        %v2264 = vunpack.c.h.b16 %v351
        %v2265 = vunpack.c.l.b16 %v352
        %v2266 = vunpack.c.h.b16 %v352
        %v2267 = vunpack.c.l.b16 %v353
        %v2268 = vunpack.c.h.b16 %v353
        %v2269 = vunpack.c.l.b16 %v354
        %v2270 = vunpack.c.h.b16 %v354
        %v2271 = vunpack.c.l.b16 %v355
        %v2272 = vunpack.c.h.b16 %v355
        %v2273 = vunpack.c.l.b16 %v356
        %v2274 = vunpack.c.h.b16 %v356
        %v2275 = vunpack.c.l.b16 %v357
        %v2276 = vunpack.c.h.b16 %v357
        %v2277 = vunpack.c.l.b16 %v358
        %v2278 = vunpack.c.h.b16 %v358
        %v2279 = vunpack.c.l.b16 %v359
        %v2280 = vunpack.c.h.b16 %v359
        %v2281 = vunpack.c.l.b16 %v360
        %v2282 = vunpack.c.h.b16 %v360
        %v2283 = vunpack.c.l.b16 %v361
        %v2284 = vunpack.c.h.b16 %v361
        %v2285 = vunpack.c.l.b16 %v362
        %v2286 = vunpack.c.h.b16 %v362
        %v2287 = vunpack.c.l.b16 %v363
        %v2288 = vunpack.c.h.b16 %v363
        %v2289 = vunpack.c.l.b16 %v364
        %v2290 = vunpack.c.h.b16 %v364
        %v2291 = vunpack.c.l.b16 %v365
        %v2292 = vunpack.c.h.b16 %v365
        %v2293 = vunpack.c.l.b16 %v366
        %v2294 = vunpack.c.h.b16 %v366
        %v2295 = vpack.c.b16 %v2271, %v2263
        %v2296 = vpack.c.b16 %v2272, %v2264
        %v2297 = vpack.c.b16 %v2273, %v2265
        %v2298 = vpack.c.b16 %v2274, %v2266
        %v2299 = vpack.c.b16 %v2275, %v2267
        %v2300 = vpack.c.b16 %v2276, %v2268
        %v2301 = vpack.c.b16 %v2277, %v2269
        %v2302 = vpack.c.b16 %v2278, %v2270
        %v2303 = vpack.c.b16 %v2287, %v2279
        %v2304 = vpack.c.b16 %v2288, %v2280
        %v2305 = vpack.c.b16 %v2289, %v2281
        %v2306 = vpack.c.b16 %v2290, %v2282
        %v2307 = vpack.c.b16 %v2291, %v2283
        %v2308 = vpack.c.b16 %v2292, %v2284
        %v2309 = vpack.c.b16 %v2293, %v2285
        %v2310 = vpack.c.b16 %v2294, %v2286
        %vm2327 = vcmask 261120
        %v2329 = vsel %vm2327, %v350, 0
        %2331 = vmatprep.subr.bf16.mxu0 %v2296
        %2332 = vmatpush1.bf16.msra.mxu0 %v2295
        %2333 = vmatprep.subr.bf16.mxu0 %v2304
        %2334 = vmatpush1.bf16.msra.mxu0 %v2303
        %2335 = vmatprep.subr.bf16.mxu0 0
        %2336 = vmatpush1.bf16.msra.mxu0 0
        %2337 = vmatprep.subr.bf16.mxu0 0
        %2338 = vmatpush1.bf16.msra.mxu0 0
        %2339 = vmatprep.subr.bf16.mxu0 0
        %2340 = vmatpush1.bf16.msra.mxu0 0
        %2341 = vmatprep.subr.bf16.mxu0 0
        %2342 = vmatpush1.bf16.msra.mxu0 0
        %2343 = vmatprep.subr.bf16.mxu0 0
        %2344 = vmatpush1.bf16.msra.mxu0 0
        %2345 = vmatprep.subr.bf16.mxu0 0
        %2346 = vmatpush1.bf16.msra.mxu0 0
        %2347 = vmatprep.subr.bf16.mxu0 0
        %2348 = vmatpush1.bf16.msra.mxu0 0
        %2349 = vmatprep.subr.bf16.mxu0 0
        %2350 = vmatpush1.bf16.msra.mxu0 0
        %2351 = vmatprep.subr.bf16.mxu0 0
        %2352 = vmatpush1.bf16.msra.mxu0 0
        %2353 = vmatprep.subr.bf16.mxu0 0
        %2354 = vmatpush1.bf16.msra.mxu0 0
        %2355 = vmatprep.subr.bf16.mxu0 0
        %2356 = vmatpush1.bf16.msra.mxu0 0
        %2357 = vmatprep.subr.bf16.mxu0 0
        %2358 = vmatpush1.bf16.msra.mxu0 0
        %2359 = vmatprep.subr.bf16.mxu0 0
        %2360 = vmatpush1.bf16.msra.mxu0 0
        %2361 = vmatprep.subr.bf16.mxu0 0
        %2362 = vmatpush1.bf16.msra.mxu0 0
        %2363 = vmatprep.mubr.bf16.mxu0 0
        %2364 = vmatmul.mubr.bf16.gmra.mrb[0].mxu0 %v2329
        %v2365 = vpop.f32.mrb[0].mxu0
        %v2366 = vadd.f32 %v1995, %v2365
        %v2367 = vpop.f32.mrb[0].mxu0
        %v2368 = vadd.f32 %v1997, %v2367
        %v2369 = vpop.f32.mrb[0].mxu0
        %v2370 = vpop.f32.mrb[0].mxu0
        %2371 = vdwg.mxu0
        %2372 = vmatprep.subr.bf16.mxu0 %v2298
        %2373 = vmatpush1.bf16.msra.mxu0 %v2297
        %2374 = vmatprep.subr.bf16.mxu0 %v2306
        %2375 = vmatpush1.bf16.msra.mxu0 %v2305
        %2376 = vmatprep.subr.bf16.mxu0 0
        %2377 = vmatpush1.bf16.msra.mxu0 0
        %2378 = vmatprep.subr.bf16.mxu0 0
        %2379 = vmatpush1.bf16.msra.mxu0 0
        %2380 = vmatprep.subr.bf16.mxu0 0
        %2381 = vmatpush1.bf16.msra.mxu0 0
        %2382 = vmatprep.subr.bf16.mxu0 0
        %2383 = vmatpush1.bf16.msra.mxu0 0
        %2384 = vmatprep.subr.bf16.mxu0 0
        %2385 = vmatpush1.bf16.msra.mxu0 0
        %2386 = vmatprep.subr.bf16.mxu0 0
        %2387 = vmatpush1.bf16.msra.mxu0 0
        %2388 = vmatprep.subr.bf16.mxu0 0
        %2389 = vmatpush1.bf16.msra.mxu0 0
        %2390 = vmatprep.subr.bf16.mxu0 0
        %2391 = vmatpush1.bf16.msra.mxu0 0
        %2392 = vmatprep.subr.bf16.mxu0 0
        %2393 = vmatpush1.bf16.msra.mxu0 0
        %2394 = vmatprep.subr.bf16.mxu0 0
        %2395 = vmatpush1.bf16.msra.mxu0 0
        %2396 = vmatprep.subr.bf16.mxu0 0
        %2397 = vmatpush1.bf16.msra.mxu0 0
        %2398 = vmatprep.subr.bf16.mxu0 0
        %2399 = vmatpush1.bf16.msra.mxu0 0
        %2400 = vmatprep.subr.bf16.mxu0 0
        %2401 = vmatpush1.bf16.msra.mxu0 0
        %2402 = vmatprep.subr.bf16.mxu0 0
        %2403 = vmatpush1.bf16.msra.mxu0 0
        %2404 = vmatprep.mubr.bf16.mxu0 0
        %2405 = vmatmul.mubr.bf16.gmra.mrb[0].mxu0 %v2329
        %v2406 = vpop.f32.mrb[0].mxu0
        %v2407 = vadd.f32 %v2077, %v2406
        %v2408 = vpop.f32.mrb[0].mxu0
        %v2409 = vadd.f32 %v2079, %v2408
        %v2410 = vpop.f32.mrb[0].mxu0
        %v2411 = vpop.f32.mrb[0].mxu0
        %2412 = vdwg.mxu0
        %2413 = vmatprep.subr.bf16.mxu0 %v2300
        %2414 = vmatpush1.bf16.msra.mxu0 %v2299
        %2415 = vmatprep.subr.bf16.mxu0 %v2308
        %2416 = vmatpush1.bf16.msra.mxu0 %v2307
        %2417 = vmatprep.subr.bf16.mxu0 0
        %2418 = vmatpush1.bf16.msra.mxu0 0
        %2419 = vmatprep.subr.bf16.mxu0 0
        %2420 = vmatpush1.bf16.msra.mxu0 0
        %2421 = vmatprep.subr.bf16.mxu0 0
        %2422 = vmatpush1.bf16.msra.mxu0 0
        %2423 = vmatprep.subr.bf16.mxu0 0
        %2424 = vmatpush1.bf16.msra.mxu0 0
        %2425 = vmatprep.subr.bf16.mxu0 0
        %2426 = vmatpush1.bf16.msra.mxu0 0
        %2427 = vmatprep.subr.bf16.mxu0 0
        %2428 = vmatpush1.bf16.msra.mxu0 0
        %2429 = vmatprep.subr.bf16.mxu0 0
        %2430 = vmatpush1.bf16.msra.mxu0 0
        %2431 = vmatprep.subr.bf16.mxu0 0
        %2432 = vmatpush1.bf16.msra.mxu0 0
        %2433 = vmatprep.subr.bf16.mxu0 0
        %2434 = vmatpush1.bf16.msra.mxu0 0
        %2435 = vmatprep.subr.bf16.mxu0 0
        %2436 = vmatpush1.bf16.msra.mxu0 0
        %2437 = vmatprep.subr.bf16.mxu0 0
        %2438 = vmatpush1.bf16.msra.mxu0 0
        %2439 = vmatprep.subr.bf16.mxu0 0
        %2440 = vmatpush1.bf16.msra.mxu0 0
        %2441 = vmatprep.subr.bf16.mxu0 0
        %2442 = vmatpush1.bf16.msra.mxu0 0
        %2443 = vmatprep.subr.bf16.mxu0 0
        %2444 = vmatpush1.bf16.msra.mxu0 0
        %2445 = vmatprep.mubr.bf16.mxu0 0
        %2446 = vmatmul.mubr.bf16.gmra.mrb[0].mxu0 %v2329
        %v2447 = vpop.f32.mrb[0].mxu0
        %v2448 = vadd.f32 %v2159, %v2447
        %v2449 = vpop.f32.mrb[0].mxu0
        %v2450 = vadd.f32 %v2161, %v2449
        %v2451 = vpop.f32.mrb[0].mxu0
        %v2452 = vpop.f32.mrb[0].mxu0
        %2453 = vdwg.mxu0
        %2454 = vmatprep.subr.bf16.mxu0 %v2302
        %2455 = vmatpush1.bf16.msra.mxu0 %v2301
        %2456 = vmatprep.subr.bf16.mxu0 %v2310
        %2457 = vmatpush1.bf16.msra.mxu0 %v2309
        %2458 = vmatprep.subr.bf16.mxu0 0
        %2459 = vmatpush1.bf16.msra.mxu0 0
        %2460 = vmatprep.subr.bf16.mxu0 0
        %2461 = vmatpush1.bf16.msra.mxu0 0
        %2462 = vmatprep.subr.bf16.mxu0 0
        %2463 = vmatpush1.bf16.msra.mxu0 0
        %2464 = vmatprep.subr.bf16.mxu0 0
        %2465 = vmatpush1.bf16.msra.mxu0 0
        %2466 = vmatprep.subr.bf16.mxu0 0
        %2467 = vmatpush1.bf16.msra.mxu0 0
        %2468 = vmatprep.subr.bf16.mxu0 0
        %2469 = vmatpush1.bf16.msra.mxu0 0
        %2470 = vmatprep.subr.bf16.mxu0 0
        %2471 = vmatpush1.bf16.msra.mxu0 0
        %2472 = vmatprep.subr.bf16.mxu0 0
        %2473 = vmatpush1.bf16.msra.mxu0 0
        %2474 = vmatprep.subr.bf16.mxu0 0
        %2475 = vmatpush1.bf16.msra.mxu0 0
        %2476 = vmatprep.subr.bf16.mxu0 0
        %2477 = vmatpush1.bf16.msra.mxu0 0
        %2478 = vmatprep.subr.bf16.mxu0 0
        %2479 = vmatpush1.bf16.msra.mxu0 0
        %2480 = vmatprep.subr.bf16.mxu0 0
        %2481 = vmatpush1.bf16.msra.mxu0 0
        %2482 = vmatprep.subr.bf16.mxu0 0
        %2483 = vmatpush1.bf16.msra.mxu0 0
        %2484 = vmatprep.subr.bf16.mxu0 0
        %2485 = vmatpush1.bf16.msra.mxu0 0
        %2486 = vmatprep.mubr.bf16.mxu0 0
        %2487 = vmatmul.mubr.bf16.gmra.mrb[0].mxu0 %v2329
        %v2488 = vpop.f32.mrb[0].mxu0
        %v2489 = vadd.f32 %v2241, %v2488
        %v2490 = vpop.f32.mrb[0].mxu0
        %v2491 = vadd.f32 %v2243, %v2490
        %v2492 = vpop.f32.mrb[0].mxu0
        %v2493 = vpop.f32.mrb[0].mxu0
        %2494 = vdwg.mxu0
        %v2495 = vld [vmem:[%s4] sm:$0xff]
        %v2497 = vlaneseq
        %v2498 = vshrl.u32 %v2497, 7
        %v2499 = vsub.s32 0, %v2498
        %v2500 = vrot.slane %v2495, %v2499
        %v2501 = vlaneseq
        %v2502 = vshrl.u32 %v2501, 7
        %v2503 = vsub.s32 1, %v2502
        %v2504 = vrot.slane %v2495, %v2503
        %v2505 = vlaneseq
        %v2506 = vshrl.u32 %v2505, 7
        %v2507 = vsub.s32 2, %v2506
        %v2508 = vrot.slane %v2495, %v2507
        %v2509 = vlaneseq
        %v2510 = vshrl.u32 %v2509, 7
        %v2511 = vsub.s32 3, %v2510
        %v2512 = vrot.slane %v2495, %v2511
        %v2513 = vlaneseq
        %v2514 = vshrl.u32 %v2513, 7
        %v2515 = vsub.s32 4, %v2514
        %v2516 = vrot.slane %v2495, %v2515
        %v2517 = vlaneseq
        %v2518 = vshrl.u32 %v2517, 7
        %v2519 = vsub.s32 5, %v2518
        %v2520 = vrot.slane %v2495, %v2519
        %v2521 = vlaneseq
        %v2522 = vshrl.u32 %v2521, 7
        %v2523 = vsub.s32 6, %v2522
        %v2524 = vrot.slane %v2495, %v2523
        %v2525 = vlaneseq
        %v2526 = vshrl.u32 %v2525, 7
        %v2527 = vsub.s32 7, %v2526
        %v2528 = vrot.slane %v2495, %v2527
        %v2537 = vadd.f32 %v2366, %v2500
        %v2538 = vadd.f32 %v2368, %v2504
        %v2539 = vadd.f32 %v2407, %v2508
        %v2540 = vadd.f32 %v2409, %v2512
        %v2541 = vadd.f32 %v2448, %v2516
        %v2542 = vadd.f32 %v2450, %v2520
        %v2543 = vadd.f32 %v2489, %v2524
        %v2544 = vadd.f32 %v2491, %v2528
        %vm2545 = vcmp.gt.f32.partialorder %v2537, 0.0
        %vm2546 = vcmp.gt.f32.partialorder %v2538, 0.0
        %vm2547 = vcmp.gt.f32.partialorder %v2539, 0.0
        %vm2548 = vcmp.gt.f32.partialorder %v2540, 0.0
        %vm2549 = vcmp.gt.f32.partialorder %v2541, 0.0
        %vm2550 = vcmp.gt.f32.partialorder %v2542, 0.0
        %vm2551 = vcmp.gt.f32.partialorder %v2543, 0.0
        %vm2552 = vcmp.gt.f32.partialorder %v2544, 0.0
        %v2553 = vmul.f32 %v2537, 0.01
        %v2554 = vmul.f32 %v2538, 0.01
        %v2555 = vmul.f32 %v2539, 0.01
        %v2556 = vmul.f32 %v2540, 0.01
        %v2557 = vmul.f32 %v2541, 0.01
        %v2558 = vmul.f32 %v2542, 0.01
        %v2559 = vmul.f32 %v2543, 0.01
        %v2560 = vmul.f32 %v2544, 0.01
        %v2561 = vsel %vm2545, %v2537, %v2553
        %v2562 = vsel %vm2546, %v2538, %v2554
        %v2563 = vsel %vm2547, %v2539, %v2555
        %v2564 = vsel %vm2548, %v2540, %v2556
        %v2565 = vsel %vm2549, %v2541, %v2557
        %v2566 = vsel %vm2550, %v2542, %v2558
        %v2567 = vsel %vm2551, %v2543, %v2559
        %v2568 = vsel %vm2552, %v2544, %v2560
        %v2569 = vpack.c.bf16 %v2561, %v2561
        %v2570 = vpack.c.bf16 %v2562, %v2562
        %v2571 = vpack.c.bf16 %v2563, %v2563
        %v2572 = vpack.c.bf16 %v2564, %v2564
        %v2573 = vpack.c.bf16 %v2565, %v2565
        %v2574 = vpack.c.bf16 %v2566, %v2566
        %v2575 = vpack.c.bf16 %v2567, %v2567
        %v2576 = vpack.c.bf16 %v2568, %v2568
        %v2577 = vld [vmem:[%s5] sm:$0xf]
        %v2578 = vld [vmem:[%s5 + $0x4] sm:$0xf]
        %v2579 = vld [vmem:[%s5 + $0x8] sm:$0xf]
        %v2580 = vld [vmem:[%s5 + $0xc] sm:$0xf]
        %v2581 = vld [vmem:[%s5 + $0x10] sm:$0xf]
        %v2582 = vld [vmem:[%s5 + $0x14] sm:$0xf]
        %v2583 = vld [vmem:[%s5 + $0x18] sm:$0xf]
        %v2584 = vld [vmem:[%s5 + $0x1c] sm:$0xf]
        %v2585 = vld [vmem:[%s5 + $0x20] sm:$0xf]
        %v2586 = vld [vmem:[%s5 + $0x24] sm:$0xf]
        %v2587 = vld [vmem:[%s5 + $0x28] sm:$0xf]
        %v2588 = vld [vmem:[%s5 + $0x2c] sm:$0xf]
        %v2589 = vld [vmem:[%s5 + $0x30] sm:$0xf]
        %v2590 = vld [vmem:[%s5 + $0x34] sm:$0xf]
        %v2591 = vld [vmem:[%s5 + $0x38] sm:$0xf]
        %v2592 = vld [vmem:[%s5 + $0x3c] sm:$0xf]
        %v2593 = vld [vmem:[%s5 + $0x40] sm:$0xf]
        %v2594 = vld [vmem:[%s5 + $0x44] sm:$0xf]
        %v2595 = vld [vmem:[%s5 + $0x48] sm:$0xf]
        %v2596 = vld [vmem:[%s5 + $0x4c] sm:$0xf]
        %v2597 = vld [vmem:[%s5 + $0x50] sm:$0xf]
        %v2598 = vld [vmem:[%s5 + $0x54] sm:$0xf]
        %v2599 = vld [vmem:[%s5 + $0x58] sm:$0xf]
        %v2600 = vld [vmem:[%s5 + $0x5c] sm:$0xf]
        %v2601 = vld [vmem:[%s5 + $0x60] sm:$0xf]
        %v2602 = vld [vmem:[%s5 + $0x64] sm:$0xf]
        %v2603 = vld [vmem:[%s5 + $0x68] sm:$0xf]
        %v2604 = vld [vmem:[%s5 + $0x6c] sm:$0xf]
        %v2605 = vld [vmem:[%s5 + $0x70] sm:$0xf]
        %v2606 = vld [vmem:[%s5 + $0x74] sm:$0xf]
        %v2607 = vld [vmem:[%s5 + $0x78] sm:$0xf]
        %v2608 = vld [vmem:[%s5 + $0x7c] sm:$0xf]
        %v2609 = vld [vmem:[%s5 + $0x80] sm:$0xf]
        %v2610 = vld [vmem:[%s5 + $0x84] sm:$0xf]
        %v2611 = vld [vmem:[%s5 + $0x88] sm:$0xf]
        %v2612 = vld [vmem:[%s5 + $0x8c] sm:$0xf]
        %v2613 = vld [vmem:[%s5 + $0x90] sm:$0xf]
        %v2614 = vld [vmem:[%s5 + $0x94] sm:$0xf]
        %v2615 = vld [vmem:[%s5 + $0x98] sm:$0xf]
        %v2616 = vld [vmem:[%s5 + $0x9c] sm:$0xf]
        %v2617 = vld [vmem:[%s5 + $0xa0] sm:$0xf]
        %v2618 = vld [vmem:[%s5 + $0xa4] sm:$0xf]
        %v2619 = vld [vmem:[%s5 + $0xa8] sm:$0xf]
        %v2620 = vld [vmem:[%s5 + $0xac] sm:$0xf]
        %v2621 = vld [vmem:[%s5 + $0xb0] sm:$0xf]
        %v2622 = vld [vmem:[%s5 + $0xb4] sm:$0xf]
        %v2623 = vld [vmem:[%s5 + $0xb8] sm:$0xf]
        %v2624 = vld [vmem:[%s5 + $0xbc] sm:$0xf]
        %v2625 = vld [vmem:[%s5 + $0xc0] sm:$0xf]
        %v2626 = vld [vmem:[%s5 + $0xc4] sm:$0xf]
        %v2627 = vld [vmem:[%s5 + $0xc8] sm:$0xf]
        %v2628 = vld [vmem:[%s5 + $0xcc] sm:$0xf]
        %v2629 = vld [vmem:[%s5 + $0xd0] sm:$0xf]
        %v2630 = vld [vmem:[%s5 + $0xd4] sm:$0xf]
        %v2631 = vld [vmem:[%s5 + $0xd8] sm:$0xf]
        %v2632 = vld [vmem:[%s5 + $0xdc] sm:$0xf]
        %v2633 = vld [vmem:[%s5 + $0xe0] sm:$0xf]
        %v2634 = vld [vmem:[%s5 + $0xe4] sm:$0xf]
        %v2635 = vld [vmem:[%s5 + $0xe8] sm:$0xf]
        %v2636 = vld [vmem:[%s5 + $0xec] sm:$0xf]
        %v2637 = vld [vmem:[%s5 + $0xf0] sm:$0xf]
        %v2638 = vld [vmem:[%s5 + $0xf4] sm:$0xf]
        %v2639 = vld [vmem:[%s5 + $0xf8] sm:$0xf]
        %v2640 = vld [vmem:[%s5 + $0xfc] sm:$0xf]
        %v2641 = vld [vmem:[%s5 + $0x100] sm:$0xf]
        %v2642 = vld [vmem:[%s5 + $0x104] sm:$0xf]
        %v2643 = vld [vmem:[%s5 + $0x108] sm:$0xf]
        %v2644 = vld [vmem:[%s5 + $0x10c] sm:$0xf]
        %v2645 = vld [vmem:[%s5 + $0x110] sm:$0xf]
        %v2646 = vld [vmem:[%s5 + $0x114] sm:$0xf]
        %v2647 = vld [vmem:[%s5 + $0x118] sm:$0xf]
        %v2648 = vld [vmem:[%s5 + $0x11c] sm:$0xf]
        %v2649 = vld [vmem:[%s5 + $0x120] sm:$0xf]
        %v2650 = vld [vmem:[%s5 + $0x124] sm:$0xf]
        %v2651 = vld [vmem:[%s5 + $0x128] sm:$0xf]
        %v2652 = vld [vmem:[%s5 + $0x12c] sm:$0xf]
        %v2653 = vld [vmem:[%s5 + $0x130] sm:$0xf]
        %v2654 = vld [vmem:[%s5 + $0x134] sm:$0xf]
        %v2655 = vld [vmem:[%s5 + $0x138] sm:$0xf]
        %v2656 = vld [vmem:[%s5 + $0x13c] sm:$0xf]
        %v2657 = vld [vmem:[%s5 + $0x140] sm:$0xf]
        %v2658 = vld [vmem:[%s5 + $0x144] sm:$0xf]
        %v2659 = vld [vmem:[%s5 + $0x148] sm:$0xf]
        %v2660 = vld [vmem:[%s5 + $0x14c] sm:$0xf]
        %v2661 = vld [vmem:[%s5 + $0x150] sm:$0xf]
        %v2662 = vld [vmem:[%s5 + $0x154] sm:$0xf]
        %v2663 = vld [vmem:[%s5 + $0x158] sm:$0xf]
        %v2664 = vld [vmem:[%s5 + $0x15c] sm:$0xf]
        %v2665 = vld [vmem:[%s5 + $0x160] sm:$0xf]
        %v2666 = vld [vmem:[%s5 + $0x164] sm:$0xf]
        %v2667 = vld [vmem:[%s5 + $0x168] sm:$0xf]
        %v2668 = vld [vmem:[%s5 + $0x16c] sm:$0xf]
        %v2669 = vld [vmem:[%s5 + $0x170] sm:$0xf]
        %v2670 = vld [vmem:[%s5 + $0x174] sm:$0xf]
        %v2671 = vld [vmem:[%s5 + $0x178] sm:$0xf]
        %v2672 = vld [vmem:[%s5 + $0x17c] sm:$0xf]
        %v2673 = vld [vmem:[%s5 + $0x180] sm:$0xf]
        %v2674 = vld [vmem:[%s5 + $0x184] sm:$0xf]
        %v2675 = vld [vmem:[%s5 + $0x188] sm:$0xf]
        %v2676 = vld [vmem:[%s5 + $0x18c] sm:$0xf]
        %v2677 = vld [vmem:[%s5 + $0x190] sm:$0xf]
        %v2678 = vld [vmem:[%s5 + $0x194] sm:$0xf]
        %v2679 = vld [vmem:[%s5 + $0x198] sm:$0xf]
        %v2680 = vld [vmem:[%s5 + $0x19c] sm:$0xf]
        %v2681 = vld [vmem:[%s5 + $0x1a0] sm:$0xf]
        %v2682 = vld [vmem:[%s5 + $0x1a4] sm:$0xf]
        %v2683 = vld [vmem:[%s5 + $0x1a8] sm:$0xf]
        %v2684 = vld [vmem:[%s5 + $0x1ac] sm:$0xf]
        %v2685 = vld [vmem:[%s5 + $0x1b0] sm:$0xf]
        %v2686 = vld [vmem:[%s5 + $0x1b4] sm:$0xf]
        %v2687 = vld [vmem:[%s5 + $0x1b8] sm:$0xf]
        %v2688 = vld [vmem:[%s5 + $0x1bc] sm:$0xf]
        %v2689 = vld [vmem:[%s5 + $0x1c0] sm:$0xf]
        %v2690 = vld [vmem:[%s5 + $0x1c4] sm:$0xf]
        %v2691 = vld [vmem:[%s5 + $0x1c8] sm:$0xf]
        %v2692 = vld [vmem:[%s5 + $0x1cc] sm:$0xf]
        %v2693 = vld [vmem:[%s5 + $0x1d0] sm:$0xf]
        %v2694 = vld [vmem:[%s5 + $0x1d4] sm:$0xf]
        %v2695 = vld [vmem:[%s5 + $0x1d8] sm:$0xf]
        %v2696 = vld [vmem:[%s5 + $0x1dc] sm:$0xf]
        %v2697 = vld [vmem:[%s5 + $0x1e0] sm:$0xf]
        %v2698 = vld [vmem:[%s5 + $0x1e4] sm:$0xf]
        %v2699 = vld [vmem:[%s5 + $0x1e8] sm:$0xf]
        %v2700 = vld [vmem:[%s5 + $0x1ec] sm:$0xf]
        %v2701 = vld [vmem:[%s5 + $0x1f0] sm:$0xf]
        %v2702 = vld [vmem:[%s5 + $0x1f4] sm:$0xf]
        %v2703 = vld [vmem:[%s5 + $0x1f8] sm:$0xf]
        %v2704 = vld [vmem:[%s5 + $0x1fc] sm:$0xf]
        %v2705 = vld [vmem:[%s6] sm:$0x1]
        %v2707 = vlaneseq
        %v2708 = vshrl.u32 %v2707, 7
        %v2709 = vsub.s32 0, %v2708
        %v2710 = vrot.slane %v2705, %v2709
        %v2840 = vunpack.c.l.b16 %v2577
        %v2841 = vunpack.c.l.b16 %v2578
        %v2842 = vunpack.c.l.b16 %v2579
        %v2843 = vunpack.c.l.b16 %v2580
        %v2844 = vunpack.c.l.b16 %v2581
        %v2845 = vunpack.c.l.b16 %v2582
        %v2846 = vunpack.c.l.b16 %v2583
        %v2847 = vunpack.c.l.b16 %v2584
        %v2848 = vunpack.c.l.b16 %v2585
        %v2849 = vunpack.c.l.b16 %v2586
        %v2850 = vunpack.c.l.b16 %v2587
        %v2851 = vunpack.c.l.b16 %v2588
        %v2852 = vunpack.c.l.b16 %v2589
        %v2853 = vunpack.c.l.b16 %v2590
        %v2854 = vunpack.c.l.b16 %v2591
        %v2855 = vunpack.c.l.b16 %v2592
        %v2856 = vunpack.c.l.b16 %v2593
        %v2857 = vunpack.c.l.b16 %v2594
        %v2858 = vunpack.c.l.b16 %v2595
        %v2859 = vunpack.c.l.b16 %v2596
        %v2860 = vunpack.c.l.b16 %v2597
        %v2861 = vunpack.c.l.b16 %v2598
        %v2862 = vunpack.c.l.b16 %v2599
        %v2863 = vunpack.c.l.b16 %v2600
        %v2864 = vunpack.c.l.b16 %v2601
        %v2865 = vunpack.c.l.b16 %v2602
        %v2866 = vunpack.c.l.b16 %v2603
        %v2867 = vunpack.c.l.b16 %v2604
        %v2868 = vunpack.c.l.b16 %v2605
        %v2869 = vunpack.c.l.b16 %v2606
        %v2870 = vunpack.c.l.b16 %v2607
        %v2871 = vunpack.c.l.b16 %v2608
        %v2872 = vunpack.c.l.b16 %v2609
        %v2873 = vunpack.c.l.b16 %v2610
        %v2874 = vunpack.c.l.b16 %v2611
        %v2875 = vunpack.c.l.b16 %v2612
        %v2876 = vunpack.c.l.b16 %v2613
        %v2877 = vunpack.c.l.b16 %v2614
        %v2878 = vunpack.c.l.b16 %v2615
        %v2879 = vunpack.c.l.b16 %v2616
        %v2880 = vunpack.c.l.b16 %v2617
        %v2881 = vunpack.c.l.b16 %v2618
        %v2882 = vunpack.c.l.b16 %v2619
        %v2883 = vunpack.c.l.b16 %v2620
        %v2884 = vunpack.c.l.b16 %v2621
        %v2885 = vunpack.c.l.b16 %v2622
        %v2886 = vunpack.c.l.b16 %v2623
        %v2887 = vunpack.c.l.b16 %v2624
        %v2888 = vunpack.c.l.b16 %v2625
        %v2889 = vunpack.c.l.b16 %v2626
        %v2890 = vunpack.c.l.b16 %v2627
        %v2891 = vunpack.c.l.b16 %v2628
        %v2892 = vunpack.c.l.b16 %v2629
        %v2893 = vunpack.c.l.b16 %v2630
        %v2894 = vunpack.c.l.b16 %v2631
        %v2895 = vunpack.c.l.b16 %v2632
        %v2896 = vunpack.c.l.b16 %v2633
        %v2897 = vunpack.c.l.b16 %v2634
        %v2898 = vunpack.c.l.b16 %v2635
        %v2899 = vunpack.c.l.b16 %v2636
        %v2900 = vunpack.c.l.b16 %v2637
        %v2901 = vunpack.c.l.b16 %v2638
        %v2902 = vunpack.c.l.b16 %v2639
        %v2903 = vunpack.c.l.b16 %v2640
        %v2904 = vunpack.c.l.b16 %v2641
        %v2905 = vunpack.c.l.b16 %v2642
        %v2906 = vunpack.c.l.b16 %v2643
        %v2907 = vunpack.c.l.b16 %v2644
        %v2908 = vunpack.c.l.b16 %v2645
        %v2909 = vunpack.c.l.b16 %v2646
        %v2910 = vunpack.c.l.b16 %v2647
        %v2911 = vunpack.c.l.b16 %v2648
        %v2912 = vunpack.c.l.b16 %v2649
        %v2913 = vunpack.c.l.b16 %v2650
        %v2914 = vunpack.c.l.b16 %v2651
        %v2915 = vunpack.c.l.b16 %v2652
        %v2916 = vunpack.c.l.b16 %v2653
        %v2917 = vunpack.c.l.b16 %v2654
        %v2918 = vunpack.c.l.b16 %v2655
        %v2919 = vunpack.c.l.b16 %v2656
        %v2920 = vunpack.c.l.b16 %v2657
        %v2921 = vunpack.c.l.b16 %v2658
        %v2922 = vunpack.c.l.b16 %v2659
        %v2923 = vunpack.c.l.b16 %v2660
        %v2924 = vunpack.c.l.b16 %v2661
        %v2925 = vunpack.c.l.b16 %v2662
        %v2926 = vunpack.c.l.b16 %v2663
        %v2927 = vunpack.c.l.b16 %v2664
        %v2928 = vunpack.c.l.b16 %v2665
        %v2929 = vunpack.c.l.b16 %v2666
        %v2930 = vunpack.c.l.b16 %v2667
        %v2931 = vunpack.c.l.b16 %v2668
        %v2932 = vunpack.c.l.b16 %v2669
        %v2933 = vunpack.c.l.b16 %v2670
        %v2934 = vunpack.c.l.b16 %v2671
        %v2935 = vunpack.c.l.b16 %v2672
        %v2936 = vunpack.c.l.b16 %v2673
        %v2937 = vunpack.c.l.b16 %v2674
        %v2938 = vunpack.c.l.b16 %v2675
        %v2939 = vunpack.c.l.b16 %v2676
        %v2940 = vunpack.c.l.b16 %v2677
        %v2941 = vunpack.c.l.b16 %v2678
        %v2942 = vunpack.c.l.b16 %v2679
        %v2943 = vunpack.c.l.b16 %v2680
        %v2944 = vunpack.c.l.b16 %v2681
        %v2945 = vunpack.c.l.b16 %v2682
        %v2946 = vunpack.c.l.b16 %v2683
        %v2947 = vunpack.c.l.b16 %v2684
        %v2948 = vunpack.c.l.b16 %v2685
        %v2949 = vunpack.c.l.b16 %v2686
        %v2950 = vunpack.c.l.b16 %v2687
        %v2951 = vunpack.c.l.b16 %v2688
        %v2952 = vunpack.c.l.b16 %v2689
        %v2953 = vunpack.c.l.b16 %v2690
        %v2954 = vunpack.c.l.b16 %v2691
        %v2955 = vunpack.c.l.b16 %v2692
        %v2956 = vunpack.c.l.b16 %v2693
        %v2957 = vunpack.c.l.b16 %v2694
        %v2958 = vunpack.c.l.b16 %v2695
        %v2959 = vunpack.c.l.b16 %v2696
        %v2960 = vunpack.c.l.b16 %v2697
        %v2961 = vunpack.c.l.b16 %v2698
        %v2962 = vunpack.c.l.b16 %v2699
        %v2963 = vunpack.c.l.b16 %v2700
        %v2964 = vunpack.c.l.b16 %v2701
        %v2965 = vunpack.c.l.b16 %v2702
        %v2966 = vunpack.c.l.b16 %v2703
        %v2967 = vunpack.c.l.b16 %v2704
        %v2968 = vpack.c.b16 %v2841, %v2840
        %v2969 = vpack.c.b16 %v2843, %v2842
        %v2970 = vpack.c.b16 %v2845, %v2844
        %v2971 = vpack.c.b16 %v2847, %v2846
        %v2972 = vpack.c.b16 %v2849, %v2848
        %v2973 = vpack.c.b16 %v2851, %v2850
        %v2974 = vpack.c.b16 %v2853, %v2852
        %v2975 = vpack.c.b16 %v2855, %v2854
        %v2976 = vpack.c.b16 %v2857, %v2856
        %v2977 = vpack.c.b16 %v2859, %v2858
        %v2978 = vpack.c.b16 %v2861, %v2860
        %v2979 = vpack.c.b16 %v2863, %v2862
        %v2980 = vpack.c.b16 %v2865, %v2864
        %v2981 = vpack.c.b16 %v2867, %v2866
        %v2982 = vpack.c.b16 %v2869, %v2868
        %v2983 = vpack.c.b16 %v2871, %v2870
        %v2984 = vpack.c.b16 %v2873, %v2872
        %v2985 = vpack.c.b16 %v2875, %v2874
        %v2986 = vpack.c.b16 %v2877, %v2876
        %v2987 = vpack.c.b16 %v2879, %v2878
        %v2988 = vpack.c.b16 %v2881, %v2880
        %v2989 = vpack.c.b16 %v2883, %v2882
        %v2990 = vpack.c.b16 %v2885, %v2884
        %v2991 = vpack.c.b16 %v2887, %v2886
        %v2992 = vpack.c.b16 %v2889, %v2888
        %v2993 = vpack.c.b16 %v2891, %v2890
        %v2994 = vpack.c.b16 %v2893, %v2892
        %v2995 = vpack.c.b16 %v2895, %v2894
        %v2996 = vpack.c.b16 %v2897, %v2896
        %v2997 = vpack.c.b16 %v2899, %v2898
        %v2998 = vpack.c.b16 %v2901, %v2900
        %v2999 = vpack.c.b16 %v2903, %v2902
        %v3000 = vpack.c.b16 %v2905, %v2904
        %v3001 = vpack.c.b16 %v2907, %v2906
        %v3002 = vpack.c.b16 %v2909, %v2908
        %v3003 = vpack.c.b16 %v2911, %v2910
        %v3004 = vpack.c.b16 %v2913, %v2912
        %v3005 = vpack.c.b16 %v2915, %v2914
        %v3006 = vpack.c.b16 %v2917, %v2916
        %v3007 = vpack.c.b16 %v2919, %v2918
        %v3008 = vpack.c.b16 %v2921, %v2920
        %v3009 = vpack.c.b16 %v2923, %v2922
        %v3010 = vpack.c.b16 %v2925, %v2924
        %v3011 = vpack.c.b16 %v2927, %v2926
        %v3012 = vpack.c.b16 %v2929, %v2928
        %v3013 = vpack.c.b16 %v2931, %v2930
        %v3014 = vpack.c.b16 %v2933, %v2932
        %v3015 = vpack.c.b16 %v2935, %v2934
        %v3016 = vpack.c.b16 %v2937, %v2936
        %v3017 = vpack.c.b16 %v2939, %v2938
        %v3018 = vpack.c.b16 %v2941, %v2940
        %v3019 = vpack.c.b16 %v2943, %v2942
        %v3020 = vpack.c.b16 %v2945, %v2944
        %v3021 = vpack.c.b16 %v2947, %v2946
        %v3022 = vpack.c.b16 %v2949, %v2948
        %v3023 = vpack.c.b16 %v2951, %v2950
        %v3024 = vpack.c.b16 %v2953, %v2952
        %v3025 = vpack.c.b16 %v2955, %v2954
        %v3026 = vpack.c.b16 %v2957, %v2956
        %v3027 = vpack.c.b16 %v2959, %v2958
        %v3028 = vpack.c.b16 %v2961, %v2960
        %v3029 = vpack.c.b16 %v2963, %v2962
        %v3030 = vpack.c.b16 %v2965, %v2964
        %v3031 = vpack.c.b16 %v2967, %v2966
        %3096 = vmatprep.subr.bf16.mxu0 0
        %3097 = vmatpush1.bf16.msra.mxu0 %v2968
        %3098 = vmatprep.subr.bf16.mxu0 0
        %3099 = vmatpush1.bf16.msra.mxu0 %v2969
        %3100 = vmatprep.subr.bf16.mxu0 0
        %3101 = vmatpush1.bf16.msra.mxu0 %v2970
        %3102 = vmatprep.subr.bf16.mxu0 0
        %3103 = vmatpush1.bf16.msra.mxu0 %v2971
        %3104 = vmatprep.subr.bf16.mxu0 0
        %3105 = vmatpush1.bf16.msra.mxu0 %v2972
        %3106 = vmatprep.subr.bf16.mxu0 0
        %3107 = vmatpush1.bf16.msra.mxu0 %v2973
        %3108 = vmatprep.subr.bf16.mxu0 0
        %3109 = vmatpush1.bf16.msra.mxu0 %v2974
        %3110 = vmatprep.subr.bf16.mxu0 0
        %3111 = vmatpush1.bf16.msra.mxu0 %v2975
        %3112 = vmatprep.subr.bf16.mxu0 0
        %3113 = vmatpush1.bf16.msra.mxu0 %v2976
        %3114 = vmatprep.subr.bf16.mxu0 0
        %3115 = vmatpush1.bf16.msra.mxu0 %v2977
        %3116 = vmatprep.subr.bf16.mxu0 0
        %3117 = vmatpush1.bf16.msra.mxu0 %v2978
        %3118 = vmatprep.subr.bf16.mxu0 0
        %3119 = vmatpush1.bf16.msra.mxu0 %v2979
        %3120 = vmatprep.subr.bf16.mxu0 0
        %3121 = vmatpush1.bf16.msra.mxu0 %v2980
        %3122 = vmatprep.subr.bf16.mxu0 0
        %3123 = vmatpush1.bf16.msra.mxu0 %v2981
        %3124 = vmatprep.subr.bf16.mxu0 0
        %3125 = vmatpush1.bf16.msra.mxu0 %v2982
        %3126 = vmatprep.subr.bf16.mxu0 0
        %3127 = vmatpush1.bf16.msra.mxu0 %v2983
        %3128 = vmatprep.mubr.bf16.mxu0 %v2570
        %3129 = vmatmul.mubr.bf16.gmra.mrb[0].mxu0 %v2569
        %v3130 = vpop.f32.mrb[0].mxu0
        %v3131 = vadd.f32 %v2710, %v3130
        %v3132 = vpop.f32.mrb[0].mxu0
        %v3133 = vpop.f32.mrb[0].mxu0
        %v3134 = vpop.f32.mrb[0].mxu0
        %3135 = vdwg.mxu0
        %3136 = vmatprep.subr.bf16.mxu0 0
        %3137 = vmatpush1.bf16.msra.mxu0 %v2984
        %3138 = vmatprep.subr.bf16.mxu0 0
        %3139 = vmatpush1.bf16.msra.mxu0 %v2985
        %3140 = vmatprep.subr.bf16.mxu0 0
        %3141 = vmatpush1.bf16.msra.mxu0 %v2986
        %3142 = vmatprep.subr.bf16.mxu0 0
        %3143 = vmatpush1.bf16.msra.mxu0 %v2987
        %3144 = vmatprep.subr.bf16.mxu0 0
        %3145 = vmatpush1.bf16.msra.mxu0 %v2988
        %3146 = vmatprep.subr.bf16.mxu0 0
        %3147 = vmatpush1.bf16.msra.mxu0 %v2989
        %3148 = vmatprep.subr.bf16.mxu0 0
        %3149 = vmatpush1.bf16.msra.mxu0 %v2990
        %3150 = vmatprep.subr.bf16.mxu0 0
        %3151 = vmatpush1.bf16.msra.mxu0 %v2991
        %3152 = vmatprep.subr.bf16.mxu0 0
        %3153 = vmatpush1.bf16.msra.mxu0 %v2992
        %3154 = vmatprep.subr.bf16.mxu0 0
        %3155 = vmatpush1.bf16.msra.mxu0 %v2993
        %3156 = vmatprep.subr.bf16.mxu0 0
        %3157 = vmatpush1.bf16.msra.mxu0 %v2994
        %3158 = vmatprep.subr.bf16.mxu0 0
        %3159 = vmatpush1.bf16.msra.mxu0 %v2995
        %3160 = vmatprep.subr.bf16.mxu0 0
        %3161 = vmatpush1.bf16.msra.mxu0 %v2996
        %3162 = vmatprep.subr.bf16.mxu0 0
        %3163 = vmatpush1.bf16.msra.mxu0 %v2997
        %3164 = vmatprep.subr.bf16.mxu0 0
        %3165 = vmatpush1.bf16.msra.mxu0 %v2998
        %3166 = vmatprep.subr.bf16.mxu0 0
        %3167 = vmatpush1.bf16.msra.mxu0 %v2999
        %3168 = vmatprep.mubr.bf16.mxu0 %v2572
        %3169 = vmatmul.mubr.bf16.gmra.mrb[0].mxu0 %v2571
        %v3170 = vpop.f32.mrb[0].mxu0
        %v3171 = vadd.f32 %v3131, %v3170
        %v3172 = vpop.f32.mrb[0].mxu0
        %v3173 = vpop.f32.mrb[0].mxu0
        %v3174 = vpop.f32.mrb[0].mxu0
        %3175 = vdwg.mxu0
        %3176 = vmatprep.subr.bf16.mxu0 0
        %3177 = vmatpush1.bf16.msra.mxu0 %v3000
        %3178 = vmatprep.subr.bf16.mxu0 0
        %3179 = vmatpush1.bf16.msra.mxu0 %v3001
        %3180 = vmatprep.subr.bf16.mxu0 0
        %3181 = vmatpush1.bf16.msra.mxu0 %v3002
        %3182 = vmatprep.subr.bf16.mxu0 0
        %3183 = vmatpush1.bf16.msra.mxu0 %v3003
        %3184 = vmatprep.subr.bf16.mxu0 0
        %3185 = vmatpush1.bf16.msra.mxu0 %v3004
        %3186 = vmatprep.subr.bf16.mxu0 0
        %3187 = vmatpush1.bf16.msra.mxu0 %v3005
        %3188 = vmatprep.subr.bf16.mxu0 0
        %3189 = vmatpush1.bf16.msra.mxu0 %v3006
        %3190 = vmatprep.subr.bf16.mxu0 0
        %3191 = vmatpush1.bf16.msra.mxu0 %v3007
        %3192 = vmatprep.subr.bf16.mxu0 0
        %3193 = vmatpush1.bf16.msra.mxu0 %v3008
        %3194 = vmatprep.subr.bf16.mxu0 0
        %3195 = vmatpush1.bf16.msra.mxu0 %v3009
        %3196 = vmatprep.subr.bf16.mxu0 0
        %3197 = vmatpush1.bf16.msra.mxu0 %v3010
        %3198 = vmatprep.subr.bf16.mxu0 0
        %3199 = vmatpush1.bf16.msra.mxu0 %v3011
        %3200 = vmatprep.subr.bf16.mxu0 0
        %3201 = vmatpush1.bf16.msra.mxu0 %v3012
        %3202 = vmatprep.subr.bf16.mxu0 0
        %3203 = vmatpush1.bf16.msra.mxu0 %v3013
        %3204 = vmatprep.subr.bf16.mxu0 0
        %3205 = vmatpush1.bf16.msra.mxu0 %v3014
        %3206 = vmatprep.subr.bf16.mxu0 0
        %3207 = vmatpush1.bf16.msra.mxu0 %v3015
        %3208 = vmatprep.mubr.bf16.mxu0 %v2574
        %3209 = vmatmul.mubr.bf16.gmra.mrb[0].mxu0 %v2573
        %v3210 = vpop.f32.mrb[0].mxu0
        %v3211 = vadd.f32 %v3171, %v3210
        %v3212 = vpop.f32.mrb[0].mxu0
        %v3213 = vpop.f32.mrb[0].mxu0
        %v3214 = vpop.f32.mrb[0].mxu0
        %3215 = vdwg.mxu0
        %3216 = vmatprep.subr.bf16.mxu0 0
        %3217 = vmatpush1.bf16.msra.mxu0 %v3016
        %3218 = vmatprep.subr.bf16.mxu0 0
        %3219 = vmatpush1.bf16.msra.mxu0 %v3017
        %3220 = vmatprep.subr.bf16.mxu0 0
        %3221 = vmatpush1.bf16.msra.mxu0 %v3018
        %3222 = vmatprep.subr.bf16.mxu0 0
        %3223 = vmatpush1.bf16.msra.mxu0 %v3019
        %3224 = vmatprep.subr.bf16.mxu0 0
        %3225 = vmatpush1.bf16.msra.mxu0 %v3020
        %3226 = vmatprep.subr.bf16.mxu0 0
        %3227 = vmatpush1.bf16.msra.mxu0 %v3021
        %3228 = vmatprep.subr.bf16.mxu0 0
        %3229 = vmatpush1.bf16.msra.mxu0 %v3022
        %3230 = vmatprep.subr.bf16.mxu0 0
        %3231 = vmatpush1.bf16.msra.mxu0 %v3023
        %3232 = vmatprep.subr.bf16.mxu0 0
        %3233 = vmatpush1.bf16.msra.mxu0 %v3024
        %3234 = vmatprep.subr.bf16.mxu0 0
        %3235 = vmatpush1.bf16.msra.mxu0 %v3025
        %3236 = vmatprep.subr.bf16.mxu0 0
        %3237 = vmatpush1.bf16.msra.mxu0 %v3026
        %3238 = vmatprep.subr.bf16.mxu0 0
        %3239 = vmatpush1.bf16.msra.mxu0 %v3027
        %3240 = vmatprep.subr.bf16.mxu0 0
        %3241 = vmatpush1.bf16.msra.mxu0 %v3028
        %3242 = vmatprep.subr.bf16.mxu0 0
        %3243 = vmatpush1.bf16.msra.mxu0 %v3029
        %3244 = vmatprep.subr.bf16.mxu0 0
        %3245 = vmatpush1.bf16.msra.mxu0 %v3030
        %3246 = vmatprep.subr.bf16.mxu0 0
        %3247 = vmatpush1.bf16.msra.mxu0 %v3031
        %3248 = vmatprep.mubr.bf16.mxu0 %v2576
        %3249 = vmatmul.mubr.bf16.gmra.mrb[0].mxu0 %v2575
        %v3250 = vpop.f32.mrb[0].mxu0
        %v3251 = vadd.f32 %v3211, %v3250
        %v3252 = vpop.f32.mrb[0].mxu0
        %v3253 = vpop.f32.mrb[0].mxu0
        %v3254 = vpop.f32.mrb[0].mxu0
        %3255 = vdwg.mxu0
        %v3256 = vld [vmem:[%s7] sm:$0x1]
        %v3258 = vlaneseq
        %v3259 = vshrl.u32 %v3258, 7
        %v3260 = vsub.s32 0, %v3259
        %v3261 = vrot.slane %v3256, %v3260
        %v3263 = vmul.f32 %v3251, %v3261
        %v3264 = vld [vmem:[%s8] sm:$0x1]
        %v3266 = vlaneseq
        %v3267 = vshrl.u32 %v3266, 7
        %v3268 = vsub.s32 0, %v3267
        %v3269 = vrot.slane %v3264, %v3268
        %v3271 = vadd.f32 %v3263, %v3269
        %v3272 = vadd.f32 %v3271, %v349
        %v3273 = vmul.f32 %v3272, 0.5
        %3274 = vst.msk [vmem:[%s338] sm:$0xff] %vm2327, %v3273
        %s3275 = sand.u32 %s230, 1
        %s3276 = scalar_lea.sflag [#allocation3], %s3275
        %s3277 = sand.u32 %s230, 1
        %s3278 = smul.addr %s3277, 8
        %s3279 = scalar_lea.vmem [#allocation2], %s3278
        // Predicated region
        $region57: #{mddnet_forward.3} parent=55 // pred_check
          %p3280 = pneg %p240
        $region58: #{mddnet_forward.3} parent=55 // pred_check_branch
          %3282 = sbr.rel (%p3280) target = $region60
        $region59: #{mddnet_forward.3} parent=55 // pred_region
          %s3284 = ssub.s32 128, 128
          %3285 = vsyncadd %s3276, %s3284
          %s3286 = smul.addr %s23, 128
          %s3287 = scalar_lea.hbm %s9, %s3286
          %s3289 = sshll.u32 %s3279, 4
          %s3290 = int_to_ptr.vmem [resolvable:$true] %s3289
          %3292 = dma.vmem_to_hbm [thread:$0]  %s3290, 128, %s3287, %s3276
        $region60: #{mddnet_forward.3} parent=55 // pred_fallthru
          _
      $region56: #{mddnet_forward.3} parent=5 // pred_fallthru
        _
      %p3293 = scmp.le.s32.totalorder 2, %s18
      // Predicated region
      $region61: #{mddnet_forward.3} parent=5 // pred_check
        %p3294 = pneg %p3293
      $region62: #{mddnet_forward.3} parent=5 // pred_check_branch
        %3296 = sbr.rel (%p3294) target = $region64
      $region63: #{mddnet_forward.3} parent=5 // pred_region
        %s3297 = ssub.s32 %s18, 2
        // Predicated region
        $region65: #{mddnet_forward.3} parent=63 // pred_check
          %p3298 = pneg %p246
        $region66: #{mddnet_forward.3} parent=63 // pred_check_branch
          %3300 = sbr.rel (%p3298) target = $region68
        $region67: #{mddnet_forward.3} parent=63 // pred_region
          %s3301 = sand.u32 %s231, 1
          %s3302 = scalar_lea.sflag [#allocation3], %s3301
          %s3303 = sand.u32 %s231, 1
          %s3304 = smul.addr %s3303, 8
          %s3305 = scalar_lea.vmem [#allocation2], %s3304
          %3306 = dma.done %s3302, 128
        $region68: #{mddnet_forward.3} parent=63 // pred_fallthru
          _
      $region64: #{mddnet_forward.3} parent=5 // pred_fallthru
        _
    $region6: #{mddnet_forward.3} parent=1 // loop_footer
      %s22 = sadd.s32 1, %s18
    $region7: #{mddnet_forward.3} parent=1 // loop_footer_branch
      %17 = sbr.rel target = $region3
    $region8: #{mddnet_forward.3} parent=1 // loop_exit
      _
    %3307 = vsyncpa [#allocation3], 1
    %s3308 = scalar_lea.sflag [#allocation3], 1
    %3309 = vsyncpa %s3308, 1

</llo_original>
